<compile_context>
chip_gen: v6e
topology: v6e:2x2x1
jax: 0.10.0
libtpu: 0.0.40
codegen_flags: <defaults>
</compile_context>

<pallas_src>
import math
import functools

import jax
import jax.numpy as jnp
from jax.experimental import pallas as pl
from jax.experimental.pallas import tpu as pltpu


def _layernorm(x, gamma, beta, eps=1e-6):
    # gamma * (x - mean) / (std + eps) + beta, std unbiased (N-1), f32 math.
    mean = jnp.mean(x, axis=-1, keepdims=True)
    xc = x - mean
    var = jnp.sum(xc * xc, axis=-1, keepdims=True) / (x.shape[-1] - 1)
    inv = pl.reciprocal(jnp.sqrt(var) + eps, approx=True)
    return gamma * xc * inv + beta


def sa_kernel(y_ref, maskadd_ref,
              wq_ref, bq_ref, wk_ref, bk_ref, wv_ref, bv_ref, wm_ref, bm_ref,
              w1_ref, b1_ref, w2_ref, b2_ref,
              g1_ref, be1_ref, g2_ref, be2_ref,
              out_ref, *, num_heads):
    bt, L, H = y_ref.shape
    dk = H // num_heads
    scale = 1.0 / math.sqrt(dk)

    y = y_ref[...].reshape(bt * L, H)            # f32 [bt*L, H]
    y_bf = y.astype(jnp.bfloat16)

    def linear(x_bf, w_ref, b_ref):
        # bf16 MXU inputs, f32 accumulation, f32 bias add.
        return jnp.dot(x_bf, w_ref[...],
                       preferred_element_type=jnp.float32) + b_ref[...]

    # --- q / k / v projections over all bt*L rows (one wide matmul each) ---
    q = linear(y_bf, wq_ref, bq_ref)             # [bt*L, H] f32
    k = linear(y_bf, wk_ref, bk_ref)
    v = linear(y_bf, wv_ref, bv_ref)

    # --- multi-head attention: heads batched in a single dot_general ---
    atted_rows = []
    for b in range(bt):                          # small static loop over batch block
        rows = slice(b * L, (b + 1) * L)
        qb = q[rows].reshape(L, num_heads, dk).astype(jnp.bfloat16)
        kb = k[rows].reshape(L, num_heads, dk).astype(jnp.bfloat16)
        vb = v[rows].reshape(L, num_heads, dk).astype(jnp.bfloat16)

        # [h, Lq, Lk] — contraction on last dims, no explicit transpose of k
        s = jnp.einsum("qhd,khd->hqk", qb, kb,
                       preferred_element_type=jnp.float32) * scale
        s = s + maskadd_ref[b][None]             # [1,1,L] additive -1e9 mask
        s = s - jnp.max(s, axis=-1, keepdims=True)
        p = jnp.exp(s)
        p = p * pl.reciprocal(jnp.sum(p, axis=-1, keepdims=True), approx=True)

        # [Lq, h, dk] directly in merge layout
        ctx = jnp.einsum("hqk,khd->qhd", p.astype(jnp.bfloat16), vb,
                         preferred_element_type=jnp.float32)
        atted_rows.append(ctx.reshape(L, H))

    atted = jnp.concatenate(atted_rows, axis=0) if bt > 1 else atted_rows[0]

    # merge projection
    atted = linear(atted.astype(jnp.bfloat16), wm_ref, bm_ref)

    # residual + LayerNorm1 (dropout1 is identity in eval mode)
    x = _layernorm(y + atted, g1_ref[...], be1_ref[...])

    # --- FFN: Linear -> ReLU -> (dropout=id) -> Linear ---
    h1 = linear(x.astype(jnp.bfloat16), w1_ref, b1_ref)
    h1 = jnp.maximum(h1, 0.0)
    ff = linear(h1.astype(jnp.bfloat16), w2_ref, b2_ref)

    # residual + LayerNorm2 (dropout2 is identity in eval mode)
    out = _layernorm(x + ff, g2_ref[...], be2_ref[...])
    out_ref[...] = out.reshape(bt, L, H).astype(out_ref.dtype)


def _pick_batch_block(B):
    for bt in (8, 4, 2, 1):
        if bt <= B and B % bt == 0:
            return bt
    return 1


def sa_forward(y, y_mask_bool, params, *, num_heads, batch_block=None):
    """y: [B, L, H] float32; y_mask_bool: [B, 1, 1, L] bool (True = masked)."""
    B, L, H = y.shape
    F = params["w1"].shape[1]
    assert H % num_heads == 0
    bt = batch_block if batch_block is not None else _pick_batch_block(B)
    assert B % bt == 0

    # additive mask, shape [B, 1, L] (matches masked_fill(mask, -1e9))
    mask_add = jnp.where(y_mask_bool[:, 0, 0, :], -1e9, 0.0).astype(jnp.float32)
    mask_add = mask_add.reshape(B, 1, L)

    # weights in bf16 (MXU-native, halves weight VMEM); biases / LN params f32
    bf16 = lambda a: a.astype(jnp.bfloat16)

    const2d = lambda b: (0, 0)                   # grid-invariant weight blocks
    wspec = lambda shape: pl.BlockSpec(shape, const2d)

    in_specs = [
        pl.BlockSpec((bt, L, H), lambda b: (b, 0, 0)),   # y
        pl.BlockSpec((bt, 1, L), lambda b: (b, 0, 0)),   # additive mask
        wspec((H, H)), wspec((1, H)),                    # Wq, bq
        wspec((H, H)), wspec((1, H)),                    # Wk, bk
        wspec((H, H)), wspec((1, H)),                    # Wv, bv
        wspec((H, H)), wspec((1, H)),                    # Wmerge, bmerge
        wspec((H, F)), wspec((1, F)),                    # W1, b1
        wspec((F, H)), wspec((1, H)),                    # W2, b2
        wspec((1, H)), wspec((1, H)),                    # ln1 gamma, beta
        wspec((1, H)), wspec((1, H)),                    # ln2 gamma, beta
    ]

    kernel = functools.partial(sa_kernel, num_heads=num_heads)
    return pl.pallas_call(
        kernel,
        out_shape=jax.ShapeDtypeStruct((B, L, H), jnp.float32),
        grid_spec=pltpu.PrefetchScalarGridSpec(
            num_scalar_prefetch=0,
            grid=(B // bt,),
            in_specs=in_specs,
            out_specs=pl.BlockSpec((bt, L, H), lambda b: (b, 0, 0)),
        ),
        compiler_params=pltpu.CompilerParams(
            dimension_semantics=("parallel",),
            vmem_limit_bytes=48 * 1024 * 1024),
    )(y, mask_add,
      bf16(params["wq"]), params["bq"], bf16(params["wk"]), params["bk"],
      bf16(params["wv"]), params["bv"], bf16(params["wm"]), params["bm"],
      bf16(params["w1"]), params["b1"], bf16(params["w2"]), params["b2"],
      params["g1"], params["be1"], params["g2"], params["be2"])


# ---------------- pure-JAX reference (for correctness check) ----------------
def sa_reference(y, y_mask_bool, p, *, num_heads):
    B, L, H = y.shape
    dk = H // num_heads

    def lin(x, w, b):
        return x @ w + b

    q = lin(y, p["wq"], p["bq"]).reshape(B, L, num_heads, dk).transpose(0, 2, 1, 3)
    k = lin(y, p["wk"], p["bk"]).reshape(B, L, num_heads, dk).transpose(0, 2, 1, 3)
    v = lin(y, p["wv"], p["bv"]).reshape(B, L, num_heads, dk).transpose(0, 2, 1, 3)
    scores = jnp.einsum("bhqd,bhkd->bhqk", q, k) / math.sqrt(dk)
    scores = jnp.where(y_mask_bool, -1e9, scores)
    att = jax.nn.softmax(scores, axis=-1)
    atted = jnp.einsum("bhqk,bhkd->bhqd", att, v).transpose(0, 2, 1, 3).reshape(B, L, H)
    atted = lin(atted, p["wm"], p["bm"])

    def ln(x, g, b, eps=1e-6):
        mean = x.mean(-1, keepdims=True)
        std = jnp.sqrt(((x - mean) ** 2).sum(-1, keepdims=True) / (x.shape[-1] - 1))
        return g * (x - mean) / (std + eps) + b

    x = ln(y + atted, p["g1"], p["be1"])
    ff = lin(jnp.maximum(lin(x, p["w1"], p["b1"]), 0.0), p["w2"], p["b2"])
    return ln(x + ff, p["g2"], p["be2"])


def init_params(key, hidden, ff):
    keys = jax.random.split(key, 12)

    def linear(kw, kb, fan_in, fan_out):
        bound = 1.0 / math.sqrt(fan_in)
        w = jax.random.uniform(kw, (fan_in, fan_out), jnp.float32, -bound, bound)
        b = jax.random.uniform(kb, (1, fan_out), jnp.float32, -bound, bound)
        return w, b

    wq, bq = linear(keys[0], keys[1], hidden, hidden)
    wk, bk = linear(keys[2], keys[3], hidden, hidden)
    wv, bv = linear(keys[4], keys[5], hidden, hidden)
    wm, bm = linear(keys[6], keys[7], hidden, hidden)
    w1, b1 = linear(keys[8], keys[9], hidden, ff)
    w2, b2 = linear(keys[10], keys[11], ff, hidden)
    return dict(
        wq=wq, bq=bq, wk=wk, bk=bk, wv=wv, bv=bv, wm=wm, bm=bm,
        w1=w1, b1=b1, w2=w2, b2=b2,
        g1=jnp.ones((1, hidden), jnp.float32), be1=jnp.zeros((1, hidden), jnp.float32),
        g2=jnp.ones((1, hidden), jnp.float32), be2=jnp.zeros((1, hidden), jnp.float32),
    )


if __name__ == "__main__":
    B, L, H, HEADS, FF = 2, 8, 32, 4, 64

    key = jax.random.PRNGKey(0)
    k_x, k_p = jax.random.split(key)
    y = jax.random.normal(k_x, (B, L, H), dtype=jnp.float32)

    # boolean mask [B, 1, 1, L]: True = padded (masked out). Batch 1 masks its
    # last two key positions.
    y_mask = jnp.zeros((B, 1, 1, L), dtype=bool)
    y_mask = y_mask.at[1, 0, 0, L - 2:].set(True)

    params = init_params(k_p, H, FF)

    out = sa_forward(y, y_mask, params, num_heads=HEADS)
    out = jax.block_until_ready(out)

    ref = sa_reference(y, y_mask, params, num_heads=HEADS)
    assert out.shape == (B, L, H)
    # bf16 MXU inputs + approx reciprocals: loosened tolerance (f32 accumulation
    # keeps the error ~1e-2 worst case at these scales).
    assert jnp.allclose(out, ref, atol=5e-2, rtol=5e-2), (
        f"max abs err {jnp.max(jnp.abs(out - ref))}")

    print("KERNEL_OK")
</pallas_src>

<mosaic_0001>
module attributes {stable_mosaic.version = 11 : i64} {
  func.func @sa_kernel(%arg0: i32, %arg1: memref<2x8x32xf32, #tpu.memory_space<vmem>>, %arg2: memref<2x1x8xf32, #tpu.memory_space<vmem>>, %arg3: memref<32x32xbf16, #tpu.memory_space<vmem>>, %arg4: memref<1x32xf32, #tpu.memory_space<vmem>>, %arg5: memref<32x32xbf16, #tpu.memory_space<vmem>>, %arg6: memref<1x32xf32, #tpu.memory_space<vmem>>, %arg7: memref<32x32xbf16, #tpu.memory_space<vmem>>, %arg8: memref<1x32xf32, #tpu.memory_space<vmem>>, %arg9: memref<32x32xbf16, #tpu.memory_space<vmem>>, %arg10: memref<1x32xf32, #tpu.memory_space<vmem>>, %arg11: memref<32x64xbf16, #tpu.memory_space<vmem>>, %arg12: memref<1x64xf32, #tpu.memory_space<vmem>>, %arg13: memref<64x32xbf16, #tpu.memory_space<vmem>>, %arg14: memref<1x32xf32, #tpu.memory_space<vmem>>, %arg15: memref<1x32xf32, #tpu.memory_space<vmem>>, %arg16: memref<1x32xf32, #tpu.memory_space<vmem>>, %arg17: memref<1x32xf32, #tpu.memory_space<vmem>>, %arg18: memref<1x32xf32, #tpu.memory_space<vmem>>, %arg19: memref<2x8x32xf32, #tpu.memory_space<vmem>>) attributes {dimension_semantics = [#tpu.dimension_semantics<parallel>], iteration_bounds = array<i64: 1>, scalar_prefetch = 0 : i64, scratch_operands = 0 : i64, tpu.core_type = #tpu.core_type<tc>, window_params = [{transform_indices = @transform_0, window_bounds = array<i64: 2, 8, 32>}, {transform_indices = @transform_1, window_bounds = array<i64: 2, 1, 8>}, {pipeline_mode = #tpu.pipeline_mode<synchronous>, transform_indices = @transform_2, window_bounds = array<i64: 32, 32>}, {pipeline_mode = #tpu.pipeline_mode<synchronous>, transform_indices = @transform_3, window_bounds = array<i64: 1, 32>}, {pipeline_mode = #tpu.pipeline_mode<synchronous>, transform_indices = @transform_4, window_bounds = array<i64: 32, 32>}, {pipeline_mode = #tpu.pipeline_mode<synchronous>, transform_indices = @transform_5, window_bounds = array<i64: 1, 32>}, {pipeline_mode = #tpu.pipeline_mode<synchronous>, transform_indices = @transform_6, window_bounds = array<i64: 32, 32>}, {pipeline_mode = #tpu.pipeline_mode<synchronous>, transform_indices = @transform_7, window_bounds = array<i64: 1, 32>}, {pipeline_mode = #tpu.pipeline_mode<synchronous>, transform_indices = @transform_8, window_bounds = array<i64: 32, 32>}, {pipeline_mode = #tpu.pipeline_mode<synchronous>, transform_indices = @transform_9, window_bounds = array<i64: 1, 32>}, {pipeline_mode = #tpu.pipeline_mode<synchronous>, transform_indices = @transform_10, window_bounds = array<i64: 32, 64>}, {pipeline_mode = #tpu.pipeline_mode<synchronous>, transform_indices = @transform_11, window_bounds = array<i64: 1, 64>}, {pipeline_mode = #tpu.pipeline_mode<synchronous>, transform_indices = @transform_12, window_bounds = array<i64: 64, 32>}, {pipeline_mode = #tpu.pipeline_mode<synchronous>, transform_indices = @transform_13, window_bounds = array<i64: 1, 32>}, {pipeline_mode = #tpu.pipeline_mode<synchronous>, transform_indices = @transform_14, window_bounds = array<i64: 1, 32>}, {pipeline_mode = #tpu.pipeline_mode<synchronous>, transform_indices = @transform_15, window_bounds = array<i64: 1, 32>}, {pipeline_mode = #tpu.pipeline_mode<synchronous>, transform_indices = @transform_16, window_bounds = array<i64: 1, 32>}, {pipeline_mode = #tpu.pipeline_mode<synchronous>, transform_indices = @transform_17, window_bounds = array<i64: 1, 32>}, {transform_indices = @transform_18, window_bounds = array<i64: 2, 8, 32>}]} {
    %c0 = arith.constant 0 : index
    %c0_0 = arith.constant 0 : index
    %c0_1 = arith.constant 0 : index
    %0 = vector.load %arg1[%c0, %c0_0, %c0_1] : memref<2x8x32xf32, #tpu.memory_space<vmem>>, vector<2x8x32xf32>
    %1 = vector.shape_cast %0 : vector<2x8x32xf32> to vector<16x32xf32>
    %2 = arith.truncf %1 : vector<16x32xf32> to vector<16x32xbf16>
    %c0_2 = arith.constant 0 : index
    %c0_3 = arith.constant 0 : index
    %3 = vector.load %arg3[%c0_2, %c0_3] : memref<32x32xbf16, #tpu.memory_space<vmem>>, vector<32x32xbf16>
    %cst = arith.constant dense<0.000000e+00> : vector<16x32xf32>
    %4 = tpu.matmul %2, %3, %cst {dimension_numbers = #tpu.dot_dimension_numbers<[1], [0], [0], [1], [0, 0, 1, 1], [], []>} : vector<16x32xbf16>, vector<32x32xbf16>, vector<16x32xf32> -> vector<16x32xf32>
    %c0_4 = arith.constant 0 : index
    %c0_5 = arith.constant 0 : index
    %5 = vector.load %arg4[%c0_4, %c0_5] : memref<1x32xf32, #tpu.memory_space<vmem>>, vector<1x32xf32>
    %6 = vector.broadcast %5 : vector<1x32xf32> to vector<16x32xf32>
    %7 = arith.addf %4, %6 : vector<16x32xf32>
    %c0_6 = arith.constant 0 : index
    %c0_7 = arith.constant 0 : index
    %8 = vector.load %arg5[%c0_6, %c0_7] : memref<32x32xbf16, #tpu.memory_space<vmem>>, vector<32x32xbf16>
    %cst_8 = arith.constant dense<0.000000e+00> : vector<16x32xf32>
    %9 = tpu.matmul %2, %8, %cst_8 {dimension_numbers = #tpu.dot_dimension_numbers<[1], [0], [0], [1], [0, 0, 1, 1], [], []>} : vector<16x32xbf16>, vector<32x32xbf16>, vector<16x32xf32> -> vector<16x32xf32>
    %c0_9 = arith.constant 0 : index
    %c0_10 = arith.constant 0 : index
    %10 = vector.load %arg6[%c0_9, %c0_10] : memref<1x32xf32, #tpu.memory_space<vmem>>, vector<1x32xf32>
    %11 = vector.broadcast %10 : vector<1x32xf32> to vector<16x32xf32>
    %12 = arith.addf %9, %11 : vector<16x32xf32>
    %c0_11 = arith.constant 0 : index
    %c0_12 = arith.constant 0 : index
    %13 = vector.load %arg7[%c0_11, %c0_12] : memref<32x32xbf16, #tpu.memory_space<vmem>>, vector<32x32xbf16>
    %cst_13 = arith.constant dense<0.000000e+00> : vector<16x32xf32>
    %14 = tpu.matmul %2, %13, %cst_13 {dimension_numbers = #tpu.dot_dimension_numbers<[1], [0], [0], [1], [0, 0, 1, 1], [], []>} : vector<16x32xbf16>, vector<32x32xbf16>, vector<16x32xf32> -> vector<16x32xf32>
    %c0_14 = arith.constant 0 : index
    %c0_15 = arith.constant 0 : index
    %15 = vector.load %arg8[%c0_14, %c0_15] : memref<1x32xf32, #tpu.memory_space<vmem>>, vector<1x32xf32>
    %16 = vector.broadcast %15 : vector<1x32xf32> to vector<16x32xf32>
    %17 = arith.addf %14, %16 : vector<16x32xf32>
    %18 = vector.extract_strided_slice %7 {offsets = [0, 0], sizes = [8, 32], strides = [1, 1]} : vector<16x32xf32> to vector<8x32xf32>
    %19 = vector.shape_cast %18 : vector<8x32xf32> to vector<8x4x8xf32>
    %20 = arith.truncf %19 : vector<8x4x8xf32> to vector<8x4x8xbf16>
    %21 = vector.extract_strided_slice %12 {offsets = [0, 0], sizes = [8, 32], strides = [1, 1]} : vector<16x32xf32> to vector<8x32xf32>
    %22 = vector.shape_cast %21 : vector<8x32xf32> to vector<8x4x8xf32>
    %23 = arith.truncf %22 : vector<8x4x8xf32> to vector<8x4x8xbf16>
    %24 = vector.extract_strided_slice %17 {offsets = [0, 0], sizes = [8, 32], strides = [1, 1]} : vector<16x32xf32> to vector<8x32xf32>
    %25 = vector.shape_cast %24 : vector<8x32xf32> to vector<8x4x8xf32>
    %26 = arith.truncf %25 : vector<8x4x8xf32> to vector<8x4x8xbf16>
    "tpu.trace_start"() <{level = 10 : i32, message = "qhd,khd->hqk"}> : () -> ()
    %cst_16 = arith.constant dense<0.000000e+00> : vector<4x8x8xf32>
    %27 = tpu.matmul %20, %23, %cst_16 {dimension_numbers = #tpu.dot_dimension_numbers<[2], [2], [0], [0], [0, 1, 0, 0, 1, 0], [1], [1]>} : vector<8x4x8xbf16>, vector<8x4x8xbf16>, vector<4x8x8xf32> -> vector<4x8x8xf32>
    "tpu.trace_stop"() : () -> ()
    %cst_17 = arith.constant 0.353553385 : f32
    %28 = vector.broadcast %cst_17 : f32 to vector<4x8x8xf32>
    %29 = arith.mulf %27, %28 : vector<4x8x8xf32>
    %c0_18 = arith.constant 0 : index
    %c0_19 = arith.constant 0 : index
    %c0_20 = arith.constant 0 : index
    %30 = vector.load %arg2[%c0_18, %c0_19, %c0_20] : memref<2x1x8xf32, #tpu.memory_space<vmem>>, vector<1x1x8xf32>
    %31 = vector.shape_cast %30 : vector<1x1x8xf32> to vector<1x8xf32>
    %32 = vector.shape_cast %31 : vector<1x8xf32> to vector<1x1x8xf32>
    %33 = vector.broadcast %32 : vector<1x1x8xf32> to vector<4x8x8xf32>
    %34 = arith.addf %29, %33 : vector<4x8x8xf32>
    %cst_21 = arith.constant dense<0xFF800000> : vector<4x8xf32>
    %35 = vector.multi_reduction <maximumf>, %34, %cst_21 [2] : vector<4x8x8xf32> to vector<4x8xf32>
    %36 = vector.shape_cast %35 : vector<4x8xf32> to vector<4x8x1xf32>
    %37 = vector.broadcast %36 : vector<4x8x1xf32> to vector<4x8x8xf32>
    %38 = arith.subf %34, %37 : vector<4x8x8xf32>
    %39 = math.exp %38 : vector<4x8x8xf32>
    %cst_22 = arith.constant dense<0.000000e+00> : vector<4x8xf32>
    %40 = vector.multi_reduction <add>, %39, %cst_22 [2] : vector<4x8x8xf32> to vector<4x8xf32>
    %41 = vector.shape_cast %40 : vector<4x8xf32> to vector<4x8x1xf32>
    %42 = tpu.reciprocal %41 {approx = true} : vector<4x8x1xf32> -> vector<4x8x1xf32>
    %43 = vector.broadcast %42 : vector<4x8x1xf32> to vector<4x8x8xf32>
    %44 = arith.mulf %39, %43 : vector<4x8x8xf32>
    %45 = arith.truncf %44 : vector<4x8x8xf32> to vector<4x8x8xbf16>
    "tpu.trace_start"() <{level = 10 : i32, message = "hqk,khd->qhd"}> : () -> ()
    %cst_23 = arith.constant dense<0.000000e+00> : vector<4x8x8xf32>
    %46 = tpu.matmul %26, %45, %cst_23 {dimension_numbers = #tpu.dot_dimension_numbers<[0], [2], [2], [1], [0, 1, 0, 2, 1, 1], [1], [0]>} : vector<8x4x8xbf16>, vector<4x8x8xbf16>, vector<4x8x8xf32> -> vector<4x8x8xf32>
    %47 = tpu.transpose %46, [2, 0, 1] : vector<4x8x8xf32> -> vector<8x4x8xf32>
    "tpu.trace_stop"() : () -> ()
    %48 = vector.shape_cast %47 : vector<8x4x8xf32> to vector<8x32xf32>
    %49 = vector.extract_strided_slice %7 {offsets = [8, 0], sizes = [8, 32], strides = [1, 1]} : vector<16x32xf32> to vector<8x32xf32>
    %50 = vector.shape_cast %49 : vector<8x32xf32> to vector<8x4x8xf32>
    %51 = arith.truncf %50 : vector<8x4x8xf32> to vector<8x4x8xbf16>
    %52 = vector.extract_strided_slice %12 {offsets = [8, 0], sizes = [8, 32], strides = [1, 1]} : vector<16x32xf32> to vector<8x32xf32>
    %53 = vector.shape_cast %52 : vector<8x32xf32> to vector<8x4x8xf32>
    %54 = arith.truncf %53 : vector<8x4x8xf32> to vector<8x4x8xbf16>
    %55 = vector.extract_strided_slice %17 {offsets = [8, 0], sizes = [8, 32], strides = [1, 1]} : vector<16x32xf32> to vector<8x32xf32>
    %56 = vector.shape_cast %55 : vector<8x32xf32> to vector<8x4x8xf32>
    %57 = arith.truncf %56 : vector<8x4x8xf32> to vector<8x4x8xbf16>
    "tpu.trace_start"() <{level = 10 : i32, message = "qhd,khd->hqk"}> : () -> ()
    %cst_24 = arith.constant dense<0.000000e+00> : vector<4x8x8xf32>
    %58 = tpu.matmul %51, %54, %cst_24 {dimension_numbers = #tpu.dot_dimension_numbers<[2], [2], [0], [0], [0, 1, 0, 0, 1, 0], [1], [1]>} : vector<8x4x8xbf16>, vector<8x4x8xbf16>, vector<4x8x8xf32> -> vector<4x8x8xf32>
    "tpu.trace_stop"() : () -> ()
    %cst_25 = arith.constant 0.353553385 : f32
    %59 = vector.broadcast %cst_25 : f32 to vector<4x8x8xf32>
    %60 = arith.mulf %58, %59 : vector<4x8x8xf32>
    %c1 = arith.constant 1 : index
    %c0_26 = arith.constant 0 : index
    %c0_27 = arith.constant 0 : index
    %61 = vector.load %arg2[%c1, %c0_26, %c0_27] : memref<2x1x8xf32, #tpu.memory_space<vmem>>, vector<1x1x8xf32>
    %62 = vector.shape_cast %61 : vector<1x1x8xf32> to vector<1x8xf32>
    %63 = vector.shape_cast %62 : vector<1x8xf32> to vector<1x1x8xf32>
    %64 = vector.broadcast %63 : vector<1x1x8xf32> to vector<4x8x8xf32>
    %65 = arith.addf %60, %64 : vector<4x8x8xf32>
    %cst_28 = arith.constant dense<0xFF800000> : vector<4x8xf32>
    %66 = vector.multi_reduction <maximumf>, %65, %cst_28 [2] : vector<4x8x8xf32> to vector<4x8xf32>
    %67 = vector.shape_cast %66 : vector<4x8xf32> to vector<4x8x1xf32>
    %68 = vector.broadcast %67 : vector<4x8x1xf32> to vector<4x8x8xf32>
    %69 = arith.subf %65, %68 : vector<4x8x8xf32>
    %70 = math.exp %69 : vector<4x8x8xf32>
    %cst_29 = arith.constant dense<0.000000e+00> : vector<4x8xf32>
    %71 = vector.multi_reduction <add>, %70, %cst_29 [2] : vector<4x8x8xf32> to vector<4x8xf32>
    %72 = vector.shape_cast %71 : vector<4x8xf32> to vector<4x8x1xf32>
    %73 = tpu.reciprocal %72 {approx = true} : vector<4x8x1xf32> -> vector<4x8x1xf32>
    %74 = vector.broadcast %73 : vector<4x8x1xf32> to vector<4x8x8xf32>
    %75 = arith.mulf %70, %74 : vector<4x8x8xf32>
    %76 = arith.truncf %75 : vector<4x8x8xf32> to vector<4x8x8xbf16>
    "tpu.trace_start"() <{level = 10 : i32, message = "hqk,khd->qhd"}> : () -> ()
    %cst_30 = arith.constant dense<0.000000e+00> : vector<4x8x8xf32>
    %77 = tpu.matmul %57, %76, %cst_30 {dimension_numbers = #tpu.dot_dimension_numbers<[0], [2], [2], [1], [0, 1, 0, 2, 1, 1], [1], [0]>} : vector<8x4x8xbf16>, vector<4x8x8xbf16>, vector<4x8x8xf32> -> vector<4x8x8xf32>
    %78 = tpu.transpose %77, [2, 0, 1] : vector<4x8x8xf32> -> vector<8x4x8xf32>
    "tpu.trace_stop"() : () -> ()
    %79 = vector.shape_cast %78 : vector<8x4x8xf32> to vector<8x32xf32>
    %80 = tpu.concatenate %48, %79 in 0 : vector<8x32xf32>, vector<8x32xf32> -> vector<16x32xf32>
    %81 = arith.truncf %80 : vector<16x32xf32> to vector<16x32xbf16>
    %c0_31 = arith.constant 0 : index
    %c0_32 = arith.constant 0 : index
    %82 = vector.load %arg9[%c0_31, %c0_32] : memref<32x32xbf16, #tpu.memory_space<vmem>>, vector<32x32xbf16>
    %cst_33 = arith.constant dense<0.000000e+00> : vector<16x32xf32>
    %83 = tpu.matmul %81, %82, %cst_33 {dimension_numbers = #tpu.dot_dimension_numbers<[1], [0], [0], [1], [0, 0, 1, 1], [], []>} : vector<16x32xbf16>, vector<32x32xbf16>, vector<16x32xf32> -> vector<16x32xf32>
    %c0_34 = arith.constant 0 : index
    %c0_35 = arith.constant 0 : index
    %84 = vector.load %arg10[%c0_34, %c0_35] : memref<1x32xf32, #tpu.memory_space<vmem>>, vector<1x32xf32>
    %85 = vector.broadcast %84 : vector<1x32xf32> to vector<16x32xf32>
    %86 = arith.addf %83, %85 : vector<16x32xf32>
    %87 = arith.addf %1, %86 : vector<16x32xf32>
    %c0_36 = arith.constant 0 : index
    %c0_37 = arith.constant 0 : index
    %88 = vector.load %arg15[%c0_36, %c0_37] : memref<1x32xf32, #tpu.memory_space<vmem>>, vector<1x32xf32>
    %c0_38 = arith.constant 0 : index
    %c0_39 = arith.constant 0 : index
    %89 = vector.load %arg16[%c0_38, %c0_39] : memref<1x32xf32, #tpu.memory_space<vmem>>, vector<1x32xf32>
    %cst_40 = arith.constant dense<0.000000e+00> : vector<16xf32>
    %90 = vector.multi_reduction <add>, %87, %cst_40 [1] : vector<16x32xf32> to vector<16xf32>
    %91 = vector.shape_cast %90 : vector<16xf32> to vector<16x1xf32>
    %cst_41 = arith.constant 3.200000e+01 : f32
    %92 = vector.broadcast %cst_41 : f32 to vector<16x1xf32>
    %93 = arith.divf %91, %92 : vector<16x1xf32>
    %94 = vector.broadcast %93 : vector<16x1xf32> to vector<16x32xf32>
    %95 = arith.subf %87, %94 : vector<16x32xf32>
    %96 = arith.mulf %95, %95 : vector<16x32xf32>
    %cst_42 = arith.constant dense<0.000000e+00> : vector<16xf32>
    %97 = vector.multi_reduction <add>, %96, %cst_42 [1] : vector<16x32xf32> to vector<16xf32>
    %98 = vector.shape_cast %97 : vector<16xf32> to vector<16x1xf32>
    %cst_43 = arith.constant 3.100000e+01 : f32
    %99 = vector.broadcast %cst_43 : f32 to vector<16x1xf32>
    %100 = arith.divf %98, %99 : vector<16x1xf32>
    %101 = math.sqrt %100 : vector<16x1xf32>
    %cst_44 = arith.constant 9.99999997E-7 : f32
    %102 = vector.broadcast %cst_44 : f32 to vector<16x1xf32>
    %103 = arith.addf %101, %102 : vector<16x1xf32>
    %104 = tpu.reciprocal %103 {approx = true} : vector<16x1xf32> -> vector<16x1xf32>
    %105 = vector.broadcast %88 : vector<1x32xf32> to vector<16x32xf32>
    %106 = arith.mulf %105, %95 : vector<16x32xf32>
    %107 = vector.broadcast %104 : vector<16x1xf32> to vector<16x32xf32>
    %108 = arith.mulf %106, %107 : vector<16x32xf32>
    %109 = vector.broadcast %89 : vector<1x32xf32> to vector<16x32xf32>
    %110 = arith.addf %108, %109 : vector<16x32xf32>
    %111 = arith.truncf %110 : vector<16x32xf32> to vector<16x32xbf16>
    %c0_45 = arith.constant 0 : index
    %c0_46 = arith.constant 0 : index
    %112 = vector.load %arg11[%c0_45, %c0_46] : memref<32x64xbf16, #tpu.memory_space<vmem>>, vector<32x64xbf16>
    %cst_47 = arith.constant dense<0.000000e+00> : vector<16x64xf32>
    %113 = tpu.matmul %111, %112, %cst_47 {dimension_numbers = #tpu.dot_dimension_numbers<[1], [0], [0], [1], [0, 0, 1, 1], [], []>} : vector<16x32xbf16>, vector<32x64xbf16>, vector<16x64xf32> -> vector<16x64xf32>
    %c0_48 = arith.constant 0 : index
    %c0_49 = arith.constant 0 : index
    %114 = vector.load %arg12[%c0_48, %c0_49] : memref<1x64xf32, #tpu.memory_space<vmem>>, vector<1x64xf32>
    %115 = vector.broadcast %114 : vector<1x64xf32> to vector<16x64xf32>
    %116 = arith.addf %113, %115 : vector<16x64xf32>
    %cst_50 = arith.constant 0.000000e+00 : f32
    %117 = vector.broadcast %cst_50 : f32 to vector<16x64xf32>
    %118 = arith.maximumf %116, %117 : vector<16x64xf32>
    %119 = arith.truncf %118 : vector<16x64xf32> to vector<16x64xbf16>
    %c0_51 = arith.constant 0 : index
    %c0_52 = arith.constant 0 : index
    %120 = vector.load %arg13[%c0_51, %c0_52] : memref<64x32xbf16, #tpu.memory_space<vmem>>, vector<64x32xbf16>
    %cst_53 = arith.constant dense<0.000000e+00> : vector<16x32xf32>
    %121 = tpu.matmul %119, %120, %cst_53 {dimension_numbers = #tpu.dot_dimension_numbers<[1], [0], [0], [1], [0, 0, 1, 1], [], []>} : vector<16x64xbf16>, vector<64x32xbf16>, vector<16x32xf32> -> vector<16x32xf32>
    %c0_54 = arith.constant 0 : index
    %c0_55 = arith.constant 0 : index
    %122 = vector.load %arg14[%c0_54, %c0_55] : memref<1x32xf32, #tpu.memory_space<vmem>>, vector<1x32xf32>
    %123 = vector.broadcast %122 : vector<1x32xf32> to vector<16x32xf32>
    %124 = arith.addf %121, %123 : vector<16x32xf32>
    %125 = arith.addf %110, %124 : vector<16x32xf32>
    %c0_56 = arith.constant 0 : index
    %c0_57 = arith.constant 0 : index
    %126 = vector.load %arg17[%c0_56, %c0_57] : memref<1x32xf32, #tpu.memory_space<vmem>>, vector<1x32xf32>
    %c0_58 = arith.constant 0 : index
    %c0_59 = arith.constant 0 : index
    %127 = vector.load %arg18[%c0_58, %c0_59] : memref<1x32xf32, #tpu.memory_space<vmem>>, vector<1x32xf32>
    %cst_60 = arith.constant dense<0.000000e+00> : vector<16xf32>
    %128 = vector.multi_reduction <add>, %125, %cst_60 [1] : vector<16x32xf32> to vector<16xf32>
    %129 = vector.shape_cast %128 : vector<16xf32> to vector<16x1xf32>
    %cst_61 = arith.constant 3.200000e+01 : f32
    %130 = vector.broadcast %cst_61 : f32 to vector<16x1xf32>
    %131 = arith.divf %129, %130 : vector<16x1xf32>
    %132 = vector.broadcast %131 : vector<16x1xf32> to vector<16x32xf32>
    %133 = arith.subf %125, %132 : vector<16x32xf32>
    %134 = arith.mulf %133, %133 : vector<16x32xf32>
    %cst_62 = arith.constant dense<0.000000e+00> : vector<16xf32>
    %135 = vector.multi_reduction <add>, %134, %cst_62 [1] : vector<16x32xf32> to vector<16xf32>
    %136 = vector.shape_cast %135 : vector<16xf32> to vector<16x1xf32>
    %cst_63 = arith.constant 3.100000e+01 : f32
    %137 = vector.broadcast %cst_63 : f32 to vector<16x1xf32>
    %138 = arith.divf %136, %137 : vector<16x1xf32>
    %139 = math.sqrt %138 : vector<16x1xf32>
    %cst_64 = arith.constant 9.99999997E-7 : f32
    %140 = vector.broadcast %cst_64 : f32 to vector<16x1xf32>
    %141 = arith.addf %139, %140 : vector<16x1xf32>
    %142 = tpu.reciprocal %141 {approx = true} : vector<16x1xf32> -> vector<16x1xf32>
    %143 = vector.broadcast %126 : vector<1x32xf32> to vector<16x32xf32>
    %144 = arith.mulf %143, %133 : vector<16x32xf32>
    %145 = vector.broadcast %142 : vector<16x1xf32> to vector<16x32xf32>
    %146 = arith.mulf %144, %145 : vector<16x32xf32>
    %147 = vector.broadcast %127 : vector<1x32xf32> to vector<16x32xf32>
    %148 = arith.addf %146, %147 : vector<16x32xf32>
    %149 = vector.shape_cast %148 : vector<16x32xf32> to vector<2x8x32xf32>
    %c0_65 = arith.constant 0 : index
    %c0_66 = arith.constant 0 : index
    %c0_67 = arith.constant 0 : index
    %150 = vector.load %arg19[%c0_65, %c0_66, %c0_67] : memref<2x8x32xf32, #tpu.memory_space<vmem>>, vector<2x8x32xf32>
    tpu.vector_store %arg19[%c0_65, %c0_66, %c0_67], %149 {strides = array<i32>} : memref<2x8x32xf32, #tpu.memory_space<vmem>>, vector<2x8x32xf32>,
    return
  }
  func.func @transform_0(%arg0: i32) -> (i32, i32, i32) {
    %c0_i32 = arith.constant 0 : i32
    %c0_i32_0 = arith.constant 0 : i32
    %c0_i32_1 = arith.constant 0 : i32
    return %arg0, %c0_i32, %c0_i32_0 : i32, i32, i32
  }
  func.func @transform_1(%arg0: i32) -> (i32, i32, i32) {
    %c0_i32 = arith.constant 0 : i32
    %c0_i32_0 = arith.constant 0 : i32
    %c0_i32_1 = arith.constant 0 : i32
    return %arg0, %c0_i32, %c0_i32_0 : i32, i32, i32
  }
  func.func @transform_2(%arg0: i32) -> (i32, i32) {
    %c0_i32 = arith.constant 0 : i32
    %c0_i32_0 = arith.constant 0 : i32
    %c0_i32_1 = arith.constant 0 : i32
    return %c0_i32, %c0_i32_0 : i32, i32
  }
  func.func @transform_3(%arg0: i32) -> (i32, i32) {
    %c0_i32 = arith.constant 0 : i32
    %c0_i32_0 = arith.constant 0 : i32
    %c0_i32_1 = arith.constant 0 : i32
    return %c0_i32, %c0_i32_0 : i32, i32
  }
  func.func @transform_4(%arg0: i32) -> (i32, i32) {
    %c0_i32 = arith.constant 0 : i32
    %c0_i32_0 = arith.constant 0 : i32
    %c0_i32_1 = arith.constant 0 : i32
    return %c0_i32, %c0_i32_0 : i32, i32
  }
  func.func @transform_5(%arg0: i32) -> (i32, i32) {
    %c0_i32 = arith.constant 0 : i32
    %c0_i32_0 = arith.constant 0 : i32
    %c0_i32_1 = arith.constant 0 : i32
    return %c0_i32, %c0_i32_0 : i32, i32
  }
  func.func @transform_6(%arg0: i32) -> (i32, i32) {
    %c0_i32 = arith.constant 0 : i32
    %c0_i32_0 = arith.constant 0 : i32
    %c0_i32_1 = arith.constant 0 : i32
    return %c0_i32, %c0_i32_0 : i32, i32
  }
  func.func @transform_7(%arg0: i32) -> (i32, i32) {
    %c0_i32 = arith.constant 0 : i32
    %c0_i32_0 = arith.constant 0 : i32
    %c0_i32_1 = arith.constant 0 : i32
    return %c0_i32, %c0_i32_0 : i32, i32
  }
  func.func @transform_8(%arg0: i32) -> (i32, i32) {
    %c0_i32 = arith.constant 0 : i32
    %c0_i32_0 = arith.constant 0 : i32
    %c0_i32_1 = arith.constant 0 : i32
    return %c0_i32, %c0_i32_0 : i32, i32
  }
  func.func @transform_9(%arg0: i32) -> (i32, i32) {
    %c0_i32 = arith.constant 0 : i32
    %c0_i32_0 = arith.constant 0 : i32
    %c0_i32_1 = arith.constant 0 : i32
    return %c0_i32, %c0_i32_0 : i32, i32
  }
  func.func @transform_10(%arg0: i32) -> (i32, i32) {
    %c0_i32 = arith.constant 0 : i32
    %c0_i32_0 = arith.constant 0 : i32
    %c0_i32_1 = arith.constant 0 : i32
    return %c0_i32, %c0_i32_0 : i32, i32
  }
  func.func @transform_11(%arg0: i32) -> (i32, i32) {
    %c0_i32 = arith.constant 0 : i32
    %c0_i32_0 = arith.constant 0 : i32
    %c0_i32_1 = arith.constant 0 : i32
    return %c0_i32, %c0_i32_0 : i32, i32
  }
  func.func @transform_12(%arg0: i32) -> (i32, i32) {
    %c0_i32 = arith.constant 0 : i32
    %c0_i32_0 = arith.constant 0 : i32
    %c0_i32_1 = arith.constant 0 : i32
    return %c0_i32, %c0_i32_0 : i32, i32
  }
  func.func @transform_13(%arg0: i32) -> (i32, i32) {
    %c0_i32 = arith.constant 0 : i32
    %c0_i32_0 = arith.constant 0 : i32
    %c0_i32_1 = arith.constant 0 : i32
    return %c0_i32, %c0_i32_0 : i32, i32
  }
  func.func @transform_14(%arg0: i32) -> (i32, i32) {
    %c0_i32 = arith.constant 0 : i32
    %c0_i32_0 = arith.constant 0 : i32
    %c0_i32_1 = arith.constant 0 : i32
    return %c0_i32, %c0_i32_0 : i32, i32
  }
  func.func @transform_15(%arg0: i32) -> (i32, i32) {
    %c0_i32 = arith.constant 0 : i32
    %c0_i32_0 = arith.constant 0 : i32
    %c0_i32_1 = arith.constant 0 : i32
    return %c0_i32, %c0_i32_0 : i32, i32
  }
  func.func @transform_16(%arg0: i32) -> (i32, i32) {
    %c0_i32 = arith.constant 0 : i32
    %c0_i32_0 = arith.constant 0 : i32
    %c0_i32_1 = arith.constant 0 : i32
    return %c0_i32, %c0_i32_0 : i32, i32
  }
  func.func @transform_17(%arg0: i32) -> (i32, i32) {
    %c0_i32 = arith.constant 0 : i32
    %c0_i32_0 = arith.constant 0 : i32
    %c0_i32_1 = arith.constant 0 : i32
    return %c0_i32, %c0_i32_0 : i32, i32
  }
  func.func @transform_18(%arg0: i32) -> (i32, i32, i32) {
    %c0_i32 = arith.constant 0 : i32
    %c0_i32_0 = arith.constant 0 : i32
    %c0_i32_1 = arith.constant 0 : i32
    return %arg0, %c0_i32, %c0_i32_0 : i32, i32, i32
  }
}

</mosaic_0001>

<llo_original>
// kernel: tpu_custom_call.1
$region0: #{tpu_custom_call.1}
  #allocation0 [shape = 'u32[]', space=smem, size = 0x4, offset = 0x4, fixed_abs, tag = 'smem constant byte address 0x4 - core index']
  #allocation1 [shape = 'u32[144,128]{1,0:T(1,128)}', space=vmem, size = 0x12000, scoped, tag = 'internal scratch']
  %s0 = inlined_call_operand.vmem [shape: f32[2,8,32], index: 0, kind: input, shape index: {}]
  %s1 = inlined_call_operand.hbm [shape: f32[2,1,8], index: 1, kind: input, shape index: {}]
  %s2 = inlined_call_operand.vmem [shape: bf16[32,32], index: 2, kind: input, shape index: {}]
  %s3 = inlined_call_operand.hbm [shape: f32[1,32], index: 3, kind: input, shape index: {}]
  %s4 = inlined_call_operand.vmem [shape: bf16[32,32], index: 4, kind: input, shape index: {}]
  %s5 = inlined_call_operand.hbm [shape: f32[1,32], index: 5, kind: input, shape index: {}]
  %s6 = inlined_call_operand.hbm [shape: bf16[32,32], index: 6, kind: input, shape index: {}]
  %s7 = inlined_call_operand.hbm [shape: f32[1,32], index: 7, kind: input, shape index: {}]
  %s8 = inlined_call_operand.hbm [shape: bf16[32,32], index: 8, kind: input, shape index: {}]
  %s9 = inlined_call_operand.hbm [shape: f32[1,32], index: 9, kind: input, shape index: {}]
  %s10 = inlined_call_operand.vmem [shape: bf16[32,64], index: 10, kind: input, shape index: {}]
  %s11 = inlined_call_operand.vmem [shape: f32[1,64], index: 11, kind: input, shape index: {}]
  %s12 = inlined_call_operand.vmem [shape: bf16[64,32], index: 12, kind: input, shape index: {}]
  %s13 = inlined_call_operand.vmem [shape: f32[1,32], index: 13, kind: input, shape index: {}]
  %s14 = inlined_call_operand.vmem [shape: f32[1,32], index: 14, kind: input, shape index: {}]
  %s15 = inlined_call_operand.vmem [shape: f32[1,32], index: 15, kind: input, shape index: {}]
  %s16 = inlined_call_operand.vmem [shape: f32[1,32], index: 16, kind: input, shape index: {}]
  %s17 = inlined_call_operand.vmem [shape: f32[1,32], index: 17, kind: input, shape index: {}]
  %s18 = inlined_call_operand.hbm [shape: f32[2,8,32], index: 18, kind: output, shape index: {}]
  %s19 = sld [smem:[#allocation0]]
  $region110: #{tpu_custom_call.1} parent=0
    _
  %s21 = ssub.s32 1, %s19
  %s22 = scalar_select 0, %s21, %s19
  $region1: #{tpu_custom_call.1} parent=0
    #allocation2 [shape = 'u8[1024]{0}', space=vmem, size = 0x400, scoped, tag = 'input window, operand 1, single buffered']
    #allocation3 [shape = 's32[1]{0}', space=sflag, size = 0x4, scoped, tag = 'scoped memory for tpu_custom_call.1']
    #allocation4 [shape = 's32[1]{0}', space=sflag, size = 0x4, scoped, tag = 'scoped memory for tpu_custom_call.1']
    #allocation5 [shape = 'u8[512]{0}', space=vmem, size = 0x400, scoped, tag = 'input window, operand 3, single buffered']
    #allocation6 [shape = 's32[1]{0}', space=sflag, size = 0x4, scoped, tag = 'scoped memory for tpu_custom_call.1']
    #allocation7 [shape = 'u8[512]{0}', space=vmem, size = 0x400, scoped, tag = 'input window, operand 5, single buffered']
    #allocation8 [shape = 'u8[8192]{0}', space=vmem, size = 0x2000, scoped, tag = 'input window, operand 6, single buffered']
    #allocation9 [shape = 's32[1]{0}', space=sflag, size = 0x4, scoped, tag = 'scoped memory for tpu_custom_call.1']
    #allocation10 [shape = 'u8[512]{0}', space=vmem, size = 0x400, scoped, tag = 'input window, operand 7, single buffered']
    #allocation11 [shape = 'u8[8192]{0}', space=vmem, size = 0x2000, scoped, tag = 'input window, operand 8, single buffered']
    #allocation12 [shape = 's32[1]{0}', space=sflag, size = 0x4, scoped, tag = 'scoped memory for tpu_custom_call.1']
    #allocation13 [shape = 'u8[512]{0}', space=vmem, size = 0x400, scoped, tag = 'input window, operand 9, single buffered']
    #allocation14 [shape = 'u8[8192]{0}', space=vmem, size = 0x2000, scoped, tag = 'output window, operand 0, single buffered']
    %23 = vsyncpa [#allocation3], 0
    %24 = vsyncpa [#allocation6], 0
    %25 = vsyncpa [#allocation9], 0
    %26 = vsyncpa [#allocation12], 0
    %27 = vsyncpa [#allocation4], 0
    // Predicated region
    $region2: #{tpu_custom_call.1} parent=1 // pred_check
      _
    $region3: #{tpu_custom_call.1} parent=1 // pred_check_branch
      %29 = sbr.rel (0) target = $region5
    $region4: #{tpu_custom_call.1} parent=1 // pred_region
      _
    $region5: #{tpu_custom_call.1} parent=1 // pred_fallthru
      _
    // Predicated region
    $region6: #{tpu_custom_call.1} parent=1 // pred_check
      _
    $region7: #{tpu_custom_call.1} parent=1 // pred_check_branch
      %31 = sbr.rel (0) target = $region9
    $region8: #{tpu_custom_call.1} parent=1 // pred_region
      %s33 = ssub.s32 32, 32
      %34 = vsyncadd [#allocation3], %s33
      %s35 = sshll.u32 [#allocation2], 4
      %s36 = int_to_ptr.vmem [resolvable:$true] %s35
      %41 = dma.hbm_to_vmem [thread:$0]  %s1, 32, %s36, [#allocation3], 16, 16, 1
    $region9: #{tpu_custom_call.1} parent=1 // pred_fallthru
      _
    // Predicated region
    $region10: #{tpu_custom_call.1} parent=1 // pred_check
      _
    $region11: #{tpu_custom_call.1} parent=1 // pred_check_branch
      %43 = sbr.rel (0) target = $region13
    $region12: #{tpu_custom_call.1} parent=1 // pred_region
      _
    $region13: #{tpu_custom_call.1} parent=1 // pred_fallthru
      _
    // Predicated region
    $region14: #{tpu_custom_call.1} parent=1 // pred_check
      _
    $region15: #{tpu_custom_call.1} parent=1 // pred_check_branch
      %45 = sbr.rel (0) target = $region17
    $region16: #{tpu_custom_call.1} parent=1 // pred_region
      %s47 = ssub.s32 16, 16
      %48 = vsyncadd [#allocation6], %s47
      %s50 = sshll.u32 [#allocation5], 4
      %s51 = int_to_ptr.vmem [resolvable:$true] %s50
      %53 = dma.hbm_to_vmem [thread:$0]  %s3, 16, %s51, [#allocation6]
    $region17: #{tpu_custom_call.1} parent=1 // pred_fallthru
      _
    // Predicated region
    $region18: #{tpu_custom_call.1} parent=1 // pred_check
      _
    $region19: #{tpu_custom_call.1} parent=1 // pred_check_branch
      %55 = sbr.rel (0) target = $region21
    $region20: #{tpu_custom_call.1} parent=1 // pred_region
      _
    $region21: #{tpu_custom_call.1} parent=1 // pred_fallthru
      _
    // Predicated region
    $region22: #{tpu_custom_call.1} parent=1 // pred_check
      _
    $region23: #{tpu_custom_call.1} parent=1 // pred_check_branch
      %57 = sbr.rel (0) target = $region25
    $region24: #{tpu_custom_call.1} parent=1 // pred_region
      %s59 = ssub.s32 16, 16
      %60 = vsyncadd [#allocation6], %s59
      %s62 = sshll.u32 [#allocation7], 4
      %s63 = int_to_ptr.vmem [resolvable:$true] %s62
      %65 = dma.hbm_to_vmem [thread:$0]  %s5, 16, %s63, [#allocation6]
    $region25: #{tpu_custom_call.1} parent=1 // pred_fallthru
      _
    // Predicated region
    $region26: #{tpu_custom_call.1} parent=1 // pred_check
      _
    $region27: #{tpu_custom_call.1} parent=1 // pred_check_branch
      %67 = sbr.rel (0) target = $region29
    $region28: #{tpu_custom_call.1} parent=1 // pred_region
      %s69 = ssub.s32 256, 256
      %70 = vsyncadd [#allocation9], %s69
      %s71 = sshll.u32 [#allocation8], 4
      %s72 = int_to_ptr.vmem [resolvable:$true] %s71
      %77 = dma.hbm_to_vmem [thread:$0]  %s6, 256, %s72, [#allocation9], 64, 64, 4
    $region29: #{tpu_custom_call.1} parent=1 // pred_fallthru
      _
    // Predicated region
    $region30: #{tpu_custom_call.1} parent=1 // pred_check
      _
    $region31: #{tpu_custom_call.1} parent=1 // pred_check_branch
      %79 = sbr.rel (0) target = $region33
    $region32: #{tpu_custom_call.1} parent=1 // pred_region
      %s81 = ssub.s32 16, 16
      %82 = vsyncadd [#allocation9], %s81
      %s84 = sshll.u32 [#allocation10], 4
      %s85 = int_to_ptr.vmem [resolvable:$true] %s84
      %87 = dma.hbm_to_vmem [thread:$0]  %s7, 16, %s85, [#allocation9]
    $region33: #{tpu_custom_call.1} parent=1 // pred_fallthru
      _
    // Predicated region
    $region34: #{tpu_custom_call.1} parent=1 // pred_check
      _
    $region35: #{tpu_custom_call.1} parent=1 // pred_check_branch
      %89 = sbr.rel (0) target = $region37
    $region36: #{tpu_custom_call.1} parent=1 // pred_region
      %s91 = ssub.s32 256, 256
      %92 = vsyncadd [#allocation12], %s91
      %s93 = sshll.u32 [#allocation11], 4
      %s94 = int_to_ptr.vmem [resolvable:$true] %s93
      %99 = dma.hbm_to_vmem [thread:$0]  %s8, 256, %s94, [#allocation12], 64, 64, 4
    $region37: #{tpu_custom_call.1} parent=1 // pred_fallthru
      _
    // Predicated region
    $region38: #{tpu_custom_call.1} parent=1 // pred_check
      _
    $region39: #{tpu_custom_call.1} parent=1 // pred_check_branch
      %101 = sbr.rel (0) target = $region41
    $region40: #{tpu_custom_call.1} parent=1 // pred_region
      %s103 = ssub.s32 16, 16
      %104 = vsyncadd [#allocation12], %s103
      %s106 = sshll.u32 [#allocation13], 4
      %s107 = int_to_ptr.vmem [resolvable:$true] %s106
      %109 = dma.hbm_to_vmem [thread:$0]  %s9, 16, %s107, [#allocation12]
    $region41: #{tpu_custom_call.1} parent=1 // pred_fallthru
      _
    // Predicated region
    $region42: #{tpu_custom_call.1} parent=1 // pred_check
      _
    $region43: #{tpu_custom_call.1} parent=1 // pred_check_branch
      %111 = sbr.rel (0) target = $region45
    $region44: #{tpu_custom_call.1} parent=1 // pred_region
      _
    $region45: #{tpu_custom_call.1} parent=1 // pred_fallthru
      _
    // Predicated region
    $region46: #{tpu_custom_call.1} parent=1 // pred_check
      _
    $region47: #{tpu_custom_call.1} parent=1 // pred_check_branch
      %113 = sbr.rel (0) target = $region49
    $region48: #{tpu_custom_call.1} parent=1 // pred_region
      _
    $region49: #{tpu_custom_call.1} parent=1 // pred_fallthru
      _
    // Predicated region
    $region50: #{tpu_custom_call.1} parent=1 // pred_check
      _
    $region51: #{tpu_custom_call.1} parent=1 // pred_check_branch
      %115 = sbr.rel (0) target = $region53
    $region52: #{tpu_custom_call.1} parent=1 // pred_region
      _
    $region53: #{tpu_custom_call.1} parent=1 // pred_fallthru
      _
    // Predicated region
    $region54: #{tpu_custom_call.1} parent=1 // pred_check
      _
    $region55: #{tpu_custom_call.1} parent=1 // pred_check_branch
      %117 = sbr.rel (0) target = $region57
    $region56: #{tpu_custom_call.1} parent=1 // pred_region
      _
    $region57: #{tpu_custom_call.1} parent=1 // pred_fallthru
      _
    // Predicated region
    $region58: #{tpu_custom_call.1} parent=1 // pred_check
      _
    $region59: #{tpu_custom_call.1} parent=1 // pred_check_branch
      %119 = sbr.rel (0) target = $region61
    $region60: #{tpu_custom_call.1} parent=1 // pred_region
      _
    $region61: #{tpu_custom_call.1} parent=1 // pred_fallthru
      _
    // Predicated region
    $region62: #{tpu_custom_call.1} parent=1 // pred_check
      _
    $region63: #{tpu_custom_call.1} parent=1 // pred_check_branch
      %121 = sbr.rel (0) target = $region65
    $region64: #{tpu_custom_call.1} parent=1 // pred_region
      _
    $region65: #{tpu_custom_call.1} parent=1 // pred_fallthru
      _
    // Predicated region
    $region66: #{tpu_custom_call.1} parent=1 // pred_check
      _
    $region67: #{tpu_custom_call.1} parent=1 // pred_check_branch
      %123 = sbr.rel (0) target = $region69
    $region68: #{tpu_custom_call.1} parent=1 // pred_region
      _
    $region69: #{tpu_custom_call.1} parent=1 // pred_fallthru
      _
    // Predicated region
    $region70: #{tpu_custom_call.1} parent=1 // pred_check
      _
    $region71: #{tpu_custom_call.1} parent=1 // pred_check_branch
      %125 = sbr.rel (0) target = $region73
    $region72: #{tpu_custom_call.1} parent=1 // pred_region
      _
    $region73: #{tpu_custom_call.1} parent=1 // pred_fallthru
      _
    // Predicated region
    $region74: #{tpu_custom_call.1} parent=1 // pred_check
      _
    $region75: #{tpu_custom_call.1} parent=1 // pred_check_branch
      %127 = sbr.rel (0) target = $region77
    $region76: #{tpu_custom_call.1} parent=1 // pred_region
      %128 = dma.done [#allocation3], 32
    $region77: #{tpu_custom_call.1} parent=1 // pred_fallthru
      _
    // Predicated region
    $region78: #{tpu_custom_call.1} parent=1 // pred_check
      _
    $region79: #{tpu_custom_call.1} parent=1 // pred_check_branch
      %130 = sbr.rel (0) target = $region81
    $region80: #{tpu_custom_call.1} parent=1 // pred_region
      %131 = dma.done [#allocation6], 16
    $region81: #{tpu_custom_call.1} parent=1 // pred_fallthru
      _
    // Predicated region
    $region82: #{tpu_custom_call.1} parent=1 // pred_check
      _
    $region83: #{tpu_custom_call.1} parent=1 // pred_check_branch
      %133 = sbr.rel (0) target = $region85
    $region84: #{tpu_custom_call.1} parent=1 // pred_region
      %134 = dma.done [#allocation6], 16
    $region85: #{tpu_custom_call.1} parent=1 // pred_fallthru
      _
    // Predicated region
    $region86: #{tpu_custom_call.1} parent=1 // pred_check
      _
    $region87: #{tpu_custom_call.1} parent=1 // pred_check_branch
      %136 = sbr.rel (0) target = $region89
    $region88: #{tpu_custom_call.1} parent=1 // pred_region
      %137 = dma.done [#allocation9], 256
    $region89: #{tpu_custom_call.1} parent=1 // pred_fallthru
      _
    // Predicated region
    $region90: #{tpu_custom_call.1} parent=1 // pred_check
      _
    $region91: #{tpu_custom_call.1} parent=1 // pred_check_branch
      %139 = sbr.rel (0) target = $region93
    $region92: #{tpu_custom_call.1} parent=1 // pred_region
      %140 = dma.done [#allocation9], 16
    $region93: #{tpu_custom_call.1} parent=1 // pred_fallthru
      _
    // Predicated region
    $region94: #{tpu_custom_call.1} parent=1 // pred_check
      _
    $region95: #{tpu_custom_call.1} parent=1 // pred_check_branch
      %142 = sbr.rel (0) target = $region97
    $region96: #{tpu_custom_call.1} parent=1 // pred_region
      %143 = dma.done [#allocation12], 256
    $region97: #{tpu_custom_call.1} parent=1 // pred_fallthru
      _
    // Predicated region
    $region98: #{tpu_custom_call.1} parent=1 // pred_check
      _
    $region99: #{tpu_custom_call.1} parent=1 // pred_check_branch
      %145 = sbr.rel (0) target = $region101
    $region100: #{tpu_custom_call.1} parent=1 // pred_region
      %146 = dma.done [#allocation12], 16
    $region101: #{tpu_custom_call.1} parent=1 // pred_fallthru
      _
    %v148 = vld [vmem:[%s0] sm:$0xff]
    %v149 = vld [vmem:[%s0 + $0x8] sm:$0xff]
    %v150 = vpack.c.bf16 %v149, %v148
    %v151 = vld [vmem:[%s2] sm:$0xf]
    %v152 = vld [vmem:[%s2 + $0x4] sm:$0xf]
    %v153 = vld [vmem:[%s2 + $0x8] sm:$0xf]
    %v154 = vld [vmem:[%s2 + $0xc] sm:$0xf]
    %v155 = vld [vmem:[#allocation5] sm:$0x1]
    %v157 = vlaneseq
    %v158 = vshrl.u32 %v157, 7
    %v159 = vsub.s32 0, %v158
    %v160 = vrot.slane %v155, %v159
    %v166 = vunpack.c.l.b16 %v151
    %v167 = vunpack.c.l.b16 %v152
    %v168 = vunpack.c.l.b16 %v153
    %v169 = vunpack.c.l.b16 %v154
    %v170 = vpack.c.b16 %v167, %v166
    %v171 = vpack.c.b16 %v169, %v168
    %vm174 = vcmask 261120
    %v176 = vsel %vm174, %v150, 0
    %178 = vmatprep.subr.bf16.mxu0 0
    %179 = vmatpush1.bf16.msra.mxu0 0
    %180 = vmatprep.subr.bf16.mxu0 0
    %181 = vmatpush1.bf16.msra.mxu0 0
    %182 = vmatprep.subr.bf16.mxu0 0
    %183 = vmatpush1.bf16.msra.mxu0 0
    %184 = vmatprep.subr.bf16.mxu0 0
    %185 = vmatpush1.bf16.msra.mxu0 0
    %186 = vmatprep.subr.bf16.mxu0 0
    %187 = vmatpush1.bf16.msra.mxu0 0
    %188 = vmatprep.subr.bf16.mxu0 0
    %189 = vmatpush1.bf16.msra.mxu0 0
    %190 = vmatprep.subr.bf16.mxu0 0
    %191 = vmatpush1.bf16.msra.mxu0 %v171
    %192 = vmatprep.subr.bf16.mxu0 0
    %193 = vmatpush1.bf16.msra.mxu0 %v170
    %194 = vmatprep.subr.bf16.mxu0 0
    %195 = vmatpush2.bf16.msra.mxu0 0
    %196 = vmatprep.subr.bf16.mxu0 0
    %197 = vmatpush2.bf16.msra.mxu0 0
    %198 = vmatprep.subr.bf16.mxu0 0
    %199 = vmatpush2.bf16.msra.mxu0 0
    %200 = vmatprep.subr.bf16.mxu0 0
    %201 = vmatpush2.bf16.msra.mxu0 0
    %202 = vmatprep.subr.bf16.mxu0 0
    %203 = vmatpush2.bf16.msra.mxu0 0
    %204 = vmatprep.subr.bf16.mxu0 0
    %205 = vmatpush2.bf16.msra.mxu0 0
    %206 = vmatprep.subr.bf16.mxu0 0
    %207 = vmatpush2.bf16.msra.mxu0 0
    %208 = vmatprep.subr.bf16.mxu0 0
    %209 = vmatpush2.bf16.msra.mxu0 0
    %210 = vmatprep.mubr.bf16.mxu0 0
    %211 = vmatmul.mubr.bf16.gmra.mxu0 %v176
    %v212 = vpop.f32.mrf.mxu0
    %v213 = vadd.f32 %v160, %v212
    %v214 = vpop.f32.mrf.mxu0
    %v215 = vpop.f32.mrf.mxu0
    %v216 = vadd.f32 %v160, %v215
    %v217 = vpop.f32.mrf.mxu0
    %218 = vdwg.mxu0
    %v219 = vld [vmem:[%s4] sm:$0xf]
    %v220 = vld [vmem:[%s4 + $0x4] sm:$0xf]
    %v221 = vld [vmem:[%s4 + $0x8] sm:$0xf]
    %v222 = vld [vmem:[%s4 + $0xc] sm:$0xf]
    %v223 = vld [vmem:[#allocation7] sm:$0x1]
    %v225 = vlaneseq
    %v226 = vshrl.u32 %v225, 7
    %v227 = vsub.s32 0, %v226
    %v228 = vrot.slane %v223, %v227
    %v234 = vunpack.c.l.b16 %v219
    %v235 = vunpack.c.l.b16 %v220
    %v236 = vunpack.c.l.b16 %v221
    %v237 = vunpack.c.l.b16 %v222
    %v238 = vpack.c.b16 %v235, %v234
    %v239 = vpack.c.b16 %v237, %v236
    %242 = vmatprep.subr.bf16.mxu0 0
    %243 = vmatpush1.bf16.msra.mxu0 0
    %244 = vmatprep.subr.bf16.mxu0 0
    %245 = vmatpush1.bf16.msra.mxu0 0
    %246 = vmatprep.subr.bf16.mxu0 0
    %247 = vmatpush1.bf16.msra.mxu0 0
    %248 = vmatprep.subr.bf16.mxu0 0
    %249 = vmatpush1.bf16.msra.mxu0 0
    %250 = vmatprep.subr.bf16.mxu0 0
    %251 = vmatpush1.bf16.msra.mxu0 0
    %252 = vmatprep.subr.bf16.mxu0 0
    %253 = vmatpush1.bf16.msra.mxu0 0
    %254 = vmatprep.subr.bf16.mxu0 0
    %255 = vmatpush1.bf16.msra.mxu0 %v239
    %256 = vmatprep.subr.bf16.mxu0 0
    %257 = vmatpush1.bf16.msra.mxu0 %v238
    %258 = vmatprep.subr.bf16.mxu0 0
    %259 = vmatpush2.bf16.msra.mxu0 0
    %260 = vmatprep.subr.bf16.mxu0 0
    %261 = vmatpush2.bf16.msra.mxu0 0
    %262 = vmatprep.subr.bf16.mxu0 0
    %263 = vmatpush2.bf16.msra.mxu0 0
    %264 = vmatprep.subr.bf16.mxu0 0
    %265 = vmatpush2.bf16.msra.mxu0 0
    %266 = vmatprep.subr.bf16.mxu0 0
    %267 = vmatpush2.bf16.msra.mxu0 0
    %268 = vmatprep.subr.bf16.mxu0 0
    %269 = vmatpush2.bf16.msra.mxu0 0
    %270 = vmatprep.subr.bf16.mxu0 0
    %271 = vmatpush2.bf16.msra.mxu0 0
    %272 = vmatprep.subr.bf16.mxu0 0
    %273 = vmatpush2.bf16.msra.mxu0 0
    %274 = vmatprep.mubr.bf16.mxu0 0
    %275 = vmatmul.mubr.bf16.gmra.mxu0 %v176
    %v276 = vpop.f32.mrf.mxu0
    %v277 = vadd.f32 %v228, %v276
    %v278 = vpop.f32.mrf.mxu0
    %v279 = vpop.f32.mrf.mxu0
    %v280 = vadd.f32 %v228, %v279
    %v281 = vpop.f32.mrf.mxu0
    %282 = vdwg.mxu0
    %v283 = vld [vmem:[#allocation8] sm:$0xf]
    %v284 = vld [vmem:[#allocation8 + $0x4] sm:$0xf]
    %v285 = vld [vmem:[#allocation8 + $0x8] sm:$0xf]
    %v286 = vld [vmem:[#allocation8 + $0xc] sm:$0xf]
    %v287 = vld [vmem:[#allocation10] sm:$0x1]
    %v289 = vlaneseq
    %v290 = vshrl.u32 %v289, 7
    %v291 = vsub.s32 0, %v290
    %v292 = vrot.slane %v287, %v291
    %v298 = vunpack.c.l.b16 %v283
    %v299 = vunpack.c.l.b16 %v284
    %v300 = vunpack.c.l.b16 %v285
    %v301 = vunpack.c.l.b16 %v286
    %v302 = vpack.c.b16 %v299, %v298
    %v303 = vpack.c.b16 %v301, %v300
    %306 = vmatprep.subr.bf16.mxu0 0
    %307 = vmatpush1.bf16.msra.mxu0 0
    %308 = vmatprep.subr.bf16.mxu0 0
    %309 = vmatpush1.bf16.msra.mxu0 0
    %310 = vmatprep.subr.bf16.mxu0 0
    %311 = vmatpush1.bf16.msra.mxu0 0
    %312 = vmatprep.subr.bf16.mxu0 0
    %313 = vmatpush1.bf16.msra.mxu0 0
    %314 = vmatprep.subr.bf16.mxu0 0
    %315 = vmatpush1.bf16.msra.mxu0 0
    %316 = vmatprep.subr.bf16.mxu0 0
    %317 = vmatpush1.bf16.msra.mxu0 0
    %318 = vmatprep.subr.bf16.mxu0 0
    %319 = vmatpush1.bf16.msra.mxu0 %v303
    %320 = vmatprep.subr.bf16.mxu0 0
    %321 = vmatpush1.bf16.msra.mxu0 %v302
    %322 = vmatprep.subr.bf16.mxu0 0
    %323 = vmatpush2.bf16.msra.mxu0 0
    %324 = vmatprep.subr.bf16.mxu0 0
    %325 = vmatpush2.bf16.msra.mxu0 0
    %326 = vmatprep.subr.bf16.mxu0 0
    %327 = vmatpush2.bf16.msra.mxu0 0
    %328 = vmatprep.subr.bf16.mxu0 0
    %329 = vmatpush2.bf16.msra.mxu0 0
    %330 = vmatprep.subr.bf16.mxu0 0
    %331 = vmatpush2.bf16.msra.mxu0 0
    %332 = vmatprep.subr.bf16.mxu0 0
    %333 = vmatpush2.bf16.msra.mxu0 0
    %334 = vmatprep.subr.bf16.mxu0 0
    %335 = vmatpush2.bf16.msra.mxu0 0
    %336 = vmatprep.subr.bf16.mxu0 0
    %337 = vmatpush2.bf16.msra.mxu0 0
    %338 = vmatprep.mubr.bf16.mxu0 0
    %339 = vmatmul.mubr.bf16.gmra.mxu0 %v176
    %v340 = vpop.f32.mrf.mxu0
    %v341 = vadd.f32 %v292, %v340
    %v342 = vpop.f32.mrf.mxu0
    %v343 = vpop.f32.mrf.mxu0
    %v344 = vadd.f32 %v292, %v343
    %v345 = vpop.f32.mrf.mxu0
    %346 = vdwg.mxu0
    %348 = vrot.lane.b32.xlu0 %v213, 120
    %v349 = vpop.permute.xlu0 %348
    %351 = vrot.lane.b32.xlu0 %v213, 112
    %v352 = vpop.permute.xlu0 %351
    %354 = vrot.lane.b32.xlu0 %v213, 104
    %v355 = vpop.permute.xlu0 %354
    %v357 = vcombine.low %v213, %v352
    %v358 = vcombine.high %v213, %v352
    %v360 = vunpack.c.l.s4 1983009808
    %v361 = vunpack.c.0.s8 %v360
    %v362 = vlaneseq
    %v363 = vshrl.u32 %v362, 7
    %v364 = vsub.s32 %v361, %v363
    %v365 = vrot.slane %v357, %v364
    %v367 = vunpack.c.l.s4 1983009808
    %v368 = vunpack.c.0.s8 %v367
    %v369 = vlaneseq
    %v370 = vshrl.u32 %v369, 7
    %v371 = vsub.s32 %v368, %v370
    %v372 = vrot.slane %v358, %v371
    %v373 = vcombine.low %v349, %v355
    %v374 = vcombine.high %v349, %v355
    %v376 = vunpack.c.l.s4 1983009808
    %v377 = vunpack.c.0.s8 %v376
    %v378 = vlaneseq
    %v379 = vshrl.u32 %v378, 7
    %v380 = vsub.s32 %v377, %v379
    %v381 = vrot.slane %v373, %v380
    %v383 = vunpack.c.l.s4 1983009808
    %v384 = vunpack.c.0.s8 %v383
    %v385 = vlaneseq
    %v386 = vshrl.u32 %v385, 7
    %v387 = vsub.s32 %v384, %v386
    %v388 = vrot.slane %v374, %v387
    %v389 = vcombine.low %v365, %v381
    %v390 = vcombine.high %v365, %v381
    %v392 = vunpack.c.l.s4 1934713408
    %v393 = vunpack.c.0.s8 %v392
    %v394 = vlaneseq
    %v395 = vshrl.u32 %v394, 7
    %v396 = vsub.s32 %v393, %v395
    %v397 = vrot.slane %v389, %v396
    %v399 = vunpack.c.l.s4 1934713408
    %v400 = vunpack.c.0.s8 %v399
    %v401 = vlaneseq
    %v402 = vshrl.u32 %v401, 7
    %v403 = vsub.s32 %v400, %v402
    %v404 = vrot.slane %v390, %v403
    %v405 = vcombine.low %v372, %v388
    %v406 = vcombine.high %v372, %v388
    %v408 = vunpack.c.l.s4 1934713408
    %v409 = vunpack.c.0.s8 %v408
    %v410 = vlaneseq
    %v411 = vshrl.u32 %v410, 7
    %v412 = vsub.s32 %v409, %v411
    %v413 = vrot.slane %v405, %v412
    %v415 = vunpack.c.l.s4 1934713408
    %v416 = vunpack.c.0.s8 %v415
    %v417 = vlaneseq
    %v418 = vshrl.u32 %v417, 7
    %v419 = vsub.s32 %v416, %v418
    %v420 = vrot.slane %v406, %v419
    %v421 = vcombine.high %v397, 0.0
    %v422 = vcombine.high %v404, 0.0
    %v423 = vcombine.high %v413, 0.0
    %v424 = vcombine.high %v420, 0.0
    %v425 = vpack.c.bf16 %v397, %v397
    %v426 = vpack.c.bf16 %v421, %v421
    %v427 = vpack.c.bf16 %v404, %v404
    %v428 = vpack.c.bf16 %v422, %v422
    %v429 = vpack.c.bf16 %v413, %v413
    %v430 = vpack.c.bf16 %v423, %v423
    %v431 = vpack.c.bf16 %v420, %v420
    %v432 = vpack.c.bf16 %v424, %v424
    %434 = vrot.lane.b32.xlu0 %v277, 120
    %v435 = vpop.permute.xlu0 %434
    %437 = vrot.lane.b32.xlu0 %v277, 112
    %v438 = vpop.permute.xlu0 %437
    %440 = vrot.lane.b32.xlu0 %v277, 104
    %v441 = vpop.permute.xlu0 %440
    %v443 = vcombine.low %v277, %v438
    %v444 = vcombine.high %v277, %v438
    %v446 = vunpack.c.l.s4 1983009808
    %v447 = vunpack.c.0.s8 %v446
    %v448 = vlaneseq
    %v449 = vshrl.u32 %v448, 7
    %v450 = vsub.s32 %v447, %v449
    %v451 = vrot.slane %v443, %v450
    %v453 = vunpack.c.l.s4 1983009808
    %v454 = vunpack.c.0.s8 %v453
    %v455 = vlaneseq
    %v456 = vshrl.u32 %v455, 7
    %v457 = vsub.s32 %v454, %v456
    %v458 = vrot.slane %v444, %v457
    %v459 = vcombine.low %v435, %v441
    %v460 = vcombine.high %v435, %v441
    %v462 = vunpack.c.l.s4 1983009808
    %v463 = vunpack.c.0.s8 %v462
    %v464 = vlaneseq
    %v465 = vshrl.u32 %v464, 7
    %v466 = vsub.s32 %v463, %v465
    %v467 = vrot.slane %v459, %v466
    %v469 = vunpack.c.l.s4 1983009808
    %v470 = vunpack.c.0.s8 %v469
    %v471 = vlaneseq
    %v472 = vshrl.u32 %v471, 7
    %v473 = vsub.s32 %v470, %v472
    %v474 = vrot.slane %v460, %v473
    %v475 = vcombine.low %v451, %v467
    %v476 = vcombine.high %v451, %v467
    %v478 = vunpack.c.l.s4 1934713408
    %v479 = vunpack.c.0.s8 %v478
    %v480 = vlaneseq
    %v481 = vshrl.u32 %v480, 7
    %v482 = vsub.s32 %v479, %v481
    %v483 = vrot.slane %v475, %v482
    %v485 = vunpack.c.l.s4 1934713408
    %v486 = vunpack.c.0.s8 %v485
    %v487 = vlaneseq
    %v488 = vshrl.u32 %v487, 7
    %v489 = vsub.s32 %v486, %v488
    %v490 = vrot.slane %v476, %v489
    %v491 = vcombine.low %v458, %v474
    %v492 = vcombine.high %v458, %v474
    %v494 = vunpack.c.l.s4 1934713408
    %v495 = vunpack.c.0.s8 %v494
    %v496 = vlaneseq
    %v497 = vshrl.u32 %v496, 7
    %v498 = vsub.s32 %v495, %v497
    %v499 = vrot.slane %v491, %v498
    %v501 = vunpack.c.l.s4 1934713408
    %v502 = vunpack.c.0.s8 %v501
    %v503 = vlaneseq
    %v504 = vshrl.u32 %v503, 7
    %v505 = vsub.s32 %v502, %v504
    %v506 = vrot.slane %v492, %v505
    %v507 = vcombine.high %v483, 0.0
    %v508 = vcombine.high %v490, 0.0
    %v509 = vcombine.high %v499, 0.0
    %v510 = vcombine.high %v506, 0.0
    %v511 = vpack.c.bf16 %v483, %v483
    %v512 = vpack.c.bf16 %v507, %v507
    %v513 = vpack.c.bf16 %v490, %v490
    %v514 = vpack.c.bf16 %v508, %v508
    %v515 = vpack.c.bf16 %v499, %v499
    %v516 = vpack.c.bf16 %v509, %v509
    %v517 = vpack.c.bf16 %v506, %v506
    %v518 = vpack.c.bf16 %v510, %v510
    %520 = vrot.lane.b32.xlu0 %v341, 120
    %v521 = vpop.permute.xlu0 %520
    %523 = vrot.lane.b32.xlu0 %v341, 112
    %v524 = vpop.permute.xlu0 %523
    %526 = vrot.lane.b32.xlu0 %v341, 104
    %v527 = vpop.permute.xlu0 %526
    %v529 = vcombine.low %v341, %v524
    %v530 = vcombine.high %v341, %v524
    %v532 = vunpack.c.l.s4 1983009808
    %v533 = vunpack.c.0.s8 %v532
    %v534 = vlaneseq
    %v535 = vshrl.u32 %v534, 7
    %v536 = vsub.s32 %v533, %v535
    %v537 = vrot.slane %v529, %v536
    %v539 = vunpack.c.l.s4 1983009808
    %v540 = vunpack.c.0.s8 %v539
    %v541 = vlaneseq
    %v542 = vshrl.u32 %v541, 7
    %v543 = vsub.s32 %v540, %v542
    %v544 = vrot.slane %v530, %v543
    %v545 = vcombine.low %v521, %v527
    %v546 = vcombine.high %v521, %v527
    %v548 = vunpack.c.l.s4 1983009808
    %v549 = vunpack.c.0.s8 %v548
    %v550 = vlaneseq
    %v551 = vshrl.u32 %v550, 7
    %v552 = vsub.s32 %v549, %v551
    %v553 = vrot.slane %v545, %v552
    %v555 = vunpack.c.l.s4 1983009808
    %v556 = vunpack.c.0.s8 %v555
    %v557 = vlaneseq
    %v558 = vshrl.u32 %v557, 7
    %v559 = vsub.s32 %v556, %v558
    %v560 = vrot.slane %v546, %v559
    %v561 = vcombine.low %v537, %v553
    %v562 = vcombine.high %v537, %v553
    %v564 = vunpack.c.l.s4 1934713408
    %v565 = vunpack.c.0.s8 %v564
    %v566 = vlaneseq
    %v567 = vshrl.u32 %v566, 7
    %v568 = vsub.s32 %v565, %v567
    %v569 = vrot.slane %v561, %v568
    %v571 = vunpack.c.l.s4 1934713408
    %v572 = vunpack.c.0.s8 %v571
    %v573 = vlaneseq
    %v574 = vshrl.u32 %v573, 7
    %v575 = vsub.s32 %v572, %v574
    %v576 = vrot.slane %v562, %v575
    %v577 = vcombine.low %v544, %v560
    %v578 = vcombine.high %v544, %v560
    %v580 = vunpack.c.l.s4 1934713408
    %v581 = vunpack.c.0.s8 %v580
    %v582 = vlaneseq
    %v583 = vshrl.u32 %v582, 7
    %v584 = vsub.s32 %v581, %v583
    %v585 = vrot.slane %v577, %v584
    %v587 = vunpack.c.l.s4 1934713408
    %v588 = vunpack.c.0.s8 %v587
    %v589 = vlaneseq
    %v590 = vshrl.u32 %v589, 7
    %v591 = vsub.s32 %v588, %v590
    %v592 = vrot.slane %v578, %v591
    %v593 = vcombine.high %v569, 0.0
    %v594 = vcombine.high %v576, 0.0
    %v595 = vcombine.high %v585, 0.0
    %v596 = vcombine.high %v592, 0.0
    %v597 = vpack.c.bf16 %v569, %v569
    %v598 = vpack.c.bf16 %v593, %v593
    %v599 = vpack.c.bf16 %v576, %v576
    %v600 = vpack.c.bf16 %v594, %v594
    %v601 = vpack.c.bf16 %v585, %v585
    %v602 = vpack.c.bf16 %v595, %v595
    %v603 = vpack.c.bf16 %v592, %v592
    %v604 = vpack.c.bf16 %v596, %v596
    %v605 = vcombine.low %v425, %v429
    %v607 = vunpack.c.l.s4 1983009808
    %v608 = vunpack.c.0.s8 %v607
    %v609 = vlaneseq
    %v610 = vshrl.u32 %v609, 7
    %v611 = vsub.s32 %v608, %v610
    %v612 = vrot.slane %v605, %v611
    %v613 = vcombine.low %v427, %v431
    %v615 = vunpack.c.l.s4 1983009808
    %v616 = vunpack.c.0.s8 %v615
    %v617 = vlaneseq
    %v618 = vshrl.u32 %v617, 7
    %v619 = vsub.s32 %v616, %v618
    %v620 = vrot.slane %v613, %v619
    %v621 = vcombine.low %v612, %v620
    %v623 = vunpack.c.l.s4 1934713408
    %v624 = vunpack.c.0.s8 %v623
    %v625 = vlaneseq
    %v626 = vshrl.u32 %v625, 7
    %v627 = vsub.s32 %v624, %v626
    %v628 = vrot.slane %v621, %v627
    %v629 = vcombine.high %v628, 0
    %v630 = vcombine.low %v426, %v430
    %v632 = vunpack.c.l.s4 1983009808
    %v633 = vunpack.c.0.s8 %v632
    %v634 = vlaneseq
    %v635 = vshrl.u32 %v634, 7
    %v636 = vsub.s32 %v633, %v635
    %v637 = vrot.slane %v630, %v636
    %v638 = vcombine.low %v428, %v432
    %v640 = vunpack.c.l.s4 1983009808
    %v641 = vunpack.c.0.s8 %v640
    %v642 = vlaneseq
    %v643 = vshrl.u32 %v642, 7
    %v644 = vsub.s32 %v641, %v643
    %v645 = vrot.slane %v638, %v644
    %v646 = vcombine.low %v637, %v645
    %v648 = vunpack.c.l.s4 1934713408
    %v649 = vunpack.c.0.s8 %v648
    %v650 = vlaneseq
    %v651 = vshrl.u32 %v650, 7
    %v652 = vsub.s32 %v649, %v651
    %v653 = vrot.slane %v646, %v652
    %v654 = vcombine.high %v653, 0
    %v657 = vpack.i.b16 %v653, %v628
    %v658 = vshrl.u32 %v628, 16
    %v659 = vshrl.u32 %v653, 16
    %v660 = vpack.i.b16 %v659, %v658
    %v663 = vpack.i.b16 %v654, %v629
    %v664 = vshrl.u32 %v629, 16
    %v665 = vshrl.u32 %v654, 16
    %v666 = vpack.i.b16 %v665, %v664
    %667 = vxpose.xlu0.c.b16.start [1/8] %v511, 128
    %668 = vxpose.xlu0.c.b16.cont [2/8] 0, 128
    %669 = vxpose.xlu0.c.b16.cont [3/8] 0, 128
    %670 = vxpose.xlu0.c.b16.cont [4/8] 0, 128
    %671 = vxpose.xlu0.c.b16.cont [5/8] 0, 128
    %672 = vxpose.xlu0.c.b16.cont [6/8] 0, 128
    %673 = vxpose.xlu0.c.b16.cont [7/8] 0, 128
    %674 = vxpose.xlu0.c.b16.end [8/8] 0, 128
    %v675 = vpop.trf.xlu0
    %v676 = vpop.trf.xlu0
    %v677 = vpop.trf.xlu0
    %v678 = vpop.trf.xlu0
    %v679 = vpop.trf.xlu0
    %v680 = vpop.trf.xlu0
    %v681 = vpop.trf.xlu0
    %v682 = vpop.trf.xlu0
    %683 = vxpose.xlu0.c.b16.start [1/8] %v512, 128
    %684 = vxpose.xlu0.c.b16.cont [2/8] 0, 128
    %685 = vxpose.xlu0.c.b16.cont [3/8] 0, 128
    %686 = vxpose.xlu0.c.b16.cont [4/8] 0, 128
    %687 = vxpose.xlu0.c.b16.cont [5/8] 0, 128
    %688 = vxpose.xlu0.c.b16.cont [6/8] 0, 128
    %689 = vxpose.xlu0.c.b16.cont [7/8] 0, 128
    %690 = vxpose.xlu0.c.b16.end [8/8] 0, 128
    %v691 = vpop.trf.xlu0
    %v692 = vpop.trf.xlu0
    %v693 = vpop.trf.xlu0
    %v694 = vpop.trf.xlu0
    %v695 = vpop.trf.xlu0
    %v696 = vpop.trf.xlu0
    %v697 = vpop.trf.xlu0
    %v698 = vpop.trf.xlu0
    %699 = vxpose.xlu0.c.b16.start [1/8] %v513, 128
    %700 = vxpose.xlu0.c.b16.cont [2/8] 0, 128
    %701 = vxpose.xlu0.c.b16.cont [3/8] 0, 128
    %702 = vxpose.xlu0.c.b16.cont [4/8] 0, 128
    %703 = vxpose.xlu0.c.b16.cont [5/8] 0, 128
    %704 = vxpose.xlu0.c.b16.cont [6/8] 0, 128
    %705 = vxpose.xlu0.c.b16.cont [7/8] 0, 128
    %706 = vxpose.xlu0.c.b16.end [8/8] 0, 128
    %v707 = vpop.trf.xlu0
    %v708 = vpop.trf.xlu0
    %v709 = vpop.trf.xlu0
    %v710 = vpop.trf.xlu0
    %v711 = vpop.trf.xlu0
    %v712 = vpop.trf.xlu0
    %v713 = vpop.trf.xlu0
    %v714 = vpop.trf.xlu0
    %715 = vxpose.xlu0.c.b16.start [1/8] %v514, 128
    %716 = vxpose.xlu0.c.b16.cont [2/8] 0, 128
    %717 = vxpose.xlu0.c.b16.cont [3/8] 0, 128
    %718 = vxpose.xlu0.c.b16.cont [4/8] 0, 128
    %719 = vxpose.xlu0.c.b16.cont [5/8] 0, 128
    %720 = vxpose.xlu0.c.b16.cont [6/8] 0, 128
    %721 = vxpose.xlu0.c.b16.cont [7/8] 0, 128
    %722 = vxpose.xlu0.c.b16.end [8/8] 0, 128
    %v723 = vpop.trf.xlu0
    %v724 = vpop.trf.xlu0
    %v725 = vpop.trf.xlu0
    %v726 = vpop.trf.xlu0
    %v727 = vpop.trf.xlu0
    %v728 = vpop.trf.xlu0
    %v729 = vpop.trf.xlu0
    %v730 = vpop.trf.xlu0
    %731 = vxpose.xlu0.c.b16.start [1/8] %v515, 128
    %732 = vxpose.xlu0.c.b16.cont [2/8] 0, 128
    %733 = vxpose.xlu0.c.b16.cont [3/8] 0, 128
    %734 = vxpose.xlu0.c.b16.cont [4/8] 0, 128
    %735 = vxpose.xlu0.c.b16.cont [5/8] 0, 128
    %736 = vxpose.xlu0.c.b16.cont [6/8] 0, 128
    %737 = vxpose.xlu0.c.b16.cont [7/8] 0, 128
    %738 = vxpose.xlu0.c.b16.end [8/8] 0, 128
    %v739 = vpop.trf.xlu0
    %v740 = vpop.trf.xlu0
    %v741 = vpop.trf.xlu0
    %v742 = vpop.trf.xlu0
    %v743 = vpop.trf.xlu0
    %v744 = vpop.trf.xlu0
    %v745 = vpop.trf.xlu0
    %v746 = vpop.trf.xlu0
    %747 = vxpose.xlu0.c.b16.start [1/8] %v516, 128
    %748 = vxpose.xlu0.c.b16.cont [2/8] 0, 128
    %749 = vxpose.xlu0.c.b16.cont [3/8] 0, 128
    %750 = vxpose.xlu0.c.b16.cont [4/8] 0, 128
    %751 = vxpose.xlu0.c.b16.cont [5/8] 0, 128
    %752 = vxpose.xlu0.c.b16.cont [6/8] 0, 128
    %753 = vxpose.xlu0.c.b16.cont [7/8] 0, 128
    %754 = vxpose.xlu0.c.b16.end [8/8] 0, 128
    %v755 = vpop.trf.xlu0
    %v756 = vpop.trf.xlu0
    %v757 = vpop.trf.xlu0
    %v758 = vpop.trf.xlu0
    %v759 = vpop.trf.xlu0
    %v760 = vpop.trf.xlu0
    %v761 = vpop.trf.xlu0
    %v762 = vpop.trf.xlu0
    %763 = vxpose.xlu0.c.b16.start [1/8] %v517, 128
    %764 = vxpose.xlu0.c.b16.cont [2/8] 0, 128
    %765 = vxpose.xlu0.c.b16.cont [3/8] 0, 128
    %766 = vxpose.xlu0.c.b16.cont [4/8] 0, 128
    %767 = vxpose.xlu0.c.b16.cont [5/8] 0, 128
    %768 = vxpose.xlu0.c.b16.cont [6/8] 0, 128
    %769 = vxpose.xlu0.c.b16.cont [7/8] 0, 128
    %770 = vxpose.xlu0.c.b16.end [8/8] 0, 128
    %v771 = vpop.trf.xlu0
    %v772 = vpop.trf.xlu0
    %v773 = vpop.trf.xlu0
    %v774 = vpop.trf.xlu0
    %v775 = vpop.trf.xlu0
    %v776 = vpop.trf.xlu0
    %v777 = vpop.trf.xlu0
    %v778 = vpop.trf.xlu0
    %779 = vxpose.xlu0.c.b16.start [1/8] %v518, 128
    %780 = vxpose.xlu0.c.b16.cont [2/8] 0, 128
    %781 = vxpose.xlu0.c.b16.cont [3/8] 0, 128
    %782 = vxpose.xlu0.c.b16.cont [4/8] 0, 128
    %783 = vxpose.xlu0.c.b16.cont [5/8] 0, 128
    %784 = vxpose.xlu0.c.b16.cont [6/8] 0, 128
    %785 = vxpose.xlu0.c.b16.cont [7/8] 0, 128
    %786 = vxpose.xlu0.c.b16.end [8/8] 0, 128
    %v787 = vpop.trf.xlu0
    %v788 = vpop.trf.xlu0
    %v789 = vpop.trf.xlu0
    %v790 = vpop.trf.xlu0
    %v791 = vpop.trf.xlu0
    %v792 = vpop.trf.xlu0
    %v793 = vpop.trf.xlu0
    %v794 = vpop.trf.xlu0
    %v795 = vcombine.low %v675, %v739
    %v797 = vunpack.c.l.s4 1983009808
    %v798 = vunpack.c.0.s8 %v797
    %v799 = vlaneseq
    %v800 = vshrl.u32 %v799, 7
    %v801 = vsub.s32 %v798, %v800
    %v802 = vrot.slane %v795, %v801
    %v803 = vcombine.low %v707, %v771
    %v805 = vunpack.c.l.s4 1983009808
    %v806 = vunpack.c.0.s8 %v805
    %v807 = vlaneseq
    %v808 = vshrl.u32 %v807, 7
    %v809 = vsub.s32 %v806, %v808
    %v810 = vrot.slane %v803, %v809
    %v811 = vcombine.low %v802, %v810
    %v812 = vcombine.high %v802, %v810
    %v814 = vunpack.c.l.s4 1934713408
    %v815 = vunpack.c.0.s8 %v814
    %v816 = vlaneseq
    %v817 = vshrl.u32 %v816, 7
    %v818 = vsub.s32 %v815, %v817
    %v819 = vrot.slane %v811, %v818
    %v821 = vunpack.c.l.s4 1934713408
    %v822 = vunpack.c.0.s8 %v821
    %v823 = vlaneseq
    %v824 = vshrl.u32 %v823, 7
    %v825 = vsub.s32 %v822, %v824
    %v826 = vrot.slane %v812, %v825
    %v827 = vcombine.high %v819, 0
    %v828 = vcombine.high %v826, 0
    %v829 = vcombine.low %v691, %v755
    %v831 = vunpack.c.l.s4 1983009808
    %v832 = vunpack.c.0.s8 %v831
    %v833 = vlaneseq
    %v834 = vshrl.u32 %v833, 7
    %v835 = vsub.s32 %v832, %v834
    %v836 = vrot.slane %v829, %v835
    %v837 = vcombine.low %v723, %v787
    %v839 = vunpack.c.l.s4 1983009808
    %v840 = vunpack.c.0.s8 %v839
    %v841 = vlaneseq
    %v842 = vshrl.u32 %v841, 7
    %v843 = vsub.s32 %v840, %v842
    %v844 = vrot.slane %v837, %v843
    %v845 = vcombine.low %v836, %v844
    %v846 = vcombine.high %v836, %v844
    %v848 = vunpack.c.l.s4 1934713408
    %v849 = vunpack.c.0.s8 %v848
    %v850 = vlaneseq
    %v851 = vshrl.u32 %v850, 7
    %v852 = vsub.s32 %v849, %v851
    %v853 = vrot.slane %v845, %v852
    %v855 = vunpack.c.l.s4 1934713408
    %v856 = vunpack.c.0.s8 %v855
    %v857 = vlaneseq
    %v858 = vshrl.u32 %v857, 7
    %v859 = vsub.s32 %v856, %v858
    %v860 = vrot.slane %v846, %v859
    %v861 = vcombine.high %v853, 0
    %v862 = vcombine.high %v860, 0
    %v865 = vpack.i.b16 %v853, %v819
    %v867 = vshrl.u32 %v819, 16
    %v868 = vshrl.u32 %v853, 16
    %v869 = vpack.i.b16 %v868, %v867
    %v873 = vpack.i.b16 %v861, %v827
    %v875 = vshrl.u32 %v827, 16
    %v876 = vshrl.u32 %v861, 16
    %v877 = vpack.i.b16 %v876, %v875
    %v881 = vpack.i.b16 %v860, %v826
    %v883 = vshrl.u32 %v826, 16
    %v884 = vshrl.u32 %v860, 16
    %v885 = vpack.i.b16 %v884, %v883
    %v889 = vpack.i.b16 %v862, %v828
    %v891 = vshrl.u32 %v828, 16
    %v892 = vshrl.u32 %v862, 16
    %v893 = vpack.i.b16 %v892, %v891
    %895 = vxpose.xlu0.c.b16.start [1/8] %v865, 128
    %896 = vxpose.xlu0.c.b16.cont [2/8] 0, 128
    %897 = vxpose.xlu0.c.b16.cont [3/8] 0, 128
    %898 = vxpose.xlu0.c.b16.cont [4/8] 0, 128
    %899 = vxpose.xlu0.c.b16.cont [5/8] 0, 128
    %900 = vxpose.xlu0.c.b16.cont [6/8] 0, 128
    %901 = vxpose.xlu0.c.b16.cont [7/8] 0, 128
    %902 = vxpose.xlu0.c.b16.end [8/8] 0, 128
    %v903 = vpop.trf.xlu0
    %v904 = vpop.trf.xlu0
    %v905 = vpop.trf.xlu0
    %v906 = vpop.trf.xlu0
    %v907 = vpop.trf.xlu0
    %v908 = vpop.trf.xlu0
    %v909 = vpop.trf.xlu0
    %v910 = vpop.trf.xlu0
    %911 = vxpose.xlu0.c.b16.start [1/8] %v869, 128
    %912 = vxpose.xlu0.c.b16.cont [2/8] 0, 128
    %913 = vxpose.xlu0.c.b16.cont [3/8] 0, 128
    %914 = vxpose.xlu0.c.b16.cont [4/8] 0, 128
    %915 = vxpose.xlu0.c.b16.cont [5/8] 0, 128
    %916 = vxpose.xlu0.c.b16.cont [6/8] 0, 128
    %917 = vxpose.xlu0.c.b16.cont [7/8] 0, 128
    %918 = vxpose.xlu0.c.b16.end [8/8] 0, 128
    %v919 = vpop.trf.xlu0
    %v920 = vpop.trf.xlu0
    %v921 = vpop.trf.xlu0
    %v922 = vpop.trf.xlu0
    %v923 = vpop.trf.xlu0
    %v924 = vpop.trf.xlu0
    %v925 = vpop.trf.xlu0
    %v926 = vpop.trf.xlu0
    %927 = vxpose.xlu0.c.b16.start [1/8] %v873, 128
    %928 = vxpose.xlu0.c.b16.cont [2/8] 0, 128
    %929 = vxpose.xlu0.c.b16.cont [3/8] 0, 128
    %930 = vxpose.xlu0.c.b16.cont [4/8] 0, 128
    %931 = vxpose.xlu0.c.b16.cont [5/8] 0, 128
    %932 = vxpose.xlu0.c.b16.cont [6/8] 0, 128
    %933 = vxpose.xlu0.c.b16.cont [7/8] 0, 128
    %934 = vxpose.xlu0.c.b16.end [8/8] 0, 128
    %v935 = vpop.trf.xlu0
    %v936 = vpop.trf.xlu0
    %v937 = vpop.trf.xlu0
    %v938 = vpop.trf.xlu0
    %v939 = vpop.trf.xlu0
    %v940 = vpop.trf.xlu0
    %v941 = vpop.trf.xlu0
    %v942 = vpop.trf.xlu0
    %943 = vxpose.xlu0.c.b16.start [1/8] %v877, 128
    %944 = vxpose.xlu0.c.b16.cont [2/8] 0, 128
    %945 = vxpose.xlu0.c.b16.cont [3/8] 0, 128
    %946 = vxpose.xlu0.c.b16.cont [4/8] 0, 128
    %947 = vxpose.xlu0.c.b16.cont [5/8] 0, 128
    %948 = vxpose.xlu0.c.b16.cont [6/8] 0, 128
    %949 = vxpose.xlu0.c.b16.cont [7/8] 0, 128
    %950 = vxpose.xlu0.c.b16.end [8/8] 0, 128
    %v951 = vpop.trf.xlu0
    %v952 = vpop.trf.xlu0
    %v953 = vpop.trf.xlu0
    %v954 = vpop.trf.xlu0
    %v955 = vpop.trf.xlu0
    %v956 = vpop.trf.xlu0
    %v957 = vpop.trf.xlu0
    %v958 = vpop.trf.xlu0
    %959 = vxpose.xlu0.c.b16.start [1/8] %v881, 128
    %960 = vxpose.xlu0.c.b16.cont [2/8] 0, 128
    %961 = vxpose.xlu0.c.b16.cont [3/8] 0, 128
    %962 = vxpose.xlu0.c.b16.cont [4/8] 0, 128
    %963 = vxpose.xlu0.c.b16.cont [5/8] 0, 128
    %964 = vxpose.xlu0.c.b16.cont [6/8] 0, 128
    %965 = vxpose.xlu0.c.b16.cont [7/8] 0, 128
    %966 = vxpose.xlu0.c.b16.end [8/8] 0, 128
    %v967 = vpop.trf.xlu0
    %v968 = vpop.trf.xlu0
    %v969 = vpop.trf.xlu0
    %v970 = vpop.trf.xlu0
    %v971 = vpop.trf.xlu0
    %v972 = vpop.trf.xlu0
    %v973 = vpop.trf.xlu0
    %v974 = vpop.trf.xlu0
    %975 = vxpose.xlu0.c.b16.start [1/8] %v885, 128
    %976 = vxpose.xlu0.c.b16.cont [2/8] 0, 128
    %977 = vxpose.xlu0.c.b16.cont [3/8] 0, 128
    %978 = vxpose.xlu0.c.b16.cont [4/8] 0, 128
    %979 = vxpose.xlu0.c.b16.cont [5/8] 0, 128
    %980 = vxpose.xlu0.c.b16.cont [6/8] 0, 128
    %981 = vxpose.xlu0.c.b16.cont [7/8] 0, 128
    %982 = vxpose.xlu0.c.b16.end [8/8] 0, 128
    %v983 = vpop.trf.xlu0
    %v984 = vpop.trf.xlu0
    %v985 = vpop.trf.xlu0
    %v986 = vpop.trf.xlu0
    %v987 = vpop.trf.xlu0
    %v988 = vpop.trf.xlu0
    %v989 = vpop.trf.xlu0
    %v990 = vpop.trf.xlu0
    %991 = vxpose.xlu0.c.b16.start [1/8] %v889, 128
    %992 = vxpose.xlu0.c.b16.cont [2/8] 0, 128
    %993 = vxpose.xlu0.c.b16.cont [3/8] 0, 128
    %994 = vxpose.xlu0.c.b16.cont [4/8] 0, 128
    %995 = vxpose.xlu0.c.b16.cont [5/8] 0, 128
    %996 = vxpose.xlu0.c.b16.cont [6/8] 0, 128
    %997 = vxpose.xlu0.c.b16.cont [7/8] 0, 128
    %998 = vxpose.xlu0.c.b16.end [8/8] 0, 128
    %v999 = vpop.trf.xlu0
    %v1000 = vpop.trf.xlu0
    %v1001 = vpop.trf.xlu0
    %v1002 = vpop.trf.xlu0
    %v1003 = vpop.trf.xlu0
    %v1004 = vpop.trf.xlu0
    %v1005 = vpop.trf.xlu0
    %v1006 = vpop.trf.xlu0
    %1007 = vxpose.xlu0.c.b16.start [1/8] %v893, 128
    %1008 = vxpose.xlu0.c.b16.cont [2/8] 0, 128
    %1009 = vxpose.xlu0.c.b16.cont [3/8] 0, 128
    %1010 = vxpose.xlu0.c.b16.cont [4/8] 0, 128
    %1011 = vxpose.xlu0.c.b16.cont [5/8] 0, 128
    %1012 = vxpose.xlu0.c.b16.cont [6/8] 0, 128
    %1013 = vxpose.xlu0.c.b16.cont [7/8] 0, 128
    %1014 = vxpose.xlu0.c.b16.end [8/8] 0, 128
    %v1015 = vpop.trf.xlu0
    %v1016 = vpop.trf.xlu0
    %v1017 = vpop.trf.xlu0
    %v1018 = vpop.trf.xlu0
    %v1019 = vpop.trf.xlu0
    %v1020 = vpop.trf.xlu0
    %v1021 = vpop.trf.xlu0
    %v1022 = vpop.trf.xlu0
    %v1023 = vcombine.low %v903, %v967
    %v1025 = vunpack.c.l.s4 1983009808
    %v1026 = vunpack.c.0.s8 %v1025
    %v1027 = vlaneseq
    %v1028 = vshrl.u32 %v1027, 7
    %v1029 = vsub.s32 %v1026, %v1028
    %v1030 = vrot.slane %v1023, %v1029
    %v1031 = vcombine.low %v935, %v999
    %v1033 = vunpack.c.l.s4 1983009808
    %v1034 = vunpack.c.0.s8 %v1033
    %v1035 = vlaneseq
    %v1036 = vshrl.u32 %v1035, 7
    %v1037 = vsub.s32 %v1034, %v1036
    %v1038 = vrot.slane %v1031, %v1037
    %v1039 = vcombine.low %v1030, %v1038
    %v1041 = vunpack.c.l.s4 1934713408
    %v1042 = vunpack.c.0.s8 %v1041
    %v1043 = vlaneseq
    %v1044 = vshrl.u32 %v1043, 7
    %v1045 = vsub.s32 %v1042, %v1044
    %v1046 = vrot.slane %v1039, %v1045
    %v1047 = vcombine.high %v1046, 0
    %v1048 = vcombine.low %v919, %v983
    %v1050 = vunpack.c.l.s4 1983009808
    %v1051 = vunpack.c.0.s8 %v1050
    %v1052 = vlaneseq
    %v1053 = vshrl.u32 %v1052, 7
    %v1054 = vsub.s32 %v1051, %v1053
    %v1055 = vrot.slane %v1048, %v1054
    %v1056 = vcombine.low %v951, %v1015
    %v1058 = vunpack.c.l.s4 1983009808
    %v1059 = vunpack.c.0.s8 %v1058
    %v1060 = vlaneseq
    %v1061 = vshrl.u32 %v1060, 7
    %v1062 = vsub.s32 %v1059, %v1061
    %v1063 = vrot.slane %v1056, %v1062
    %v1064 = vcombine.low %v1055, %v1063
    %v1066 = vunpack.c.l.s4 1934713408
    %v1067 = vunpack.c.0.s8 %v1066
    %v1068 = vlaneseq
    %v1069 = vshrl.u32 %v1068, 7
    %v1070 = vsub.s32 %v1067, %v1069
    %v1071 = vrot.slane %v1064, %v1070
    %v1072 = vcombine.high %v1071, 0
    %v1075 = vpack.i.b16 %v1071, %v1046
    %v1076 = vshrl.u32 %v1046, 16
    %v1077 = vshrl.u32 %v1071, 16
    %v1078 = vpack.i.b16 %v1077, %v1076
    %v1081 = vpack.i.b16 %v1072, %v1047
    %v1082 = vshrl.u32 %v1047, 16
    %v1083 = vshrl.u32 %v1072, 16
    %v1084 = vpack.i.b16 %v1083, %v1082
    %vm1085 = vcmask 64512
    %v1087 = vsel %vm1085, %v657, 0
    %vm1089 = vcmask 1043456
    %v1091 = vsel %vm1089, %v1075, 0
    %1093 = vmatprep.subr.bf16.mxu0 0
    %1094 = vmatpush1.bf16.msra.mxu0 0
    %1095 = vmatprep.subr.bf16.mxu0 0
    %1096 = vmatpush1.bf16.msra.mxu0 0
    %1097 = vmatprep.subr.bf16.mxu0 0
    %1098 = vmatpush1.bf16.msra.mxu0 0
    %1099 = vmatprep.subr.bf16.mxu0 0
    %1100 = vmatpush1.bf16.msra.mxu0 0
    %1101 = vmatprep.subr.bf16.mxu0 0
    %1102 = vmatpush1.bf16.msra.mxu0 0
    %1103 = vmatprep.subr.bf16.mxu0 0
    %1104 = vmatpush1.bf16.msra.mxu0 0
    %1105 = vmatprep.subr.bf16.mxu0 0
    %1106 = vmatpush1.bf16.msra.mxu0 0
    %1107 = vmatprep.subr.bf16.mxu0 0
    %1108 = vmatpush1.bf16.msra.mxu0 %v1091
    %1109 = vmatprep.subr.bf16.mxu0 0
    %1110 = vmatpush2.bf16.msra.mxu0 0
    %1111 = vmatprep.subr.bf16.mxu0 0
    %1112 = vmatpush2.bf16.msra.mxu0 0
    %1113 = vmatprep.subr.bf16.mxu0 0
    %1114 = vmatpush2.bf16.msra.mxu0 0
    %1115 = vmatprep.subr.bf16.mxu0 0
    %1116 = vmatpush2.bf16.msra.mxu0 0
    %1117 = vmatprep.subr.bf16.mxu0 0
    %1118 = vmatpush2.bf16.msra.mxu0 0
    %1119 = vmatprep.subr.bf16.mxu0 0
    %1120 = vmatpush2.bf16.msra.mxu0 0
    %1121 = vmatprep.subr.bf16.mxu0 0
    %1122 = vmatpush2.bf16.msra.mxu0 0
    %1123 = vmatprep.subr.bf16.mxu0 0
    %1124 = vmatpush2.bf16.msra.mxu0 0
    %1125 = vmatprep.mubr.bf16.mxu0 0
    %1126 = vmatmul.mubr.bf16.gmra.mxu0 %v1087
    %v1127 = vpop.f32.mrf.mxu0
    %v1128 = vadd.f32 0.0, %v1127
    %v1129 = vpop.f32.mrf.mxu0
    %v1130 = vpop.f32.mrf.mxu0
    %v1131 = vpop.f32.mrf.mxu0
    %1132 = vdwg.mxu0
    %v1134 = vsel %vm1085, %v660, 0
    %v1137 = vsel %vm1089, %v1078, 0
    %1139 = vmatprep.subr.bf16.mxu0 0
    %1140 = vmatpush1.bf16.msra.mxu0 0
    %1141 = vmatprep.subr.bf16.mxu0 0
    %1142 = vmatpush1.bf16.msra.mxu0 0
    %1143 = vmatprep.subr.bf16.mxu0 0
    %1144 = vmatpush1.bf16.msra.mxu0 0
    %1145 = vmatprep.subr.bf16.mxu0 0
    %1146 = vmatpush1.bf16.msra.mxu0 0
    %1147 = vmatprep.subr.bf16.mxu0 0
    %1148 = vmatpush1.bf16.msra.mxu0 0
    %1149 = vmatprep.subr.bf16.mxu0 0
    %1150 = vmatpush1.bf16.msra.mxu0 0
    %1151 = vmatprep.subr.bf16.mxu0 0
    %1152 = vmatpush1.bf16.msra.mxu0 0
    %1153 = vmatprep.subr.bf16.mxu0 0
    %1154 = vmatpush1.bf16.msra.mxu0 %v1137
    %1155 = vmatprep.subr.bf16.mxu0 0
    %1156 = vmatpush2.bf16.msra.mxu0 0
    %1157 = vmatprep.subr.bf16.mxu0 0
    %1158 = vmatpush2.bf16.msra.mxu0 0
    %1159 = vmatprep.subr.bf16.mxu0 0
    %1160 = vmatpush2.bf16.msra.mxu0 0
    %1161 = vmatprep.subr.bf16.mxu0 0
    %1162 = vmatpush2.bf16.msra.mxu0 0
    %1163 = vmatprep.subr.bf16.mxu0 0
    %1164 = vmatpush2.bf16.msra.mxu0 0
    %1165 = vmatprep.subr.bf16.mxu0 0
    %1166 = vmatpush2.bf16.msra.mxu0 0
    %1167 = vmatprep.subr.bf16.mxu0 0
    %1168 = vmatpush2.bf16.msra.mxu0 0
    %1169 = vmatprep.subr.bf16.mxu0 0
    %1170 = vmatpush2.bf16.msra.mxu0 0
    %1171 = vmatprep.mubr.bf16.mxu0 0
    %1172 = vmatmul.mubr.bf16.gmra.mxu0 %v1134
    %v1173 = vpop.f32.mrf.mxu0
    %v1174 = vadd.f32 0.0, %v1173
    %v1175 = vpop.f32.mrf.mxu0
    %v1176 = vpop.f32.mrf.mxu0
    %v1177 = vpop.f32.mrf.mxu0
    %1178 = vdwg.mxu0
    %v1180 = vsel %vm1085, %v663, 0
    %v1183 = vsel %vm1089, %v1081, 0
    %1185 = vmatprep.subr.bf16.mxu0 0
    %1186 = vmatpush1.bf16.msra.mxu0 0
    %1187 = vmatprep.subr.bf16.mxu0 0
    %1188 = vmatpush1.bf16.msra.mxu0 0
    %1189 = vmatprep.subr.bf16.mxu0 0
    %1190 = vmatpush1.bf16.msra.mxu0 0
    %1191 = vmatprep.subr.bf16.mxu0 0
    %1192 = vmatpush1.bf16.msra.mxu0 0
    %1193 = vmatprep.subr.bf16.mxu0 0
    %1194 = vmatpush1.bf16.msra.mxu0 0
    %1195 = vmatprep.subr.bf16.mxu0 0
    %1196 = vmatpush1.bf16.msra.mxu0 0
    %1197 = vmatprep.subr.bf16.mxu0 0
    %1198 = vmatpush1.bf16.msra.mxu0 0
    %1199 = vmatprep.subr.bf16.mxu0 0
    %1200 = vmatpush1.bf16.msra.mxu0 %v1183
    %1201 = vmatprep.subr.bf16.mxu0 0
    %1202 = vmatpush2.bf16.msra.mxu0 0
    %1203 = vmatprep.subr.bf16.mxu0 0
    %1204 = vmatpush2.bf16.msra.mxu0 0
    %1205 = vmatprep.subr.bf16.mxu0 0
    %1206 = vmatpush2.bf16.msra.mxu0 0
    %1207 = vmatprep.subr.bf16.mxu0 0
    %1208 = vmatpush2.bf16.msra.mxu0 0
    %1209 = vmatprep.subr.bf16.mxu0 0
    %1210 = vmatpush2.bf16.msra.mxu0 0
    %1211 = vmatprep.subr.bf16.mxu0 0
    %1212 = vmatpush2.bf16.msra.mxu0 0
    %1213 = vmatprep.subr.bf16.mxu0 0
    %1214 = vmatpush2.bf16.msra.mxu0 0
    %1215 = vmatprep.subr.bf16.mxu0 0
    %1216 = vmatpush2.bf16.msra.mxu0 0
    %1217 = vmatprep.mubr.bf16.mxu0 0
    %1218 = vmatmul.mubr.bf16.gmra.mxu0 %v1180
    %v1219 = vpop.f32.mrf.mxu0
    %v1220 = vadd.f32 0.0, %v1219
    %v1221 = vpop.f32.mrf.mxu0
    %v1222 = vpop.f32.mrf.mxu0
    %v1223 = vpop.f32.mrf.mxu0
    %1224 = vdwg.mxu0
    %v1226 = vsel %vm1085, %v666, 0
    %v1229 = vsel %vm1089, %v1084, 0
    %1231 = vmatprep.subr.bf16.mxu0 0
    %1232 = vmatpush1.bf16.msra.mxu0 0
    %1233 = vmatprep.subr.bf16.mxu0 0
    %1234 = vmatpush1.bf16.msra.mxu0 0
    %1235 = vmatprep.subr.bf16.mxu0 0
    %1236 = vmatpush1.bf16.msra.mxu0 0
    %1237 = vmatprep.subr.bf16.mxu0 0
    %1238 = vmatpush1.bf16.msra.mxu0 0
    %1239 = vmatprep.subr.bf16.mxu0 0
    %1240 = vmatpush1.bf16.msra.mxu0 0
    %1241 = vmatprep.subr.bf16.mxu0 0
    %1242 = vmatpush1.bf16.msra.mxu0 0
    %1243 = vmatprep.subr.bf16.mxu0 0
    %1244 = vmatpush1.bf16.msra.mxu0 0
    %1245 = vmatprep.subr.bf16.mxu0 0
    %1246 = vmatpush1.bf16.msra.mxu0 %v1229
    %1247 = vmatprep.subr.bf16.mxu0 0
    %1248 = vmatpush2.bf16.msra.mxu0 0
    %1249 = vmatprep.subr.bf16.mxu0 0
    %1250 = vmatpush2.bf16.msra.mxu0 0
    %1251 = vmatprep.subr.bf16.mxu0 0
    %1252 = vmatpush2.bf16.msra.mxu0 0
    %1253 = vmatprep.subr.bf16.mxu0 0
    %1254 = vmatpush2.bf16.msra.mxu0 0
    %1255 = vmatprep.subr.bf16.mxu0 0
    %1256 = vmatpush2.bf16.msra.mxu0 0
    %1257 = vmatprep.subr.bf16.mxu0 0
    %1258 = vmatpush2.bf16.msra.mxu0 0
    %1259 = vmatprep.subr.bf16.mxu0 0
    %1260 = vmatpush2.bf16.msra.mxu0 0
    %1261 = vmatprep.subr.bf16.mxu0 0
    %1262 = vmatpush2.bf16.msra.mxu0 0
    %1263 = vmatprep.mubr.bf16.mxu0 0
    %1264 = vmatmul.mubr.bf16.gmra.mxu0 %v1226
    %v1265 = vpop.f32.mrf.mxu0
    %v1266 = vadd.f32 0.0, %v1265
    %v1267 = vpop.f32.mrf.mxu0
    %v1268 = vpop.f32.mrf.mxu0
    %v1269 = vpop.f32.mrf.mxu0
    %1270 = vdwg.mxu0
    %v1271 = vmul.f32 %v1128, 0.35355338
    %v1272 = vmul.f32 %v1174, 0.35355338
    %v1273 = vmul.f32 %v1220, 0.35355338
    %v1274 = vmul.f32 %v1266, 0.35355338
    %v1275 = vld [vmem:[#allocation2] sm:$0x1]
    %v1277 = vlaneseq
    %v1278 = vshrl.u32 %v1277, 7
    %v1279 = vsub.s32 0, %v1278
    %v1280 = vrot.slane %v1275, %v1279
    %v1282 = vadd.f32 %v1271, %v1280
    %v1283 = vadd.f32 %v1272, %v1280
    %v1284 = vadd.f32 %v1273, %v1280
    %v1285 = vadd.f32 %v1274, %v1280
    %v1286 = vsel %vm1085, %v1282, -inf
    %1287 = vmax.xlane.f32.xlu0 %v1286
    %v1288 = vpop.xlane.xlu0 %1287
    %v1289 = vsel %vm1085, %v1283, -inf
    %1290 = vmax.xlane.f32.xlu0 %v1289
    %v1291 = vpop.xlane.xlu0 %1290
    %v1292 = vsel %vm1085, %v1284, -inf
    %1293 = vmax.xlane.f32.xlu0 %v1292
    %v1294 = vpop.xlane.xlu0 %1293
    %v1295 = vsel %vm1085, %v1285, -inf
    %1296 = vmax.xlane.f32.xlu0 %v1295
    %v1297 = vpop.xlane.xlu0 %1296
    %v1298 = vsub.f32 %v1282, %v1288
    %v1299 = vsub.f32 %v1283, %v1291
    %v1300 = vsub.f32 %v1284, %v1294
    %v1301 = vsub.f32 %v1285, %v1297
    %v1302 = vmul.f32 %v1298, 1.442695
    %v1303 = vpow.pop %v1302
    %v1304 = vmul.f32 %v1299, 1.442695
    %v1305 = vpow.pop %v1304
    %v1306 = vmul.f32 %v1300, 1.442695
    %v1307 = vpow.pop %v1306
    %v1308 = vmul.f32 %v1301, 1.442695
    %v1309 = vpow.pop %v1308
    %v1310 = vsel %vm1085, %v1303, 0.0
    %1311 = vadd.xlane.f32.xlu0 %v1310
    %v1312 = vpop.xlane.xlu0 %1311
    %v1313 = vsel %vm1085, %v1305, 0.0
    %1314 = vadd.xlane.f32.xlu0 %v1313
    %v1315 = vpop.xlane.xlu0 %1314
    %v1316 = vsel %vm1085, %v1307, 0.0
    %1317 = vadd.xlane.f32.xlu0 %v1316
    %v1318 = vpop.xlane.xlu0 %1317
    %v1319 = vsel %vm1085, %v1309, 0.0
    %1320 = vadd.xlane.f32.xlu0 %v1319
    %v1321 = vpop.xlane.xlu0 %1320
    %v1322 = vrcp.pop %v1312
    %v1323 = vrcp.pop %v1315
    %v1324 = vrcp.pop %v1318
    %v1325 = vrcp.pop %v1321
    %v1326 = vmul.f32 %v1303, %v1322
    %v1327 = vmul.f32 %v1305, %v1323
    %v1328 = vmul.f32 %v1307, %v1324
    %v1329 = vmul.f32 %v1309, %v1325
    %v1330 = vpack.c.bf16 %v1326, %v1326
    %v1331 = vpack.c.bf16 %v1327, %v1327
    %v1332 = vpack.c.bf16 %v1328, %v1328
    %v1333 = vpack.c.bf16 %v1329, %v1329
    %1334 = vxpose.xlu0.c.b16.start [1/8] %v597, 128
    %1335 = vxpose.xlu0.c.b16.cont [2/8] 0, 128
    %1336 = vxpose.xlu0.c.b16.cont [3/8] 0, 128
    %1337 = vxpose.xlu0.c.b16.cont [4/8] 0, 128
    %1338 = vxpose.xlu0.c.b16.cont [5/8] 0, 128
    %1339 = vxpose.xlu0.c.b16.cont [6/8] 0, 128
    %1340 = vxpose.xlu0.c.b16.cont [7/8] 0, 128
    %1341 = vxpose.xlu0.c.b16.end [8/8] 0, 128
    %v1342 = vpop.trf.xlu0
    %v1343 = vpop.trf.xlu0
    %v1344 = vpop.trf.xlu0
    %v1345 = vpop.trf.xlu0
    %v1346 = vpop.trf.xlu0
    %v1347 = vpop.trf.xlu0
    %v1348 = vpop.trf.xlu0
    %v1349 = vpop.trf.xlu0
    %1350 = vxpose.xlu0.c.b16.start [1/8] %v598, 128
    %1351 = vxpose.xlu0.c.b16.cont [2/8] 0, 128
    %1352 = vxpose.xlu0.c.b16.cont [3/8] 0, 128
    %1353 = vxpose.xlu0.c.b16.cont [4/8] 0, 128
    %1354 = vxpose.xlu0.c.b16.cont [5/8] 0, 128
    %1355 = vxpose.xlu0.c.b16.cont [6/8] 0, 128
    %1356 = vxpose.xlu0.c.b16.cont [7/8] 0, 128
    %1357 = vxpose.xlu0.c.b16.end [8/8] 0, 128
    %v1358 = vpop.trf.xlu0
    %v1359 = vpop.trf.xlu0
    %v1360 = vpop.trf.xlu0
    %v1361 = vpop.trf.xlu0
    %v1362 = vpop.trf.xlu0
    %v1363 = vpop.trf.xlu0
    %v1364 = vpop.trf.xlu0
    %v1365 = vpop.trf.xlu0
    %1366 = vxpose.xlu0.c.b16.start [1/8] %v599, 128
    %1367 = vxpose.xlu0.c.b16.cont [2/8] 0, 128
    %1368 = vxpose.xlu0.c.b16.cont [3/8] 0, 128
    %1369 = vxpose.xlu0.c.b16.cont [4/8] 0, 128
    %1370 = vxpose.xlu0.c.b16.cont [5/8] 0, 128
    %1371 = vxpose.xlu0.c.b16.cont [6/8] 0, 128
    %1372 = vxpose.xlu0.c.b16.cont [7/8] 0, 128
    %1373 = vxpose.xlu0.c.b16.end [8/8] 0, 128
    %v1374 = vpop.trf.xlu0
    %v1375 = vpop.trf.xlu0
    %v1376 = vpop.trf.xlu0
    %v1377 = vpop.trf.xlu0
    %v1378 = vpop.trf.xlu0
    %v1379 = vpop.trf.xlu0
    %v1380 = vpop.trf.xlu0
    %v1381 = vpop.trf.xlu0
    %1382 = vxpose.xlu0.c.b16.start [1/8] %v600, 128
    %1383 = vxpose.xlu0.c.b16.cont [2/8] 0, 128
    %1384 = vxpose.xlu0.c.b16.cont [3/8] 0, 128
    %1385 = vxpose.xlu0.c.b16.cont [4/8] 0, 128
    %1386 = vxpose.xlu0.c.b16.cont [5/8] 0, 128
    %1387 = vxpose.xlu0.c.b16.cont [6/8] 0, 128
    %1388 = vxpose.xlu0.c.b16.cont [7/8] 0, 128
    %1389 = vxpose.xlu0.c.b16.end [8/8] 0, 128
    %v1390 = vpop.trf.xlu0
    %v1391 = vpop.trf.xlu0
    %v1392 = vpop.trf.xlu0
    %v1393 = vpop.trf.xlu0
    %v1394 = vpop.trf.xlu0
    %v1395 = vpop.trf.xlu0
    %v1396 = vpop.trf.xlu0
    %v1397 = vpop.trf.xlu0
    %1398 = vxpose.xlu0.c.b16.start [1/8] %v601, 128
    %1399 = vxpose.xlu0.c.b16.cont [2/8] 0, 128
    %1400 = vxpose.xlu0.c.b16.cont [3/8] 0, 128
    %1401 = vxpose.xlu0.c.b16.cont [4/8] 0, 128
    %1402 = vxpose.xlu0.c.b16.cont [5/8] 0, 128
    %1403 = vxpose.xlu0.c.b16.cont [6/8] 0, 128
    %1404 = vxpose.xlu0.c.b16.cont [7/8] 0, 128
    %1405 = vxpose.xlu0.c.b16.end [8/8] 0, 128
    %v1406 = vpop.trf.xlu0
    %v1407 = vpop.trf.xlu0
    %v1408 = vpop.trf.xlu0
    %v1409 = vpop.trf.xlu0
    %v1410 = vpop.trf.xlu0
    %v1411 = vpop.trf.xlu0
    %v1412 = vpop.trf.xlu0
    %v1413 = vpop.trf.xlu0
    %1414 = vxpose.xlu0.c.b16.start [1/8] %v602, 128
    %1415 = vxpose.xlu0.c.b16.cont [2/8] 0, 128
    %1416 = vxpose.xlu0.c.b16.cont [3/8] 0, 128
    %1417 = vxpose.xlu0.c.b16.cont [4/8] 0, 128
    %1418 = vxpose.xlu0.c.b16.cont [5/8] 0, 128
    %1419 = vxpose.xlu0.c.b16.cont [6/8] 0, 128
    %1420 = vxpose.xlu0.c.b16.cont [7/8] 0, 128
    %1421 = vxpose.xlu0.c.b16.end [8/8] 0, 128
    %v1422 = vpop.trf.xlu0
    %v1423 = vpop.trf.xlu0
    %v1424 = vpop.trf.xlu0
    %v1425 = vpop.trf.xlu0
    %v1426 = vpop.trf.xlu0
    %v1427 = vpop.trf.xlu0
    %v1428 = vpop.trf.xlu0
    %v1429 = vpop.trf.xlu0
    %1430 = vxpose.xlu0.c.b16.start [1/8] %v603, 128
    %1431 = vxpose.xlu0.c.b16.cont [2/8] 0, 128
    %1432 = vxpose.xlu0.c.b16.cont [3/8] 0, 128
    %1433 = vxpose.xlu0.c.b16.cont [4/8] 0, 128
    %1434 = vxpose.xlu0.c.b16.cont [5/8] 0, 128
    %1435 = vxpose.xlu0.c.b16.cont [6/8] 0, 128
    %1436 = vxpose.xlu0.c.b16.cont [7/8] 0, 128
    %1437 = vxpose.xlu0.c.b16.end [8/8] 0, 128
    %v1438 = vpop.trf.xlu0
    %v1439 = vpop.trf.xlu0
    %v1440 = vpop.trf.xlu0
    %v1441 = vpop.trf.xlu0
    %v1442 = vpop.trf.xlu0
    %v1443 = vpop.trf.xlu0
    %v1444 = vpop.trf.xlu0
    %v1445 = vpop.trf.xlu0
    %1446 = vxpose.xlu0.c.b16.start [1/8] %v604, 128
    %1447 = vxpose.xlu0.c.b16.cont [2/8] 0, 128
    %1448 = vxpose.xlu0.c.b16.cont [3/8] 0, 128
    %1449 = vxpose.xlu0.c.b16.cont [4/8] 0, 128
    %1450 = vxpose.xlu0.c.b16.cont [5/8] 0, 128
    %1451 = vxpose.xlu0.c.b16.cont [6/8] 0, 128
    %1452 = vxpose.xlu0.c.b16.cont [7/8] 0, 128
    %1453 = vxpose.xlu0.c.b16.end [8/8] 0, 128
    %v1454 = vpop.trf.xlu0
    %v1455 = vpop.trf.xlu0
    %v1456 = vpop.trf.xlu0
    %v1457 = vpop.trf.xlu0
    %v1458 = vpop.trf.xlu0
    %v1459 = vpop.trf.xlu0
    %v1460 = vpop.trf.xlu0
    %v1461 = vpop.trf.xlu0
    %v1462 = vcombine.low %v1342, %v1406
    %v1464 = vunpack.c.l.s4 1983009808
    %v1465 = vunpack.c.0.s8 %v1464
    %v1466 = vlaneseq
    %v1467 = vshrl.u32 %v1466, 7
    %v1468 = vsub.s32 %v1465, %v1467
    %v1469 = vrot.slane %v1462, %v1468
    %v1470 = vcombine.low %v1374, %v1438
    %v1472 = vunpack.c.l.s4 1983009808
    %v1473 = vunpack.c.0.s8 %v1472
    %v1474 = vlaneseq
    %v1475 = vshrl.u32 %v1474, 7
    %v1476 = vsub.s32 %v1473, %v1475
    %v1477 = vrot.slane %v1470, %v1476
    %v1478 = vcombine.low %v1469, %v1477
    %v1479 = vcombine.high %v1469, %v1477
    %v1481 = vunpack.c.l.s4 1934713408
    %v1482 = vunpack.c.0.s8 %v1481
    %v1483 = vlaneseq
    %v1484 = vshrl.u32 %v1483, 7
    %v1485 = vsub.s32 %v1482, %v1484
    %v1486 = vrot.slane %v1478, %v1485
    %v1488 = vunpack.c.l.s4 1934713408
    %v1489 = vunpack.c.0.s8 %v1488
    %v1490 = vlaneseq
    %v1491 = vshrl.u32 %v1490, 7
    %v1492 = vsub.s32 %v1489, %v1491
    %v1493 = vrot.slane %v1479, %v1492
    %v1494 = vcombine.high %v1486, 0
    %v1495 = vcombine.high %v1493, 0
    %v1496 = vcombine.low %v1358, %v1422
    %v1498 = vunpack.c.l.s4 1983009808
    %v1499 = vunpack.c.0.s8 %v1498
    %v1500 = vlaneseq
    %v1501 = vshrl.u32 %v1500, 7
    %v1502 = vsub.s32 %v1499, %v1501
    %v1503 = vrot.slane %v1496, %v1502
    %v1504 = vcombine.low %v1390, %v1454
    %v1506 = vunpack.c.l.s4 1983009808
    %v1507 = vunpack.c.0.s8 %v1506
    %v1508 = vlaneseq
    %v1509 = vshrl.u32 %v1508, 7
    %v1510 = vsub.s32 %v1507, %v1509
    %v1511 = vrot.slane %v1504, %v1510
    %v1512 = vcombine.low %v1503, %v1511
    %v1513 = vcombine.high %v1503, %v1511
    %v1515 = vunpack.c.l.s4 1934713408
    %v1516 = vunpack.c.0.s8 %v1515
    %v1517 = vlaneseq
    %v1518 = vshrl.u32 %v1517, 7
    %v1519 = vsub.s32 %v1516, %v1518
    %v1520 = vrot.slane %v1512, %v1519
    %v1522 = vunpack.c.l.s4 1934713408
    %v1523 = vunpack.c.0.s8 %v1522
    %v1524 = vlaneseq
    %v1525 = vshrl.u32 %v1524, 7
    %v1526 = vsub.s32 %v1523, %v1525
    %v1527 = vrot.slane %v1513, %v1526
    %v1528 = vcombine.high %v1520, 0
    %v1529 = vcombine.high %v1527, 0
    %v1532 = vpack.i.b16 %v1520, %v1486
    %v1534 = vshrl.u32 %v1486, 16
    %v1535 = vshrl.u32 %v1520, 16
    %v1536 = vpack.i.b16 %v1535, %v1534
    %v1540 = vpack.i.b16 %v1528, %v1494
    %v1542 = vshrl.u32 %v1494, 16
    %v1543 = vshrl.u32 %v1528, 16
    %v1544 = vpack.i.b16 %v1543, %v1542
    %v1548 = vpack.i.b16 %v1527, %v1493
    %v1550 = vshrl.u32 %v1493, 16
    %v1551 = vshrl.u32 %v1527, 16
    %v1552 = vpack.i.b16 %v1551, %v1550
    %v1556 = vpack.i.b16 %v1529, %v1495
    %v1558 = vshrl.u32 %v1495, 16
    %v1559 = vshrl.u32 %v1529, 16
    %v1560 = vpack.i.b16 %v1559, %v1558
    %1562 = vxpose.xlu0.c.b16.start [1/8] %v1532, 128
    %1563 = vxpose.xlu0.c.b16.cont [2/8] 0, 128
    %1564 = vxpose.xlu0.c.b16.cont [3/8] 0, 128
    %1565 = vxpose.xlu0.c.b16.cont [4/8] 0, 128
    %1566 = vxpose.xlu0.c.b16.cont [5/8] 0, 128
    %1567 = vxpose.xlu0.c.b16.cont [6/8] 0, 128
    %1568 = vxpose.xlu0.c.b16.cont [7/8] 0, 128
    %1569 = vxpose.xlu0.c.b16.end [8/8] 0, 128
    %v1570 = vpop.trf.xlu0
    %v1571 = vpop.trf.xlu0
    %v1572 = vpop.trf.xlu0
    %v1573 = vpop.trf.xlu0
    %v1574 = vpop.trf.xlu0
    %v1575 = vpop.trf.xlu0
    %v1576 = vpop.trf.xlu0
    %v1577 = vpop.trf.xlu0
    %1578 = vxpose.xlu0.c.b16.start [1/8] %v1536, 128
    %1579 = vxpose.xlu0.c.b16.cont [2/8] 0, 128
    %1580 = vxpose.xlu0.c.b16.cont [3/8] 0, 128
    %1581 = vxpose.xlu0.c.b16.cont [4/8] 0, 128
    %1582 = vxpose.xlu0.c.b16.cont [5/8] 0, 128
    %1583 = vxpose.xlu0.c.b16.cont [6/8] 0, 128
    %1584 = vxpose.xlu0.c.b16.cont [7/8] 0, 128
    %1585 = vxpose.xlu0.c.b16.end [8/8] 0, 128
    %v1586 = vpop.trf.xlu0
    %v1587 = vpop.trf.xlu0
    %v1588 = vpop.trf.xlu0
    %v1589 = vpop.trf.xlu0
    %v1590 = vpop.trf.xlu0
    %v1591 = vpop.trf.xlu0
    %v1592 = vpop.trf.xlu0
    %v1593 = vpop.trf.xlu0
    %1594 = vxpose.xlu0.c.b16.start [1/8] %v1540, 128
    %1595 = vxpose.xlu0.c.b16.cont [2/8] 0, 128
    %1596 = vxpose.xlu0.c.b16.cont [3/8] 0, 128
    %1597 = vxpose.xlu0.c.b16.cont [4/8] 0, 128
    %1598 = vxpose.xlu0.c.b16.cont [5/8] 0, 128
    %1599 = vxpose.xlu0.c.b16.cont [6/8] 0, 128
    %1600 = vxpose.xlu0.c.b16.cont [7/8] 0, 128
    %1601 = vxpose.xlu0.c.b16.end [8/8] 0, 128
    %v1602 = vpop.trf.xlu0
    %v1603 = vpop.trf.xlu0
    %v1604 = vpop.trf.xlu0
    %v1605 = vpop.trf.xlu0
    %v1606 = vpop.trf.xlu0
    %v1607 = vpop.trf.xlu0
    %v1608 = vpop.trf.xlu0
    %v1609 = vpop.trf.xlu0
    %1610 = vxpose.xlu0.c.b16.start [1/8] %v1544, 128
    %1611 = vxpose.xlu0.c.b16.cont [2/8] 0, 128
    %1612 = vxpose.xlu0.c.b16.cont [3/8] 0, 128
    %1613 = vxpose.xlu0.c.b16.cont [4/8] 0, 128
    %1614 = vxpose.xlu0.c.b16.cont [5/8] 0, 128
    %1615 = vxpose.xlu0.c.b16.cont [6/8] 0, 128
    %1616 = vxpose.xlu0.c.b16.cont [7/8] 0, 128
    %1617 = vxpose.xlu0.c.b16.end [8/8] 0, 128
    %v1618 = vpop.trf.xlu0
    %v1619 = vpop.trf.xlu0
    %v1620 = vpop.trf.xlu0
    %v1621 = vpop.trf.xlu0
    %v1622 = vpop.trf.xlu0
    %v1623 = vpop.trf.xlu0
    %v1624 = vpop.trf.xlu0
    %v1625 = vpop.trf.xlu0
    %1626 = vxpose.xlu0.c.b16.start [1/8] %v1548, 128
    %1627 = vxpose.xlu0.c.b16.cont [2/8] 0, 128
    %1628 = vxpose.xlu0.c.b16.cont [3/8] 0, 128
    %1629 = vxpose.xlu0.c.b16.cont [4/8] 0, 128
    %1630 = vxpose.xlu0.c.b16.cont [5/8] 0, 128
    %1631 = vxpose.xlu0.c.b16.cont [6/8] 0, 128
    %1632 = vxpose.xlu0.c.b16.cont [7/8] 0, 128
    %1633 = vxpose.xlu0.c.b16.end [8/8] 0, 128
    %v1634 = vpop.trf.xlu0
    %v1635 = vpop.trf.xlu0
    %v1636 = vpop.trf.xlu0
    %v1637 = vpop.trf.xlu0
    %v1638 = vpop.trf.xlu0
    %v1639 = vpop.trf.xlu0
    %v1640 = vpop.trf.xlu0
    %v1641 = vpop.trf.xlu0
    %1642 = vxpose.xlu0.c.b16.start [1/8] %v1552, 128
    %1643 = vxpose.xlu0.c.b16.cont [2/8] 0, 128
    %1644 = vxpose.xlu0.c.b16.cont [3/8] 0, 128
    %1645 = vxpose.xlu0.c.b16.cont [4/8] 0, 128
    %1646 = vxpose.xlu0.c.b16.cont [5/8] 0, 128
    %1647 = vxpose.xlu0.c.b16.cont [6/8] 0, 128
    %1648 = vxpose.xlu0.c.b16.cont [7/8] 0, 128
    %1649 = vxpose.xlu0.c.b16.end [8/8] 0, 128
    %v1650 = vpop.trf.xlu0
    %v1651 = vpop.trf.xlu0
    %v1652 = vpop.trf.xlu0
    %v1653 = vpop.trf.xlu0
    %v1654 = vpop.trf.xlu0
    %v1655 = vpop.trf.xlu0
    %v1656 = vpop.trf.xlu0
    %v1657 = vpop.trf.xlu0
    %1658 = vxpose.xlu0.c.b16.start [1/8] %v1556, 128
    %1659 = vxpose.xlu0.c.b16.cont [2/8] 0, 128
    %1660 = vxpose.xlu0.c.b16.cont [3/8] 0, 128
    %1661 = vxpose.xlu0.c.b16.cont [4/8] 0, 128
    %1662 = vxpose.xlu0.c.b16.cont [5/8] 0, 128
    %1663 = vxpose.xlu0.c.b16.cont [6/8] 0, 128
    %1664 = vxpose.xlu0.c.b16.cont [7/8] 0, 128
    %1665 = vxpose.xlu0.c.b16.end [8/8] 0, 128
    %v1666 = vpop.trf.xlu0
    %v1667 = vpop.trf.xlu0
    %v1668 = vpop.trf.xlu0
    %v1669 = vpop.trf.xlu0
    %v1670 = vpop.trf.xlu0
    %v1671 = vpop.trf.xlu0
    %v1672 = vpop.trf.xlu0
    %v1673 = vpop.trf.xlu0
    %1674 = vxpose.xlu0.c.b16.start [1/8] %v1560, 128
    %1675 = vxpose.xlu0.c.b16.cont [2/8] 0, 128
    %1676 = vxpose.xlu0.c.b16.cont [3/8] 0, 128
    %1677 = vxpose.xlu0.c.b16.cont [4/8] 0, 128
    %1678 = vxpose.xlu0.c.b16.cont [5/8] 0, 128
    %1679 = vxpose.xlu0.c.b16.cont [6/8] 0, 128
    %1680 = vxpose.xlu0.c.b16.cont [7/8] 0, 128
    %1681 = vxpose.xlu0.c.b16.end [8/8] 0, 128
    %v1682 = vpop.trf.xlu0
    %v1683 = vpop.trf.xlu0
    %v1684 = vpop.trf.xlu0
    %v1685 = vpop.trf.xlu0
    %v1686 = vpop.trf.xlu0
    %v1687 = vpop.trf.xlu0
    %v1688 = vpop.trf.xlu0
    %v1689 = vpop.trf.xlu0
    %v1690 = vcombine.low %v1570, %v1634
    %v1692 = vunpack.c.l.s4 1983009808
    %v1693 = vunpack.c.0.s8 %v1692
    %v1694 = vlaneseq
    %v1695 = vshrl.u32 %v1694, 7
    %v1696 = vsub.s32 %v1693, %v1695
    %v1697 = vrot.slane %v1690, %v1696
    %v1698 = vcombine.low %v1602, %v1666
    %v1700 = vunpack.c.l.s4 1983009808
    %v1701 = vunpack.c.0.s8 %v1700
    %v1702 = vlaneseq
    %v1703 = vshrl.u32 %v1702, 7
    %v1704 = vsub.s32 %v1701, %v1703
    %v1705 = vrot.slane %v1698, %v1704
    %v1706 = vcombine.low %v1697, %v1705
    %v1708 = vunpack.c.l.s4 1934713408
    %v1709 = vunpack.c.0.s8 %v1708
    %v1710 = vlaneseq
    %v1711 = vshrl.u32 %v1710, 7
    %v1712 = vsub.s32 %v1709, %v1711
    %v1713 = vrot.slane %v1706, %v1712
    %v1714 = vcombine.high %v1713, 0
    %v1715 = vcombine.low %v1586, %v1650
    %v1717 = vunpack.c.l.s4 1983009808
    %v1718 = vunpack.c.0.s8 %v1717
    %v1719 = vlaneseq
    %v1720 = vshrl.u32 %v1719, 7
    %v1721 = vsub.s32 %v1718, %v1720
    %v1722 = vrot.slane %v1715, %v1721
    %v1723 = vcombine.low %v1618, %v1682
    %v1725 = vunpack.c.l.s4 1983009808
    %v1726 = vunpack.c.0.s8 %v1725
    %v1727 = vlaneseq
    %v1728 = vshrl.u32 %v1727, 7
    %v1729 = vsub.s32 %v1726, %v1728
    %v1730 = vrot.slane %v1723, %v1729
    %v1731 = vcombine.low %v1722, %v1730
    %v1733 = vunpack.c.l.s4 1934713408
    %v1734 = vunpack.c.0.s8 %v1733
    %v1735 = vlaneseq
    %v1736 = vshrl.u32 %v1735, 7
    %v1737 = vsub.s32 %v1734, %v1736
    %v1738 = vrot.slane %v1731, %v1737
    %v1739 = vcombine.high %v1738, 0
    %v1742 = vpack.i.b16 %v1738, %v1713
    %v1743 = vshrl.u32 %v1713, 16
    %v1744 = vshrl.u32 %v1738, 16
    %v1745 = vpack.i.b16 %v1744, %v1743
    %v1748 = vpack.i.b16 %v1739, %v1714
    %v1749 = vshrl.u32 %v1714, 16
    %v1750 = vshrl.u32 %v1739, 16
    %v1751 = vpack.i.b16 %v1750, %v1749
    %v1753 = vsel %vm1085, %v1742, 0
    %v1756 = vsel %vm1085, %v1330, 0
    %1758 = vmatprep.subr.bf16.mxu0 0
    %1759 = vmatpush1.bf16.xpose.msra.mxu0 0
    %1760 = vmatprep.subr.bf16.mxu0 0
    %1761 = vmatpush1.bf16.xpose.msra.mxu0 0
    %1762 = vmatprep.subr.bf16.mxu0 0
    %1763 = vmatpush1.bf16.xpose.msra.mxu0 0
    %1764 = vmatprep.subr.bf16.mxu0 0
    %1765 = vmatpush1.bf16.xpose.msra.mxu0 0
    %1766 = vmatprep.subr.bf16.mxu0 0
    %1767 = vmatpush1.bf16.xpose.msra.mxu0 0
    %1768 = vmatprep.subr.bf16.mxu0 0
    %1769 = vmatpush1.bf16.xpose.msra.mxu0 0
    %1770 = vmatprep.subr.bf16.mxu0 0
    %1771 = vmatpush1.bf16.xpose.msra.mxu0 0
    %1772 = vmatprep.subr.bf16.mxu0 0
    %1773 = vmatpush1.bf16.xpose.msra.mxu0 %v1756
    %1774 = vmatprep.subr.bf16.mxu0 0
    %1775 = vmatpush2.bf16.xpose.msra.mxu0 0
    %1776 = vmatprep.subr.bf16.mxu0 0
    %1777 = vmatpush2.bf16.xpose.msra.mxu0 0
    %1778 = vmatprep.subr.bf16.mxu0 0
    %1779 = vmatpush2.bf16.xpose.msra.mxu0 0
    %1780 = vmatprep.subr.bf16.mxu0 0
    %1781 = vmatpush2.bf16.xpose.msra.mxu0 0
    %1782 = vmatprep.subr.bf16.mxu0 0
    %1783 = vmatpush2.bf16.xpose.msra.mxu0 0
    %1784 = vmatprep.subr.bf16.mxu0 0
    %1785 = vmatpush2.bf16.xpose.msra.mxu0 0
    %1786 = vmatprep.subr.bf16.mxu0 0
    %1787 = vmatpush2.bf16.xpose.msra.mxu0 0
    %1788 = vmatprep.subr.bf16.mxu0 0
    %1789 = vmatpush2.bf16.xpose.msra.mxu0 0
    %1790 = vmatprep.mubr.bf16.mxu0 0
    %1791 = vmatmul.mubr.bf16.gmra.mxu0 %v1753
    %v1792 = vpop.f32.mrf.mxu0
    %v1793 = vadd.f32 0.0, %v1792
    %v1794 = vpop.f32.mrf.mxu0
    %v1795 = vpop.f32.mrf.mxu0
    %v1796 = vpop.f32.mrf.mxu0
    %1797 = vdwg.mxu0
    %v1799 = vsel %vm1085, %v1745, 0
    %v1802 = vsel %vm1085, %v1331, 0
    %1804 = vmatprep.subr.bf16.mxu0 0
    %1805 = vmatpush1.bf16.xpose.msra.mxu0 0
    %1806 = vmatprep.subr.bf16.mxu0 0
    %1807 = vmatpush1.bf16.xpose.msra.mxu0 0
    %1808 = vmatprep.subr.bf16.mxu0 0
    %1809 = vmatpush1.bf16.xpose.msra.mxu0 0
    %1810 = vmatprep.subr.bf16.mxu0 0
    %1811 = vmatpush1.bf16.xpose.msra.mxu0 0
    %1812 = vmatprep.subr.bf16.mxu0 0
    %1813 = vmatpush1.bf16.xpose.msra.mxu0 0
    %1814 = vmatprep.subr.bf16.mxu0 0
    %1815 = vmatpush1.bf16.xpose.msra.mxu0 0
    %1816 = vmatprep.subr.bf16.mxu0 0
    %1817 = vmatpush1.bf16.xpose.msra.mxu0 0
    %1818 = vmatprep.subr.bf16.mxu0 0
    %1819 = vmatpush1.bf16.xpose.msra.mxu0 %v1802
    %1820 = vmatprep.subr.bf16.mxu0 0
    %1821 = vmatpush2.bf16.xpose.msra.mxu0 0
    %1822 = vmatprep.subr.bf16.mxu0 0
    %1823 = vmatpush2.bf16.xpose.msra.mxu0 0
    %1824 = vmatprep.subr.bf16.mxu0 0
    %1825 = vmatpush2.bf16.xpose.msra.mxu0 0
    %1826 = vmatprep.subr.bf16.mxu0 0
    %1827 = vmatpush2.bf16.xpose.msra.mxu0 0
    %1828 = vmatprep.subr.bf16.mxu0 0
    %1829 = vmatpush2.bf16.xpose.msra.mxu0 0
    %1830 = vmatprep.subr.bf16.mxu0 0
    %1831 = vmatpush2.bf16.xpose.msra.mxu0 0
    %1832 = vmatprep.subr.bf16.mxu0 0
    %1833 = vmatpush2.bf16.xpose.msra.mxu0 0
    %1834 = vmatprep.subr.bf16.mxu0 0
    %1835 = vmatpush2.bf16.xpose.msra.mxu0 0
    %1836 = vmatprep.mubr.bf16.mxu0 0
    %1837 = vmatmul.mubr.bf16.gmra.mxu0 %v1799
    %v1838 = vpop.f32.mrf.mxu0
    %v1839 = vadd.f32 0.0, %v1838
    %v1840 = vpop.f32.mrf.mxu0
    %v1841 = vpop.f32.mrf.mxu0
    %v1842 = vpop.f32.mrf.mxu0
    %1843 = vdwg.mxu0
    %v1845 = vsel %vm1085, %v1748, 0
    %v1848 = vsel %vm1085, %v1332, 0
    %1850 = vmatprep.subr.bf16.mxu0 0
    %1851 = vmatpush1.bf16.xpose.msra.mxu0 0
    %1852 = vmatprep.subr.bf16.mxu0 0
    %1853 = vmatpush1.bf16.xpose.msra.mxu0 0
    %1854 = vmatprep.subr.bf16.mxu0 0
    %1855 = vmatpush1.bf16.xpose.msra.mxu0 0
    %1856 = vmatprep.subr.bf16.mxu0 0
    %1857 = vmatpush1.bf16.xpose.msra.mxu0 0
    %1858 = vmatprep.subr.bf16.mxu0 0
    %1859 = vmatpush1.bf16.xpose.msra.mxu0 0
    %1860 = vmatprep.subr.bf16.mxu0 0
    %1861 = vmatpush1.bf16.xpose.msra.mxu0 0
    %1862 = vmatprep.subr.bf16.mxu0 0
    %1863 = vmatpush1.bf16.xpose.msra.mxu0 0
    %1864 = vmatprep.subr.bf16.mxu0 0
    %1865 = vmatpush1.bf16.xpose.msra.mxu0 %v1848
    %1866 = vmatprep.subr.bf16.mxu0 0
    %1867 = vmatpush2.bf16.xpose.msra.mxu0 0
    %1868 = vmatprep.subr.bf16.mxu0 0
    %1869 = vmatpush2.bf16.xpose.msra.mxu0 0
    %1870 = vmatprep.subr.bf16.mxu0 0
    %1871 = vmatpush2.bf16.xpose.msra.mxu0 0
    %1872 = vmatprep.subr.bf16.mxu0 0
    %1873 = vmatpush2.bf16.xpose.msra.mxu0 0
    %1874 = vmatprep.subr.bf16.mxu0 0
    %1875 = vmatpush2.bf16.xpose.msra.mxu0 0
    %1876 = vmatprep.subr.bf16.mxu0 0
    %1877 = vmatpush2.bf16.xpose.msra.mxu0 0
    %1878 = vmatprep.subr.bf16.mxu0 0
    %1879 = vmatpush2.bf16.xpose.msra.mxu0 0
    %1880 = vmatprep.subr.bf16.mxu0 0
    %1881 = vmatpush2.bf16.xpose.msra.mxu0 0
    %1882 = vmatprep.mubr.bf16.mxu0 0
    %1883 = vmatmul.mubr.bf16.gmra.mxu0 %v1845
    %v1884 = vpop.f32.mrf.mxu0
    %v1885 = vadd.f32 0.0, %v1884
    %v1886 = vpop.f32.mrf.mxu0
    %v1887 = vpop.f32.mrf.mxu0
    %v1888 = vpop.f32.mrf.mxu0
    %1889 = vdwg.mxu0
    %v1891 = vsel %vm1085, %v1751, 0
    %v1894 = vsel %vm1085, %v1333, 0
    %1896 = vmatprep.subr.bf16.mxu0 0
    %1897 = vmatpush1.bf16.xpose.msra.mxu0 0
    %1898 = vmatprep.subr.bf16.mxu0 0
    %1899 = vmatpush1.bf16.xpose.msra.mxu0 0
    %1900 = vmatprep.subr.bf16.mxu0 0
    %1901 = vmatpush1.bf16.xpose.msra.mxu0 0
    %1902 = vmatprep.subr.bf16.mxu0 0
    %1903 = vmatpush1.bf16.xpose.msra.mxu0 0
    %1904 = vmatprep.subr.bf16.mxu0 0
    %1905 = vmatpush1.bf16.xpose.msra.mxu0 0
    %1906 = vmatprep.subr.bf16.mxu0 0
    %1907 = vmatpush1.bf16.xpose.msra.mxu0 0
    %1908 = vmatprep.subr.bf16.mxu0 0
    %1909 = vmatpush1.bf16.xpose.msra.mxu0 0
    %1910 = vmatprep.subr.bf16.mxu0 0
    %1911 = vmatpush1.bf16.xpose.msra.mxu0 %v1894
    %1912 = vmatprep.subr.bf16.mxu0 0
    %1913 = vmatpush2.bf16.xpose.msra.mxu0 0
    %1914 = vmatprep.subr.bf16.mxu0 0
    %1915 = vmatpush2.bf16.xpose.msra.mxu0 0
    %1916 = vmatprep.subr.bf16.mxu0 0
    %1917 = vmatpush2.bf16.xpose.msra.mxu0 0
    %1918 = vmatprep.subr.bf16.mxu0 0
    %1919 = vmatpush2.bf16.xpose.msra.mxu0 0
    %1920 = vmatprep.subr.bf16.mxu0 0
    %1921 = vmatpush2.bf16.xpose.msra.mxu0 0
    %1922 = vmatprep.subr.bf16.mxu0 0
    %1923 = vmatpush2.bf16.xpose.msra.mxu0 0
    %1924 = vmatprep.subr.bf16.mxu0 0
    %1925 = vmatpush2.bf16.xpose.msra.mxu0 0
    %1926 = vmatprep.subr.bf16.mxu0 0
    %1927 = vmatpush2.bf16.xpose.msra.mxu0 0
    %1928 = vmatprep.mubr.bf16.mxu0 0
    %1929 = vmatmul.mubr.bf16.gmra.mxu0 %v1891
    %v1930 = vpop.f32.mrf.mxu0
    %v1931 = vadd.f32 0.0, %v1930
    %v1932 = vpop.f32.mrf.mxu0
    %v1933 = vpop.f32.mrf.mxu0
    %v1934 = vpop.f32.mrf.mxu0
    %1935 = vdwg.mxu0
    %1936 = vxpose.xlu0.b32.start [1/16] %v1793, 128
    %1937 = vxpose.xlu0.b32.cont [2/16] 0.0, 128
    %1938 = vxpose.xlu0.b32.cont [3/16] 0.0, 128
    %1939 = vxpose.xlu0.b32.cont [4/16] 0.0, 128
    %1940 = vxpose.xlu0.b32.cont [5/16] 0.0, 128
    %1941 = vxpose.xlu0.b32.cont [6/16] 0.0, 128
    %1942 = vxpose.xlu0.b32.cont [7/16] 0.0, 128
    %1943 = vxpose.xlu0.b32.cont [8/16] 0.0, 128
    %1944 = vxpose.xlu0.b32.cont [9/16] 0.0, 128
    %1945 = vxpose.xlu0.b32.cont [10/16] 0.0, 128
    %1946 = vxpose.xlu0.b32.cont [11/16] 0.0, 128
    %1947 = vxpose.xlu0.b32.cont [12/16] 0.0, 128
    %1948 = vxpose.xlu0.b32.cont [13/16] 0.0, 128
    %1949 = vxpose.xlu0.b32.cont [14/16] 0.0, 128
    %1950 = vxpose.xlu0.b32.cont [15/16] 0.0, 128
    %1951 = vxpose.xlu0.b32.end [16/16] 0.0, 128
    %v1952 = vpop.trf.xlu0
    %v1953 = vpop.trf.xlu0
    %v1954 = vpop.trf.xlu0
    %v1955 = vpop.trf.xlu0
    %v1956 = vpop.trf.xlu0
    %v1957 = vpop.trf.xlu0
    %v1958 = vpop.trf.xlu0
    %v1959 = vpop.trf.xlu0
    %v1960 = vpop.trf.xlu0
    %v1961 = vpop.trf.xlu0
    %v1962 = vpop.trf.xlu0
    %v1963 = vpop.trf.xlu0
    %v1964 = vpop.trf.xlu0
    %v1965 = vpop.trf.xlu0
    %v1966 = vpop.trf.xlu0
    %v1967 = vpop.trf.xlu0
    %1968 = vxpose.xlu0.b32.start [1/16] %v1839, 128
    %1969 = vxpose.xlu0.b32.cont [2/16] 0.0, 128
    %1970 = vxpose.xlu0.b32.cont [3/16] 0.0, 128
    %1971 = vxpose.xlu0.b32.cont [4/16] 0.0, 128
    %1972 = vxpose.xlu0.b32.cont [5/16] 0.0, 128
    %1973 = vxpose.xlu0.b32.cont [6/16] 0.0, 128
    %1974 = vxpose.xlu0.b32.cont [7/16] 0.0, 128
    %1975 = vxpose.xlu0.b32.cont [8/16] 0.0, 128
    %1976 = vxpose.xlu0.b32.cont [9/16] 0.0, 128
    %1977 = vxpose.xlu0.b32.cont [10/16] 0.0, 128
    %1978 = vxpose.xlu0.b32.cont [11/16] 0.0, 128
    %1979 = vxpose.xlu0.b32.cont [12/16] 0.0, 128
    %1980 = vxpose.xlu0.b32.cont [13/16] 0.0, 128
    %1981 = vxpose.xlu0.b32.cont [14/16] 0.0, 128
    %1982 = vxpose.xlu0.b32.cont [15/16] 0.0, 128
    %1983 = vxpose.xlu0.b32.end [16/16] 0.0, 128
    %v1984 = vpop.trf.xlu0
    %v1985 = vpop.trf.xlu0
    %v1986 = vpop.trf.xlu0
    %v1987 = vpop.trf.xlu0
    %v1988 = vpop.trf.xlu0
    %v1989 = vpop.trf.xlu0
    %v1990 = vpop.trf.xlu0
    %v1991 = vpop.trf.xlu0
    %v1992 = vpop.trf.xlu0
    %v1993 = vpop.trf.xlu0
    %v1994 = vpop.trf.xlu0
    %v1995 = vpop.trf.xlu0
    %v1996 = vpop.trf.xlu0
    %v1997 = vpop.trf.xlu0
    %v1998 = vpop.trf.xlu0
    %v1999 = vpop.trf.xlu0
    %2000 = vxpose.xlu0.b32.start [1/16] %v1885, 128
    %2001 = vxpose.xlu0.b32.cont [2/16] 0.0, 128
    %2002 = vxpose.xlu0.b32.cont [3/16] 0.0, 128
    %2003 = vxpose.xlu0.b32.cont [4/16] 0.0, 128
    %2004 = vxpose.xlu0.b32.cont [5/16] 0.0, 128
    %2005 = vxpose.xlu0.b32.cont [6/16] 0.0, 128
    %2006 = vxpose.xlu0.b32.cont [7/16] 0.0, 128
    %2007 = vxpose.xlu0.b32.cont [8/16] 0.0, 128
    %2008 = vxpose.xlu0.b32.cont [9/16] 0.0, 128
    %2009 = vxpose.xlu0.b32.cont [10/16] 0.0, 128
    %2010 = vxpose.xlu0.b32.cont [11/16] 0.0, 128
    %2011 = vxpose.xlu0.b32.cont [12/16] 0.0, 128
    %2012 = vxpose.xlu0.b32.cont [13/16] 0.0, 128
    %2013 = vxpose.xlu0.b32.cont [14/16] 0.0, 128
    %2014 = vxpose.xlu0.b32.cont [15/16] 0.0, 128
    %2015 = vxpose.xlu0.b32.end [16/16] 0.0, 128
    %v2016 = vpop.trf.xlu0
    %v2017 = vpop.trf.xlu0
    %v2018 = vpop.trf.xlu0
    %v2019 = vpop.trf.xlu0
    %v2020 = vpop.trf.xlu0
    %v2021 = vpop.trf.xlu0
    %v2022 = vpop.trf.xlu0
    %v2023 = vpop.trf.xlu0
    %v2024 = vpop.trf.xlu0
    %v2025 = vpop.trf.xlu0
    %v2026 = vpop.trf.xlu0
    %v2027 = vpop.trf.xlu0
    %v2028 = vpop.trf.xlu0
    %v2029 = vpop.trf.xlu0
    %v2030 = vpop.trf.xlu0
    %v2031 = vpop.trf.xlu0
    %2032 = vxpose.xlu0.b32.start [1/16] %v1931, 128
    %2033 = vxpose.xlu0.b32.cont [2/16] 0.0, 128
    %2034 = vxpose.xlu0.b32.cont [3/16] 0.0, 128
    %2035 = vxpose.xlu0.b32.cont [4/16] 0.0, 128
    %2036 = vxpose.xlu0.b32.cont [5/16] 0.0, 128
    %2037 = vxpose.xlu0.b32.cont [6/16] 0.0, 128
    %2038 = vxpose.xlu0.b32.cont [7/16] 0.0, 128
    %2039 = vxpose.xlu0.b32.cont [8/16] 0.0, 128
    %2040 = vxpose.xlu0.b32.cont [9/16] 0.0, 128
    %2041 = vxpose.xlu0.b32.cont [10/16] 0.0, 128
    %2042 = vxpose.xlu0.b32.cont [11/16] 0.0, 128
    %2043 = vxpose.xlu0.b32.cont [12/16] 0.0, 128
    %2044 = vxpose.xlu0.b32.cont [13/16] 0.0, 128
    %2045 = vxpose.xlu0.b32.cont [14/16] 0.0, 128
    %2046 = vxpose.xlu0.b32.cont [15/16] 0.0, 128
    %2047 = vxpose.xlu0.b32.end [16/16] 0.0, 128
    %v2048 = vpop.trf.xlu0
    %v2049 = vpop.trf.xlu0
    %v2050 = vpop.trf.xlu0
    %v2051 = vpop.trf.xlu0
    %v2052 = vpop.trf.xlu0
    %v2053 = vpop.trf.xlu0
    %v2054 = vpop.trf.xlu0
    %v2055 = vpop.trf.xlu0
    %v2056 = vpop.trf.xlu0
    %v2057 = vpop.trf.xlu0
    %v2058 = vpop.trf.xlu0
    %v2059 = vpop.trf.xlu0
    %v2060 = vpop.trf.xlu0
    %v2061 = vpop.trf.xlu0
    %v2062 = vpop.trf.xlu0
    %v2063 = vpop.trf.xlu0
    %v2064 = vcombine.low %v1952, %v2016
    %v2065 = vcombine.high %v1952, %v2016
    %v2067 = vunpack.c.l.s4 1983009808
    %v2068 = vunpack.c.0.s8 %v2067
    %v2069 = vlaneseq
    %v2070 = vshrl.u32 %v2069, 7
    %v2071 = vsub.s32 %v2068, %v2070
    %v2072 = vrot.slane %v2064, %v2071
    %v2074 = vunpack.c.l.s4 1983009808
    %v2075 = vunpack.c.0.s8 %v2074
    %v2076 = vlaneseq
    %v2077 = vshrl.u32 %v2076, 7
    %v2078 = vsub.s32 %v2075, %v2077
    %v2079 = vrot.slane %v2065, %v2078
    %v2080 = vcombine.low %v1984, %v2048
    %v2081 = vcombine.high %v1984, %v2048
    %v2083 = vunpack.c.l.s4 1983009808
    %v2084 = vunpack.c.0.s8 %v2083
    %v2085 = vlaneseq
    %v2086 = vshrl.u32 %v2085, 7
    %v2087 = vsub.s32 %v2084, %v2086
    %v2088 = vrot.slane %v2080, %v2087
    %v2090 = vunpack.c.l.s4 1983009808
    %v2091 = vunpack.c.0.s8 %v2090
    %v2092 = vlaneseq
    %v2093 = vshrl.u32 %v2092, 7
    %v2094 = vsub.s32 %v2091, %v2093
    %v2095 = vrot.slane %v2081, %v2094
    %v2096 = vcombine.low %v2072, %v2088
    %v2097 = vcombine.high %v2072, %v2088
    %v2099 = vunpack.c.l.s4 1934713408
    %v2100 = vunpack.c.0.s8 %v2099
    %v2101 = vlaneseq
    %v2102 = vshrl.u32 %v2101, 7
    %v2103 = vsub.s32 %v2100, %v2102
    %v2104 = vrot.slane %v2096, %v2103
    %v2106 = vunpack.c.l.s4 1934713408
    %v2107 = vunpack.c.0.s8 %v2106
    %v2108 = vlaneseq
    %v2109 = vshrl.u32 %v2108, 7
    %v2110 = vsub.s32 %v2107, %v2109
    %v2111 = vrot.slane %v2097, %v2110
    %v2112 = vcombine.low %v2079, %v2095
    %v2113 = vcombine.high %v2079, %v2095
    %v2115 = vunpack.c.l.s4 1934713408
    %v2116 = vunpack.c.0.s8 %v2115
    %v2117 = vlaneseq
    %v2118 = vshrl.u32 %v2117, 7
    %v2119 = vsub.s32 %v2116, %v2118
    %v2120 = vrot.slane %v2112, %v2119
    %v2122 = vunpack.c.l.s4 1934713408
    %v2123 = vunpack.c.0.s8 %v2122
    %v2124 = vlaneseq
    %v2125 = vshrl.u32 %v2124, 7
    %v2126 = vsub.s32 %v2123, %v2125
    %v2127 = vrot.slane %v2113, %v2126
    %v2128 = vcombine.high %v2104, 0.0
    %v2129 = vcombine.high %v2111, 0.0
    %v2130 = vcombine.high %v2120, 0.0
    %v2131 = vcombine.high %v2127, 0.0
    %v2132 = vcombine.low %v2104, %v2111
    %v2134 = vunpack.c.l.s4 1983009808
    %v2135 = vunpack.c.0.s8 %v2134
    %v2136 = vlaneseq
    %v2137 = vshrl.u32 %v2136, 7
    %v2138 = vsub.s32 %v2135, %v2137
    %v2139 = vrot.slane %v2132, %v2138
    %v2140 = vcombine.low %v2128, %v2129
    %v2142 = vunpack.c.l.s4 1983009808
    %v2143 = vunpack.c.0.s8 %v2142
    %v2144 = vlaneseq
    %v2145 = vshrl.u32 %v2144, 7
    %v2146 = vsub.s32 %v2143, %v2145
    %v2147 = vrot.slane %v2140, %v2146
    %v2148 = vcombine.low %v2120, %v2127
    %v2150 = vunpack.c.l.s4 1983009808
    %v2151 = vunpack.c.0.s8 %v2150
    %v2152 = vlaneseq
    %v2153 = vshrl.u32 %v2152, 7
    %v2154 = vsub.s32 %v2151, %v2153
    %v2155 = vrot.slane %v2148, %v2154
    %v2156 = vcombine.low %v2130, %v2131
    %v2158 = vunpack.c.l.s4 1983009808
    %v2159 = vunpack.c.0.s8 %v2158
    %v2160 = vlaneseq
    %v2161 = vshrl.u32 %v2160, 7
    %v2162 = vsub.s32 %v2159, %v2161
    %v2163 = vrot.slane %v2156, %v2162
    %v2164 = vcombine.low %v2139, %v2147
    %v2165 = vcombine.high %v2139, %v2147
    %v2167 = vunpack.c.l.s4 1934713408
    %v2168 = vunpack.c.0.s8 %v2167
    %v2169 = vlaneseq
    %v2170 = vshrl.u32 %v2169, 7
    %v2171 = vsub.s32 %v2168, %v2170
    %v2172 = vrot.slane %v2164, %v2171
    %v2174 = vunpack.c.l.s4 1934713408
    %v2175 = vunpack.c.0.s8 %v2174
    %v2176 = vlaneseq
    %v2177 = vshrl.u32 %v2176, 7
    %v2178 = vsub.s32 %v2175, %v2177
    %v2179 = vrot.slane %v2165, %v2178
    %v2180 = vcombine.low %v2155, %v2163
    %v2181 = vcombine.high %v2155, %v2163
    %v2183 = vunpack.c.l.s4 1934713408
    %v2184 = vunpack.c.0.s8 %v2183
    %v2185 = vlaneseq
    %v2186 = vshrl.u32 %v2185, 7
    %v2187 = vsub.s32 %v2184, %v2186
    %v2188 = vrot.slane %v2180, %v2187
    %v2190 = vunpack.c.l.s4 1934713408
    %v2191 = vunpack.c.0.s8 %v2190
    %v2192 = vlaneseq
    %v2193 = vshrl.u32 %v2192, 7
    %v2194 = vsub.s32 %v2191, %v2193
    %v2195 = vrot.slane %v2181, %v2194
    %v2196 = vcombine.low %v2172, %v2188
    %v2197 = vcombine.high %v2172, %v2188
    %v2198 = vcombine.low %v2179, %v2195
    %v2199 = vcombine.high %v2179, %v2195
    %2201 = vrot.lane.b32.xlu0 %v2197, 8
    %v2202 = vpop.permute.xlu0 %2201
    %2205 = vrot.lane.b32.xlu0 %v2198, 16
    %v2206 = vpop.permute.xlu0 %2205
    %2209 = vrot.lane.b32.xlu0 %v2199, 24
    %v2210 = vpop.permute.xlu0 %2209
    %v2212 = vsel %vm1085, %v2196, %v2202
    %vm2213 = vcmask 130048
    %v2214 = vsel %vm2213, %v2212, %v2206
    %vm2215 = vcmask 195584
    %v2216 = vsel %vm2215, %v2214, %v2210
    %2218 = vrot.lane.b32.xlu0 %v216, 120
    %v2219 = vpop.permute.xlu0 %2218
    %2221 = vrot.lane.b32.xlu0 %v216, 112
    %v2222 = vpop.permute.xlu0 %2221
    %2224 = vrot.lane.b32.xlu0 %v216, 104
    %v2225 = vpop.permute.xlu0 %2224
    %v2227 = vcombine.low %v216, %v2222
    %v2228 = vcombine.high %v216, %v2222
    %v2230 = vunpack.c.l.s4 1983009808
    %v2231 = vunpack.c.0.s8 %v2230
    %v2232 = vlaneseq
    %v2233 = vshrl.u32 %v2232, 7
    %v2234 = vsub.s32 %v2231, %v2233
    %v2235 = vrot.slane %v2227, %v2234
    %v2237 = vunpack.c.l.s4 1983009808
    %v2238 = vunpack.c.0.s8 %v2237
    %v2239 = vlaneseq
    %v2240 = vshrl.u32 %v2239, 7
    %v2241 = vsub.s32 %v2238, %v2240
    %v2242 = vrot.slane %v2228, %v2241
    %v2243 = vcombine.low %v2219, %v2225
    %v2244 = vcombine.high %v2219, %v2225
    %v2246 = vunpack.c.l.s4 1983009808
    %v2247 = vunpack.c.0.s8 %v2246
    %v2248 = vlaneseq
    %v2249 = vshrl.u32 %v2248, 7
    %v2250 = vsub.s32 %v2247, %v2249
    %v2251 = vrot.slane %v2243, %v2250
    %v2253 = vunpack.c.l.s4 1983009808
    %v2254 = vunpack.c.0.s8 %v2253
    %v2255 = vlaneseq
    %v2256 = vshrl.u32 %v2255, 7
    %v2257 = vsub.s32 %v2254, %v2256
    %v2258 = vrot.slane %v2244, %v2257
    %v2259 = vcombine.low %v2235, %v2251
    %v2260 = vcombine.high %v2235, %v2251
    %v2262 = vunpack.c.l.s4 1934713408
    %v2263 = vunpack.c.0.s8 %v2262
    %v2264 = vlaneseq
    %v2265 = vshrl.u32 %v2264, 7
    %v2266 = vsub.s32 %v2263, %v2265
    %v2267 = vrot.slane %v2259, %v2266
    %v2269 = vunpack.c.l.s4 1934713408
    %v2270 = vunpack.c.0.s8 %v2269
    %v2271 = vlaneseq
    %v2272 = vshrl.u32 %v2271, 7
    %v2273 = vsub.s32 %v2270, %v2272
    %v2274 = vrot.slane %v2260, %v2273
    %v2275 = vcombine.low %v2242, %v2258
    %v2276 = vcombine.high %v2242, %v2258
    %v2278 = vunpack.c.l.s4 1934713408
    %v2279 = vunpack.c.0.s8 %v2278
    %v2280 = vlaneseq
    %v2281 = vshrl.u32 %v2280, 7
    %v2282 = vsub.s32 %v2279, %v2281
    %v2283 = vrot.slane %v2275, %v2282
    %v2285 = vunpack.c.l.s4 1934713408
    %v2286 = vunpack.c.0.s8 %v2285
    %v2287 = vlaneseq
    %v2288 = vshrl.u32 %v2287, 7
    %v2289 = vsub.s32 %v2286, %v2288
    %v2290 = vrot.slane %v2276, %v2289
    %v2291 = vcombine.high %v2267, 0.0
    %v2292 = vcombine.high %v2274, 0.0
    %v2293 = vcombine.high %v2283, 0.0
    %v2294 = vcombine.high %v2290, 0.0
    %v2295 = vpack.c.bf16 %v2267, %v2267
    %v2296 = vpack.c.bf16 %v2291, %v2291
    %v2297 = vpack.c.bf16 %v2274, %v2274
    %v2298 = vpack.c.bf16 %v2292, %v2292
    %v2299 = vpack.c.bf16 %v2283, %v2283
    %v2300 = vpack.c.bf16 %v2293, %v2293
    %v2301 = vpack.c.bf16 %v2290, %v2290
    %v2302 = vpack.c.bf16 %v2294, %v2294
    %2304 = vrot.lane.b32.xlu0 %v280, 120
    %v2305 = vpop.permute.xlu0 %2304
    %2307 = vrot.lane.b32.xlu0 %v280, 112
    %v2308 = vpop.permute.xlu0 %2307
    %2310 = vrot.lane.b32.xlu0 %v280, 104
    %v2311 = vpop.permute.xlu0 %2310
    %v2313 = vcombine.low %v280, %v2308
    %v2314 = vcombine.high %v280, %v2308
    %v2316 = vunpack.c.l.s4 1983009808
    %v2317 = vunpack.c.0.s8 %v2316
    %v2318 = vlaneseq
    %v2319 = vshrl.u32 %v2318, 7
    %v2320 = vsub.s32 %v2317, %v2319
    %v2321 = vrot.slane %v2313, %v2320
    %v2323 = vunpack.c.l.s4 1983009808
    %v2324 = vunpack.c.0.s8 %v2323
    %v2325 = vlaneseq
    %v2326 = vshrl.u32 %v2325, 7
    %v2327 = vsub.s32 %v2324, %v2326
    %v2328 = vrot.slane %v2314, %v2327
    %v2329 = vcombine.low %v2305, %v2311
    %v2330 = vcombine.high %v2305, %v2311
    %v2332 = vunpack.c.l.s4 1983009808
    %v2333 = vunpack.c.0.s8 %v2332
    %v2334 = vlaneseq
    %v2335 = vshrl.u32 %v2334, 7
    %v2336 = vsub.s32 %v2333, %v2335
    %v2337 = vrot.slane %v2329, %v2336
    %v2339 = vunpack.c.l.s4 1983009808
    %v2340 = vunpack.c.0.s8 %v2339
    %v2341 = vlaneseq
    %v2342 = vshrl.u32 %v2341, 7
    %v2343 = vsub.s32 %v2340, %v2342
    %v2344 = vrot.slane %v2330, %v2343
    %v2345 = vcombine.low %v2321, %v2337
    %v2346 = vcombine.high %v2321, %v2337
    %v2348 = vunpack.c.l.s4 1934713408
    %v2349 = vunpack.c.0.s8 %v2348
    %v2350 = vlaneseq
    %v2351 = vshrl.u32 %v2350, 7
    %v2352 = vsub.s32 %v2349, %v2351
    %v2353 = vrot.slane %v2345, %v2352
    %v2355 = vunpack.c.l.s4 1934713408
    %v2356 = vunpack.c.0.s8 %v2355
    %v2357 = vlaneseq
    %v2358 = vshrl.u32 %v2357, 7
    %v2359 = vsub.s32 %v2356, %v2358
    %v2360 = vrot.slane %v2346, %v2359
    %v2361 = vcombine.low %v2328, %v2344
    %v2362 = vcombine.high %v2328, %v2344
    %v2364 = vunpack.c.l.s4 1934713408
    %v2365 = vunpack.c.0.s8 %v2364
    %v2366 = vlaneseq
    %v2367 = vshrl.u32 %v2366, 7
    %v2368 = vsub.s32 %v2365, %v2367
    %v2369 = vrot.slane %v2361, %v2368
    %v2371 = vunpack.c.l.s4 1934713408
    %v2372 = vunpack.c.0.s8 %v2371
    %v2373 = vlaneseq
    %v2374 = vshrl.u32 %v2373, 7
    %v2375 = vsub.s32 %v2372, %v2374
    %v2376 = vrot.slane %v2362, %v2375
    %v2377 = vcombine.high %v2353, 0.0
    %v2378 = vcombine.high %v2360, 0.0
    %v2379 = vcombine.high %v2369, 0.0
    %v2380 = vcombine.high %v2376, 0.0
    %v2381 = vpack.c.bf16 %v2353, %v2353
    %v2382 = vpack.c.bf16 %v2377, %v2377
    %v2383 = vpack.c.bf16 %v2360, %v2360
    %v2384 = vpack.c.bf16 %v2378, %v2378
    %v2385 = vpack.c.bf16 %v2369, %v2369
    %v2386 = vpack.c.bf16 %v2379, %v2379
    %v2387 = vpack.c.bf16 %v2376, %v2376
    %v2388 = vpack.c.bf16 %v2380, %v2380
    %2390 = vrot.lane.b32.xlu0 %v344, 120
    %v2391 = vpop.permute.xlu0 %2390
    %2393 = vrot.lane.b32.xlu0 %v344, 112
    %v2394 = vpop.permute.xlu0 %2393
    %2396 = vrot.lane.b32.xlu0 %v344, 104
    %v2397 = vpop.permute.xlu0 %2396
    %v2399 = vcombine.low %v344, %v2394
    %v2400 = vcombine.high %v344, %v2394
    %v2402 = vunpack.c.l.s4 1983009808
    %v2403 = vunpack.c.0.s8 %v2402
    %v2404 = vlaneseq
    %v2405 = vshrl.u32 %v2404, 7
    %v2406 = vsub.s32 %v2403, %v2405
    %v2407 = vrot.slane %v2399, %v2406
    %v2409 = vunpack.c.l.s4 1983009808
    %v2410 = vunpack.c.0.s8 %v2409
    %v2411 = vlaneseq
    %v2412 = vshrl.u32 %v2411, 7
    %v2413 = vsub.s32 %v2410, %v2412
    %v2414 = vrot.slane %v2400, %v2413
    %v2415 = vcombine.low %v2391, %v2397
    %v2416 = vcombine.high %v2391, %v2397
    %v2418 = vunpack.c.l.s4 1983009808
    %v2419 = vunpack.c.0.s8 %v2418
    %v2420 = vlaneseq
    %v2421 = vshrl.u32 %v2420, 7
    %v2422 = vsub.s32 %v2419, %v2421
    %v2423 = vrot.slane %v2415, %v2422
    %v2425 = vunpack.c.l.s4 1983009808
    %v2426 = vunpack.c.0.s8 %v2425
    %v2427 = vlaneseq
    %v2428 = vshrl.u32 %v2427, 7
    %v2429 = vsub.s32 %v2426, %v2428
    %v2430 = vrot.slane %v2416, %v2429
    %v2431 = vcombine.low %v2407, %v2423
    %v2432 = vcombine.high %v2407, %v2423
    %v2434 = vunpack.c.l.s4 1934713408
    %v2435 = vunpack.c.0.s8 %v2434
    %v2436 = vlaneseq
    %v2437 = vshrl.u32 %v2436, 7
    %v2438 = vsub.s32 %v2435, %v2437
    %v2439 = vrot.slane %v2431, %v2438
    %v2441 = vunpack.c.l.s4 1934713408
    %v2442 = vunpack.c.0.s8 %v2441
    %v2443 = vlaneseq
    %v2444 = vshrl.u32 %v2443, 7
    %v2445 = vsub.s32 %v2442, %v2444
    %v2446 = vrot.slane %v2432, %v2445
    %v2447 = vcombine.low %v2414, %v2430
    %v2448 = vcombine.high %v2414, %v2430
    %v2450 = vunpack.c.l.s4 1934713408
    %v2451 = vunpack.c.0.s8 %v2450
    %v2452 = vlaneseq
    %v2453 = vshrl.u32 %v2452, 7
    %v2454 = vsub.s32 %v2451, %v2453
    %v2455 = vrot.slane %v2447, %v2454
    %v2457 = vunpack.c.l.s4 1934713408
    %v2458 = vunpack.c.0.s8 %v2457
    %v2459 = vlaneseq
    %v2460 = vshrl.u32 %v2459, 7
    %v2461 = vsub.s32 %v2458, %v2460
    %v2462 = vrot.slane %v2448, %v2461
    %v2463 = vcombine.high %v2439, 0.0
    %v2464 = vcombine.high %v2446, 0.0
    %v2465 = vcombine.high %v2455, 0.0
    %v2466 = vcombine.high %v2462, 0.0
    %v2467 = vpack.c.bf16 %v2439, %v2439
    %v2468 = vpack.c.bf16 %v2463, %v2463
    %v2469 = vpack.c.bf16 %v2446, %v2446
    %v2470 = vpack.c.bf16 %v2464, %v2464
    %v2471 = vpack.c.bf16 %v2455, %v2455
    %v2472 = vpack.c.bf16 %v2465, %v2465
    %v2473 = vpack.c.bf16 %v2462, %v2462
    %v2474 = vpack.c.bf16 %v2466, %v2466
    %v2475 = vcombine.low %v2295, %v2299
    %v2477 = vunpack.c.l.s4 1983009808
    %v2478 = vunpack.c.0.s8 %v2477
    %v2479 = vlaneseq
    %v2480 = vshrl.u32 %v2479, 7
    %v2481 = vsub.s32 %v2478, %v2480
    %v2482 = vrot.slane %v2475, %v2481
    %v2483 = vcombine.low %v2297, %v2301
    %v2485 = vunpack.c.l.s4 1983009808
    %v2486 = vunpack.c.0.s8 %v2485
    %v2487 = vlaneseq
    %v2488 = vshrl.u32 %v2487, 7
    %v2489 = vsub.s32 %v2486, %v2488
    %v2490 = vrot.slane %v2483, %v2489
    %v2491 = vcombine.low %v2482, %v2490
    %v2493 = vunpack.c.l.s4 1934713408
    %v2494 = vunpack.c.0.s8 %v2493
    %v2495 = vlaneseq
    %v2496 = vshrl.u32 %v2495, 7
    %v2497 = vsub.s32 %v2494, %v2496
    %v2498 = vrot.slane %v2491, %v2497
    %v2499 = vcombine.high %v2498, 0
    %v2500 = vcombine.low %v2296, %v2300
    %v2502 = vunpack.c.l.s4 1983009808
    %v2503 = vunpack.c.0.s8 %v2502
    %v2504 = vlaneseq
    %v2505 = vshrl.u32 %v2504, 7
    %v2506 = vsub.s32 %v2503, %v2505
    %v2507 = vrot.slane %v2500, %v2506
    %v2508 = vcombine.low %v2298, %v2302
    %v2510 = vunpack.c.l.s4 1983009808
    %v2511 = vunpack.c.0.s8 %v2510
    %v2512 = vlaneseq
    %v2513 = vshrl.u32 %v2512, 7
    %v2514 = vsub.s32 %v2511, %v2513
    %v2515 = vrot.slane %v2508, %v2514
    %v2516 = vcombine.low %v2507, %v2515
    %v2518 = vunpack.c.l.s4 1934713408
    %v2519 = vunpack.c.0.s8 %v2518
    %v2520 = vlaneseq
    %v2521 = vshrl.u32 %v2520, 7
    %v2522 = vsub.s32 %v2519, %v2521
    %v2523 = vrot.slane %v2516, %v2522
    %v2524 = vcombine.high %v2523, 0
    %v2527 = vpack.i.b16 %v2523, %v2498
    %v2528 = vshrl.u32 %v2498, 16
    %v2529 = vshrl.u32 %v2523, 16
    %v2530 = vpack.i.b16 %v2529, %v2528
    %v2533 = vpack.i.b16 %v2524, %v2499
    %v2534 = vshrl.u32 %v2499, 16
    %v2535 = vshrl.u32 %v2524, 16
    %v2536 = vpack.i.b16 %v2535, %v2534
    %2537 = vxpose.xlu0.c.b16.start [1/8] %v2381, 128
    %2538 = vxpose.xlu0.c.b16.cont [2/8] 0, 128
    %2539 = vxpose.xlu0.c.b16.cont [3/8] 0, 128
    %2540 = vxpose.xlu0.c.b16.cont [4/8] 0, 128
    %2541 = vxpose.xlu0.c.b16.cont [5/8] 0, 128
    %2542 = vxpose.xlu0.c.b16.cont [6/8] 0, 128
    %2543 = vxpose.xlu0.c.b16.cont [7/8] 0, 128
    %2544 = vxpose.xlu0.c.b16.end [8/8] 0, 128
    %v2545 = vpop.trf.xlu0
    %v2546 = vpop.trf.xlu0
    %v2547 = vpop.trf.xlu0
    %v2548 = vpop.trf.xlu0
    %v2549 = vpop.trf.xlu0
    %v2550 = vpop.trf.xlu0
    %v2551 = vpop.trf.xlu0
    %v2552 = vpop.trf.xlu0
    %2553 = vxpose.xlu0.c.b16.start [1/8] %v2382, 128
    %2554 = vxpose.xlu0.c.b16.cont [2/8] 0, 128
    %2555 = vxpose.xlu0.c.b16.cont [3/8] 0, 128
    %2556 = vxpose.xlu0.c.b16.cont [4/8] 0, 128
    %2557 = vxpose.xlu0.c.b16.cont [5/8] 0, 128
    %2558 = vxpose.xlu0.c.b16.cont [6/8] 0, 128
    %2559 = vxpose.xlu0.c.b16.cont [7/8] 0, 128
    %2560 = vxpose.xlu0.c.b16.end [8/8] 0, 128
    %v2561 = vpop.trf.xlu0
    %v2562 = vpop.trf.xlu0
    %v2563 = vpop.trf.xlu0
    %v2564 = vpop.trf.xlu0
    %v2565 = vpop.trf.xlu0
    %v2566 = vpop.trf.xlu0
    %v2567 = vpop.trf.xlu0
    %v2568 = vpop.trf.xlu0
    %2569 = vxpose.xlu0.c.b16.start [1/8] %v2383, 128
    %2570 = vxpose.xlu0.c.b16.cont [2/8] 0, 128
    %2571 = vxpose.xlu0.c.b16.cont [3/8] 0, 128
    %2572 = vxpose.xlu0.c.b16.cont [4/8] 0, 128
    %2573 = vxpose.xlu0.c.b16.cont [5/8] 0, 128
    %2574 = vxpose.xlu0.c.b16.cont [6/8] 0, 128
    %2575 = vxpose.xlu0.c.b16.cont [7/8] 0, 128
    %2576 = vxpose.xlu0.c.b16.end [8/8] 0, 128
    %v2577 = vpop.trf.xlu0
    %v2578 = vpop.trf.xlu0
    %v2579 = vpop.trf.xlu0
    %v2580 = vpop.trf.xlu0
    %v2581 = vpop.trf.xlu0
    %v2582 = vpop.trf.xlu0
    %v2583 = vpop.trf.xlu0
    %v2584 = vpop.trf.xlu0
    %2585 = vxpose.xlu0.c.b16.start [1/8] %v2384, 128
    %2586 = vxpose.xlu0.c.b16.cont [2/8] 0, 128
    %2587 = vxpose.xlu0.c.b16.cont [3/8] 0, 128
    %2588 = vxpose.xlu0.c.b16.cont [4/8] 0, 128
    %2589 = vxpose.xlu0.c.b16.cont [5/8] 0, 128
    %2590 = vxpose.xlu0.c.b16.cont [6/8] 0, 128
    %2591 = vxpose.xlu0.c.b16.cont [7/8] 0, 128
    %2592 = vxpose.xlu0.c.b16.end [8/8] 0, 128
    %v2593 = vpop.trf.xlu0
    %v2594 = vpop.trf.xlu0
    %v2595 = vpop.trf.xlu0
    %v2596 = vpop.trf.xlu0
    %v2597 = vpop.trf.xlu0
    %v2598 = vpop.trf.xlu0
    %v2599 = vpop.trf.xlu0
    %v2600 = vpop.trf.xlu0
    %2601 = vxpose.xlu0.c.b16.start [1/8] %v2385, 128
    %2602 = vxpose.xlu0.c.b16.cont [2/8] 0, 128
    %2603 = vxpose.xlu0.c.b16.cont [3/8] 0, 128
    %2604 = vxpose.xlu0.c.b16.cont [4/8] 0, 128
    %2605 = vxpose.xlu0.c.b16.cont [5/8] 0, 128
    %2606 = vxpose.xlu0.c.b16.cont [6/8] 0, 128
    %2607 = vxpose.xlu0.c.b16.cont [7/8] 0, 128
    %2608 = vxpose.xlu0.c.b16.end [8/8] 0, 128
    %v2609 = vpop.trf.xlu0
    %v2610 = vpop.trf.xlu0
    %v2611 = vpop.trf.xlu0
    %v2612 = vpop.trf.xlu0
    %v2613 = vpop.trf.xlu0
    %v2614 = vpop.trf.xlu0
    %v2615 = vpop.trf.xlu0
    %v2616 = vpop.trf.xlu0
    %2617 = vxpose.xlu0.c.b16.start [1/8] %v2386, 128
    %2618 = vxpose.xlu0.c.b16.cont [2/8] 0, 128
    %2619 = vxpose.xlu0.c.b16.cont [3/8] 0, 128
    %2620 = vxpose.xlu0.c.b16.cont [4/8] 0, 128
    %2621 = vxpose.xlu0.c.b16.cont [5/8] 0, 128
    %2622 = vxpose.xlu0.c.b16.cont [6/8] 0, 128
    %2623 = vxpose.xlu0.c.b16.cont [7/8] 0, 128
    %2624 = vxpose.xlu0.c.b16.end [8/8] 0, 128
    %v2625 = vpop.trf.xlu0
    %v2626 = vpop.trf.xlu0
    %v2627 = vpop.trf.xlu0
    %v2628 = vpop.trf.xlu0
    %v2629 = vpop.trf.xlu0
    %v2630 = vpop.trf.xlu0
    %v2631 = vpop.trf.xlu0
    %v2632 = vpop.trf.xlu0
    %2633 = vxpose.xlu0.c.b16.start [1/8] %v2387, 128
    %2634 = vxpose.xlu0.c.b16.cont [2/8] 0, 128
    %2635 = vxpose.xlu0.c.b16.cont [3/8] 0, 128
    %2636 = vxpose.xlu0.c.b16.cont [4/8] 0, 128
    %2637 = vxpose.xlu0.c.b16.cont [5/8] 0, 128
    %2638 = vxpose.xlu0.c.b16.cont [6/8] 0, 128
    %2639 = vxpose.xlu0.c.b16.cont [7/8] 0, 128
    %2640 = vxpose.xlu0.c.b16.end [8/8] 0, 128
    %v2641 = vpop.trf.xlu0
    %v2642 = vpop.trf.xlu0
    %v2643 = vpop.trf.xlu0
    %v2644 = vpop.trf.xlu0
    %v2645 = vpop.trf.xlu0
    %v2646 = vpop.trf.xlu0
    %v2647 = vpop.trf.xlu0
    %v2648 = vpop.trf.xlu0
    %2649 = vxpose.xlu0.c.b16.start [1/8] %v2388, 128
    %2650 = vxpose.xlu0.c.b16.cont [2/8] 0, 128
    %2651 = vxpose.xlu0.c.b16.cont [3/8] 0, 128
    %2652 = vxpose.xlu0.c.b16.cont [4/8] 0, 128
    %2653 = vxpose.xlu0.c.b16.cont [5/8] 0, 128
    %2654 = vxpose.xlu0.c.b16.cont [6/8] 0, 128
    %2655 = vxpose.xlu0.c.b16.cont [7/8] 0, 128
    %2656 = vxpose.xlu0.c.b16.end [8/8] 0, 128
    %v2657 = vpop.trf.xlu0
    %v2658 = vpop.trf.xlu0
    %v2659 = vpop.trf.xlu0
    %v2660 = vpop.trf.xlu0
    %v2661 = vpop.trf.xlu0
    %v2662 = vpop.trf.xlu0
    %v2663 = vpop.trf.xlu0
    %v2664 = vpop.trf.xlu0
    %v2665 = vcombine.low %v2545, %v2609
    %v2667 = vunpack.c.l.s4 1983009808
    %v2668 = vunpack.c.0.s8 %v2667
    %v2669 = vlaneseq
    %v2670 = vshrl.u32 %v2669, 7
    %v2671 = vsub.s32 %v2668, %v2670
    %v2672 = vrot.slane %v2665, %v2671
    %v2673 = vcombine.low %v2577, %v2641
    %v2675 = vunpack.c.l.s4 1983009808
    %v2676 = vunpack.c.0.s8 %v2675
    %v2677 = vlaneseq
    %v2678 = vshrl.u32 %v2677, 7
    %v2679 = vsub.s32 %v2676, %v2678
    %v2680 = vrot.slane %v2673, %v2679
    %v2681 = vcombine.low %v2672, %v2680
    %v2682 = vcombine.high %v2672, %v2680
    %v2684 = vunpack.c.l.s4 1934713408
    %v2685 = vunpack.c.0.s8 %v2684
    %v2686 = vlaneseq
    %v2687 = vshrl.u32 %v2686, 7
    %v2688 = vsub.s32 %v2685, %v2687
    %v2689 = vrot.slane %v2681, %v2688
    %v2691 = vunpack.c.l.s4 1934713408
    %v2692 = vunpack.c.0.s8 %v2691
    %v2693 = vlaneseq
    %v2694 = vshrl.u32 %v2693, 7
    %v2695 = vsub.s32 %v2692, %v2694
    %v2696 = vrot.slane %v2682, %v2695
    %v2697 = vcombine.high %v2689, 0
    %v2698 = vcombine.high %v2696, 0
    %v2699 = vcombine.low %v2561, %v2625
    %v2701 = vunpack.c.l.s4 1983009808
    %v2702 = vunpack.c.0.s8 %v2701
    %v2703 = vlaneseq
    %v2704 = vshrl.u32 %v2703, 7
    %v2705 = vsub.s32 %v2702, %v2704
    %v2706 = vrot.slane %v2699, %v2705
    %v2707 = vcombine.low %v2593, %v2657
    %v2709 = vunpack.c.l.s4 1983009808
    %v2710 = vunpack.c.0.s8 %v2709
    %v2711 = vlaneseq
    %v2712 = vshrl.u32 %v2711, 7
    %v2713 = vsub.s32 %v2710, %v2712
    %v2714 = vrot.slane %v2707, %v2713
    %v2715 = vcombine.low %v2706, %v2714
    %v2716 = vcombine.high %v2706, %v2714
    %v2718 = vunpack.c.l.s4 1934713408
    %v2719 = vunpack.c.0.s8 %v2718
    %v2720 = vlaneseq
    %v2721 = vshrl.u32 %v2720, 7
    %v2722 = vsub.s32 %v2719, %v2721
    %v2723 = vrot.slane %v2715, %v2722
    %v2725 = vunpack.c.l.s4 1934713408
    %v2726 = vunpack.c.0.s8 %v2725
    %v2727 = vlaneseq
    %v2728 = vshrl.u32 %v2727, 7
    %v2729 = vsub.s32 %v2726, %v2728
    %v2730 = vrot.slane %v2716, %v2729
    %v2731 = vcombine.high %v2723, 0
    %v2732 = vcombine.high %v2730, 0
    %v2735 = vpack.i.b16 %v2723, %v2689
    %v2737 = vshrl.u32 %v2689, 16
    %v2738 = vshrl.u32 %v2723, 16
    %v2739 = vpack.i.b16 %v2738, %v2737
    %v2743 = vpack.i.b16 %v2731, %v2697
    %v2745 = vshrl.u32 %v2697, 16
    %v2746 = vshrl.u32 %v2731, 16
    %v2747 = vpack.i.b16 %v2746, %v2745
    %v2751 = vpack.i.b16 %v2730, %v2696
    %v2753 = vshrl.u32 %v2696, 16
    %v2754 = vshrl.u32 %v2730, 16
    %v2755 = vpack.i.b16 %v2754, %v2753
    %v2759 = vpack.i.b16 %v2732, %v2698
    %v2761 = vshrl.u32 %v2698, 16
    %v2762 = vshrl.u32 %v2732, 16
    %v2763 = vpack.i.b16 %v2762, %v2761
    %2765 = vxpose.xlu0.c.b16.start [1/8] %v2735, 128
    %2766 = vxpose.xlu0.c.b16.cont [2/8] 0, 128
    %2767 = vxpose.xlu0.c.b16.cont [3/8] 0, 128
    %2768 = vxpose.xlu0.c.b16.cont [4/8] 0, 128
    %2769 = vxpose.xlu0.c.b16.cont [5/8] 0, 128
    %2770 = vxpose.xlu0.c.b16.cont [6/8] 0, 128
    %2771 = vxpose.xlu0.c.b16.cont [7/8] 0, 128
    %2772 = vxpose.xlu0.c.b16.end [8/8] 0, 128
    %v2773 = vpop.trf.xlu0
    %v2774 = vpop.trf.xlu0
    %v2775 = vpop.trf.xlu0
    %v2776 = vpop.trf.xlu0
    %v2777 = vpop.trf.xlu0
    %v2778 = vpop.trf.xlu0
    %v2779 = vpop.trf.xlu0
    %v2780 = vpop.trf.xlu0
    %2781 = vxpose.xlu0.c.b16.start [1/8] %v2739, 128
    %2782 = vxpose.xlu0.c.b16.cont [2/8] 0, 128
    %2783 = vxpose.xlu0.c.b16.cont [3/8] 0, 128
    %2784 = vxpose.xlu0.c.b16.cont [4/8] 0, 128
    %2785 = vxpose.xlu0.c.b16.cont [5/8] 0, 128
    %2786 = vxpose.xlu0.c.b16.cont [6/8] 0, 128
    %2787 = vxpose.xlu0.c.b16.cont [7/8] 0, 128
    %2788 = vxpose.xlu0.c.b16.end [8/8] 0, 128
    %v2789 = vpop.trf.xlu0
    %v2790 = vpop.trf.xlu0
    %v2791 = vpop.trf.xlu0
    %v2792 = vpop.trf.xlu0
    %v2793 = vpop.trf.xlu0
    %v2794 = vpop.trf.xlu0
    %v2795 = vpop.trf.xlu0
    %v2796 = vpop.trf.xlu0
    %2797 = vxpose.xlu0.c.b16.start [1/8] %v2743, 128
    %2798 = vxpose.xlu0.c.b16.cont [2/8] 0, 128
    %2799 = vxpose.xlu0.c.b16.cont [3/8] 0, 128
    %2800 = vxpose.xlu0.c.b16.cont [4/8] 0, 128
    %2801 = vxpose.xlu0.c.b16.cont [5/8] 0, 128
    %2802 = vxpose.xlu0.c.b16.cont [6/8] 0, 128
    %2803 = vxpose.xlu0.c.b16.cont [7/8] 0, 128
    %2804 = vxpose.xlu0.c.b16.end [8/8] 0, 128
    %v2805 = vpop.trf.xlu0
    %v2806 = vpop.trf.xlu0
    %v2807 = vpop.trf.xlu0
    %v2808 = vpop.trf.xlu0
    %v2809 = vpop.trf.xlu0
    %v2810 = vpop.trf.xlu0
    %v2811 = vpop.trf.xlu0
    %v2812 = vpop.trf.xlu0
    %2813 = vxpose.xlu0.c.b16.start [1/8] %v2747, 128
    %2814 = vxpose.xlu0.c.b16.cont [2/8] 0, 128
    %2815 = vxpose.xlu0.c.b16.cont [3/8] 0, 128
    %2816 = vxpose.xlu0.c.b16.cont [4/8] 0, 128
    %2817 = vxpose.xlu0.c.b16.cont [5/8] 0, 128
    %2818 = vxpose.xlu0.c.b16.cont [6/8] 0, 128
    %2819 = vxpose.xlu0.c.b16.cont [7/8] 0, 128
    %2820 = vxpose.xlu0.c.b16.end [8/8] 0, 128
    %v2821 = vpop.trf.xlu0
    %v2822 = vpop.trf.xlu0
    %v2823 = vpop.trf.xlu0
    %v2824 = vpop.trf.xlu0
    %v2825 = vpop.trf.xlu0
    %v2826 = vpop.trf.xlu0
    %v2827 = vpop.trf.xlu0
    %v2828 = vpop.trf.xlu0
    %2829 = vxpose.xlu0.c.b16.start [1/8] %v2751, 128
    %2830 = vxpose.xlu0.c.b16.cont [2/8] 0, 128
    %2831 = vxpose.xlu0.c.b16.cont [3/8] 0, 128
    %2832 = vxpose.xlu0.c.b16.cont [4/8] 0, 128
    %2833 = vxpose.xlu0.c.b16.cont [5/8] 0, 128
    %2834 = vxpose.xlu0.c.b16.cont [6/8] 0, 128
    %2835 = vxpose.xlu0.c.b16.cont [7/8] 0, 128
    %2836 = vxpose.xlu0.c.b16.end [8/8] 0, 128
    %v2837 = vpop.trf.xlu0
    %v2838 = vpop.trf.xlu0
    %v2839 = vpop.trf.xlu0
    %v2840 = vpop.trf.xlu0
    %v2841 = vpop.trf.xlu0
    %v2842 = vpop.trf.xlu0
    %v2843 = vpop.trf.xlu0
    %v2844 = vpop.trf.xlu0
    %2845 = vxpose.xlu0.c.b16.start [1/8] %v2755, 128
    %2846 = vxpose.xlu0.c.b16.cont [2/8] 0, 128
    %2847 = vxpose.xlu0.c.b16.cont [3/8] 0, 128
    %2848 = vxpose.xlu0.c.b16.cont [4/8] 0, 128
    %2849 = vxpose.xlu0.c.b16.cont [5/8] 0, 128
    %2850 = vxpose.xlu0.c.b16.cont [6/8] 0, 128
    %2851 = vxpose.xlu0.c.b16.cont [7/8] 0, 128
    %2852 = vxpose.xlu0.c.b16.end [8/8] 0, 128
    %v2853 = vpop.trf.xlu0
    %v2854 = vpop.trf.xlu0
    %v2855 = vpop.trf.xlu0
    %v2856 = vpop.trf.xlu0
    %v2857 = vpop.trf.xlu0
    %v2858 = vpop.trf.xlu0
    %v2859 = vpop.trf.xlu0
    %v2860 = vpop.trf.xlu0
    %2861 = vxpose.xlu0.c.b16.start [1/8] %v2759, 128
    %2862 = vxpose.xlu0.c.b16.cont [2/8] 0, 128
    %2863 = vxpose.xlu0.c.b16.cont [3/8] 0, 128
    %2864 = vxpose.xlu0.c.b16.cont [4/8] 0, 128
    %2865 = vxpose.xlu0.c.b16.cont [5/8] 0, 128
    %2866 = vxpose.xlu0.c.b16.cont [6/8] 0, 128
    %2867 = vxpose.xlu0.c.b16.cont [7/8] 0, 128
    %2868 = vxpose.xlu0.c.b16.end [8/8] 0, 128
    %v2869 = vpop.trf.xlu0
    %v2870 = vpop.trf.xlu0
    %v2871 = vpop.trf.xlu0
    %v2872 = vpop.trf.xlu0
    %v2873 = vpop.trf.xlu0
    %v2874 = vpop.trf.xlu0
    %v2875 = vpop.trf.xlu0
    %v2876 = vpop.trf.xlu0
    %2877 = vxpose.xlu0.c.b16.start [1/8] %v2763, 128
    %2878 = vxpose.xlu0.c.b16.cont [2/8] 0, 128
    %2879 = vxpose.xlu0.c.b16.cont [3/8] 0, 128
    %2880 = vxpose.xlu0.c.b16.cont [4/8] 0, 128
    %2881 = vxpose.xlu0.c.b16.cont [5/8] 0, 128
    %2882 = vxpose.xlu0.c.b16.cont [6/8] 0, 128
    %2883 = vxpose.xlu0.c.b16.cont [7/8] 0, 128
    %2884 = vxpose.xlu0.c.b16.end [8/8] 0, 128
    %v2885 = vpop.trf.xlu0
    %v2886 = vpop.trf.xlu0
    %v2887 = vpop.trf.xlu0
    %v2888 = vpop.trf.xlu0
    %v2889 = vpop.trf.xlu0
    %v2890 = vpop.trf.xlu0
    %v2891 = vpop.trf.xlu0
    %v2892 = vpop.trf.xlu0
    %v2893 = vcombine.low %v2773, %v2837
    %v2895 = vunpack.c.l.s4 1983009808
    %v2896 = vunpack.c.0.s8 %v2895
    %v2897 = vlaneseq
    %v2898 = vshrl.u32 %v2897, 7
    %v2899 = vsub.s32 %v2896, %v2898
    %v2900 = vrot.slane %v2893, %v2899
    %v2901 = vcombine.low %v2805, %v2869
    %v2903 = vunpack.c.l.s4 1983009808
    %v2904 = vunpack.c.0.s8 %v2903
    %v2905 = vlaneseq
    %v2906 = vshrl.u32 %v2905, 7
    %v2907 = vsub.s32 %v2904, %v2906
    %v2908 = vrot.slane %v2901, %v2907
    %v2909 = vcombine.low %v2900, %v2908
    %v2911 = vunpack.c.l.s4 1934713408
    %v2912 = vunpack.c.0.s8 %v2911
    %v2913 = vlaneseq
    %v2914 = vshrl.u32 %v2913, 7
    %v2915 = vsub.s32 %v2912, %v2914
    %v2916 = vrot.slane %v2909, %v2915
    %v2917 = vcombine.high %v2916, 0
    %v2918 = vcombine.low %v2789, %v2853
    %v2920 = vunpack.c.l.s4 1983009808
    %v2921 = vunpack.c.0.s8 %v2920
    %v2922 = vlaneseq
    %v2923 = vshrl.u32 %v2922, 7
    %v2924 = vsub.s32 %v2921, %v2923
    %v2925 = vrot.slane %v2918, %v2924
    %v2926 = vcombine.low %v2821, %v2885
    %v2928 = vunpack.c.l.s4 1983009808
    %v2929 = vunpack.c.0.s8 %v2928
    %v2930 = vlaneseq
    %v2931 = vshrl.u32 %v2930, 7
    %v2932 = vsub.s32 %v2929, %v2931
    %v2933 = vrot.slane %v2926, %v2932
    %v2934 = vcombine.low %v2925, %v2933
    %v2936 = vunpack.c.l.s4 1934713408
    %v2937 = vunpack.c.0.s8 %v2936
    %v2938 = vlaneseq
    %v2939 = vshrl.u32 %v2938, 7
    %v2940 = vsub.s32 %v2937, %v2939
    %v2941 = vrot.slane %v2934, %v2940
    %v2942 = vcombine.high %v2941, 0
    %v2945 = vpack.i.b16 %v2941, %v2916
    %v2946 = vshrl.u32 %v2916, 16
    %v2947 = vshrl.u32 %v2941, 16
    %v2948 = vpack.i.b16 %v2947, %v2946
    %v2951 = vpack.i.b16 %v2942, %v2917
    %v2952 = vshrl.u32 %v2917, 16
    %v2953 = vshrl.u32 %v2942, 16
    %v2954 = vpack.i.b16 %v2953, %v2952
    %v2956 = vsel %vm1085, %v2527, 0
    %v2959 = vsel %vm1089, %v2945, 0
    %2961 = vmatprep.subr.bf16.mxu0 0
    %2962 = vmatpush1.bf16.msra.mxu0 0
    %2963 = vmatprep.subr.bf16.mxu0 0
    %2964 = vmatpush1.bf16.msra.mxu0 0
    %2965 = vmatprep.subr.bf16.mxu0 0
    %2966 = vmatpush1.bf16.msra.mxu0 0
    %2967 = vmatprep.subr.bf16.mxu0 0
    %2968 = vmatpush1.bf16.msra.mxu0 0
    %2969 = vmatprep.subr.bf16.mxu0 0
    %2970 = vmatpush1.bf16.msra.mxu0 0
    %2971 = vmatprep.subr.bf16.mxu0 0
    %2972 = vmatpush1.bf16.msra.mxu0 0
    %2973 = vmatprep.subr.bf16.mxu0 0
    %2974 = vmatpush1.bf16.msra.mxu0 0
    %2975 = vmatprep.subr.bf16.mxu0 0
    %2976 = vmatpush1.bf16.msra.mxu0 %v2959
    %2977 = vmatprep.subr.bf16.mxu0 0
    %2978 = vmatpush2.bf16.msra.mxu0 0
    %2979 = vmatprep.subr.bf16.mxu0 0
    %2980 = vmatpush2.bf16.msra.mxu0 0
    %2981 = vmatprep.subr.bf16.mxu0 0
    %2982 = vmatpush2.bf16.msra.mxu0 0
    %2983 = vmatprep.subr.bf16.mxu0 0
    %2984 = vmatpush2.bf16.msra.mxu0 0
    %2985 = vmatprep.subr.bf16.mxu0 0
    %2986 = vmatpush2.bf16.msra.mxu0 0
    %2987 = vmatprep.subr.bf16.mxu0 0
    %2988 = vmatpush2.bf16.msra.mxu0 0
    %2989 = vmatprep.subr.bf16.mxu0 0
    %2990 = vmatpush2.bf16.msra.mxu0 0
    %2991 = vmatprep.subr.bf16.mxu0 0
    %2992 = vmatpush2.bf16.msra.mxu0 0
    %2993 = vmatprep.mubr.bf16.mxu0 0
    %2994 = vmatmul.mubr.bf16.gmra.mxu0 %v2956
    %v2995 = vpop.f32.mrf.mxu0
    %v2996 = vadd.f32 0.0, %v2995
    %v2997 = vpop.f32.mrf.mxu0
    %v2998 = vpop.f32.mrf.mxu0
    %v2999 = vpop.f32.mrf.mxu0
    %3000 = vdwg.mxu0
    %v3002 = vsel %vm1085, %v2530, 0
    %v3005 = vsel %vm1089, %v2948, 0
    %3007 = vmatprep.subr.bf16.mxu0 0
    %3008 = vmatpush1.bf16.msra.mxu0 0
    %3009 = vmatprep.subr.bf16.mxu0 0
    %3010 = vmatpush1.bf16.msra.mxu0 0
    %3011 = vmatprep.subr.bf16.mxu0 0
    %3012 = vmatpush1.bf16.msra.mxu0 0
    %3013 = vmatprep.subr.bf16.mxu0 0
    %3014 = vmatpush1.bf16.msra.mxu0 0
    %3015 = vmatprep.subr.bf16.mxu0 0
    %3016 = vmatpush1.bf16.msra.mxu0 0
    %3017 = vmatprep.subr.bf16.mxu0 0
    %3018 = vmatpush1.bf16.msra.mxu0 0
    %3019 = vmatprep.subr.bf16.mxu0 0
    %3020 = vmatpush1.bf16.msra.mxu0 0
    %3021 = vmatprep.subr.bf16.mxu0 0
    %3022 = vmatpush1.bf16.msra.mxu0 %v3005
    %3023 = vmatprep.subr.bf16.mxu0 0
    %3024 = vmatpush2.bf16.msra.mxu0 0
    %3025 = vmatprep.subr.bf16.mxu0 0
    %3026 = vmatpush2.bf16.msra.mxu0 0
    %3027 = vmatprep.subr.bf16.mxu0 0
    %3028 = vmatpush2.bf16.msra.mxu0 0
    %3029 = vmatprep.subr.bf16.mxu0 0
    %3030 = vmatpush2.bf16.msra.mxu0 0
    %3031 = vmatprep.subr.bf16.mxu0 0
    %3032 = vmatpush2.bf16.msra.mxu0 0
    %3033 = vmatprep.subr.bf16.mxu0 0
    %3034 = vmatpush2.bf16.msra.mxu0 0
    %3035 = vmatprep.subr.bf16.mxu0 0
    %3036 = vmatpush2.bf16.msra.mxu0 0
    %3037 = vmatprep.subr.bf16.mxu0 0
    %3038 = vmatpush2.bf16.msra.mxu0 0
    %3039 = vmatprep.mubr.bf16.mxu0 0
    %3040 = vmatmul.mubr.bf16.gmra.mxu0 %v3002
    %v3041 = vpop.f32.mrf.mxu0
    %v3042 = vadd.f32 0.0, %v3041
    %v3043 = vpop.f32.mrf.mxu0
    %v3044 = vpop.f32.mrf.mxu0
    %v3045 = vpop.f32.mrf.mxu0
    %3046 = vdwg.mxu0
    %v3048 = vsel %vm1085, %v2533, 0
    %v3051 = vsel %vm1089, %v2951, 0
    %3053 = vmatprep.subr.bf16.mxu0 0
    %3054 = vmatpush1.bf16.msra.mxu0 0
    %3055 = vmatprep.subr.bf16.mxu0 0
    %3056 = vmatpush1.bf16.msra.mxu0 0
    %3057 = vmatprep.subr.bf16.mxu0 0
    %3058 = vmatpush1.bf16.msra.mxu0 0
    %3059 = vmatprep.subr.bf16.mxu0 0
    %3060 = vmatpush1.bf16.msra.mxu0 0
    %3061 = vmatprep.subr.bf16.mxu0 0
    %3062 = vmatpush1.bf16.msra.mxu0 0
    %3063 = vmatprep.subr.bf16.mxu0 0
    %3064 = vmatpush1.bf16.msra.mxu0 0
    %3065 = vmatprep.subr.bf16.mxu0 0
    %3066 = vmatpush1.bf16.msra.mxu0 0
    %3067 = vmatprep.subr.bf16.mxu0 0
    %3068 = vmatpush1.bf16.msra.mxu0 %v3051
    %3069 = vmatprep.subr.bf16.mxu0 0
    %3070 = vmatpush2.bf16.msra.mxu0 0
    %3071 = vmatprep.subr.bf16.mxu0 0
    %3072 = vmatpush2.bf16.msra.mxu0 0
    %3073 = vmatprep.subr.bf16.mxu0 0
    %3074 = vmatpush2.bf16.msra.mxu0 0
    %3075 = vmatprep.subr.bf16.mxu0 0
    %3076 = vmatpush2.bf16.msra.mxu0 0
    %3077 = vmatprep.subr.bf16.mxu0 0
    %3078 = vmatpush2.bf16.msra.mxu0 0
    %3079 = vmatprep.subr.bf16.mxu0 0
    %3080 = vmatpush2.bf16.msra.mxu0 0
    %3081 = vmatprep.subr.bf16.mxu0 0
    %3082 = vmatpush2.bf16.msra.mxu0 0
    %3083 = vmatprep.subr.bf16.mxu0 0
    %3084 = vmatpush2.bf16.msra.mxu0 0
    %3085 = vmatprep.mubr.bf16.mxu0 0
    %3086 = vmatmul.mubr.bf16.gmra.mxu0 %v3048
    %v3087 = vpop.f32.mrf.mxu0
    %v3088 = vadd.f32 0.0, %v3087
    %v3089 = vpop.f32.mrf.mxu0
    %v3090 = vpop.f32.mrf.mxu0
    %v3091 = vpop.f32.mrf.mxu0
    %3092 = vdwg.mxu0
    %v3094 = vsel %vm1085, %v2536, 0
    %v3097 = vsel %vm1089, %v2954, 0
    %3099 = vmatprep.subr.bf16.mxu0 0
    %3100 = vmatpush1.bf16.msra.mxu0 0
    %3101 = vmatprep.subr.bf16.mxu0 0
    %3102 = vmatpush1.bf16.msra.mxu0 0
    %3103 = vmatprep.subr.bf16.mxu0 0
    %3104 = vmatpush1.bf16.msra.mxu0 0
    %3105 = vmatprep.subr.bf16.mxu0 0
    %3106 = vmatpush1.bf16.msra.mxu0 0
    %3107 = vmatprep.subr.bf16.mxu0 0
    %3108 = vmatpush1.bf16.msra.mxu0 0
    %3109 = vmatprep.subr.bf16.mxu0 0
    %3110 = vmatpush1.bf16.msra.mxu0 0
    %3111 = vmatprep.subr.bf16.mxu0 0
    %3112 = vmatpush1.bf16.msra.mxu0 0
    %3113 = vmatprep.subr.bf16.mxu0 0
    %3114 = vmatpush1.bf16.msra.mxu0 %v3097
    %3115 = vmatprep.subr.bf16.mxu0 0
    %3116 = vmatpush2.bf16.msra.mxu0 0
    %3117 = vmatprep.subr.bf16.mxu0 0
    %3118 = vmatpush2.bf16.msra.mxu0 0
    %3119 = vmatprep.subr.bf16.mxu0 0
    %3120 = vmatpush2.bf16.msra.mxu0 0
    %3121 = vmatprep.subr.bf16.mxu0 0
    %3122 = vmatpush2.bf16.msra.mxu0 0
    %3123 = vmatprep.subr.bf16.mxu0 0
    %3124 = vmatpush2.bf16.msra.mxu0 0
    %3125 = vmatprep.subr.bf16.mxu0 0
    %3126 = vmatpush2.bf16.msra.mxu0 0
    %3127 = vmatprep.subr.bf16.mxu0 0
    %3128 = vmatpush2.bf16.msra.mxu0 0
    %3129 = vmatprep.subr.bf16.mxu0 0
    %3130 = vmatpush2.bf16.msra.mxu0 0
    %3131 = vmatprep.mubr.bf16.mxu0 0
    %3132 = vmatmul.mubr.bf16.gmra.mxu0 %v3094
    %v3133 = vpop.f32.mrf.mxu0
    %v3134 = vadd.f32 0.0, %v3133
    %v3135 = vpop.f32.mrf.mxu0
    %v3136 = vpop.f32.mrf.mxu0
    %v3137 = vpop.f32.mrf.mxu0
    %3138 = vdwg.mxu0
    %v3139 = vmul.f32 %v2996, 0.35355338
    %v3140 = vmul.f32 %v3042, 0.35355338
    %v3141 = vmul.f32 %v3088, 0.35355338
    %v3142 = vmul.f32 %v3134, 0.35355338
    %s3143 = scalar_lea.vmem [#allocation2], 1
    %v3144 = vld [vmem:[%s3143] sm:$0x1]
    %v3146 = vlaneseq
    %v3147 = vshrl.u32 %v3146, 7
    %v3148 = vsub.s32 0, %v3147
    %v3149 = vrot.slane %v3144, %v3148
    %v3151 = vadd.f32 %v3139, %v3149
    %v3152 = vadd.f32 %v3140, %v3149
    %v3153 = vadd.f32 %v3141, %v3149
    %v3154 = vadd.f32 %v3142, %v3149
    %v3155 = vsel %vm1085, %v3151, -inf
    %3156 = vmax.xlane.f32.xlu0 %v3155
    %v3157 = vpop.xlane.xlu0 %3156
    %v3158 = vsel %vm1085, %v3152, -inf
    %3159 = vmax.xlane.f32.xlu0 %v3158
    %v3160 = vpop.xlane.xlu0 %3159
    %v3161 = vsel %vm1085, %v3153, -inf
    %3162 = vmax.xlane.f32.xlu0 %v3161
    %v3163 = vpop.xlane.xlu0 %3162
    %v3164 = vsel %vm1085, %v3154, -inf
    %3165 = vmax.xlane.f32.xlu0 %v3164
    %v3166 = vpop.xlane.xlu0 %3165
    %v3167 = vsub.f32 %v3151, %v3157
    %v3168 = vsub.f32 %v3152, %v3160
    %v3169 = vsub.f32 %v3153, %v3163
    %v3170 = vsub.f32 %v3154, %v3166
    %v3171 = vmul.f32 %v3167, 1.442695
    %v3172 = vpow.pop %v3171
    %v3173 = vmul.f32 %v3168, 1.442695
    %v3174 = vpow.pop %v3173
    %v3175 = vmul.f32 %v3169, 1.442695
    %v3176 = vpow.pop %v3175
    %v3177 = vmul.f32 %v3170, 1.442695
    %v3178 = vpow.pop %v3177
    %v3179 = vsel %vm1085, %v3172, 0.0
    %3180 = vadd.xlane.f32.xlu0 %v3179
    %v3181 = vpop.xlane.xlu0 %3180
    %v3182 = vsel %vm1085, %v3174, 0.0
    %3183 = vadd.xlane.f32.xlu0 %v3182
    %v3184 = vpop.xlane.xlu0 %3183
    %v3185 = vsel %vm1085, %v3176, 0.0
    %3186 = vadd.xlane.f32.xlu0 %v3185
    %v3187 = vpop.xlane.xlu0 %3186
    %v3188 = vsel %vm1085, %v3178, 0.0
    %3189 = vadd.xlane.f32.xlu0 %v3188
    %v3190 = vpop.xlane.xlu0 %3189
    %v3191 = vrcp.pop %v3181
    %v3192 = vrcp.pop %v3184
    %v3193 = vrcp.pop %v3187
    %v3194 = vrcp.pop %v3190
    %v3195 = vmul.f32 %v3172, %v3191
    %v3196 = vmul.f32 %v3174, %v3192
    %v3197 = vmul.f32 %v3176, %v3193
    %v3198 = vmul.f32 %v3178, %v3194
    %v3199 = vpack.c.bf16 %v3195, %v3195
    %v3200 = vpack.c.bf16 %v3196, %v3196
    %v3201 = vpack.c.bf16 %v3197, %v3197
    %v3202 = vpack.c.bf16 %v3198, %v3198
    %3203 = vxpose.xlu0.c.b16.start [1/8] %v2467, 128
    %3204 = vxpose.xlu0.c.b16.cont [2/8] 0, 128
    %3205 = vxpose.xlu0.c.b16.cont [3/8] 0, 128
    %3206 = vxpose.xlu0.c.b16.cont [4/8] 0, 128
    %3207 = vxpose.xlu0.c.b16.cont [5/8] 0, 128
    %3208 = vxpose.xlu0.c.b16.cont [6/8] 0, 128
    %3209 = vxpose.xlu0.c.b16.cont [7/8] 0, 128
    %3210 = vxpose.xlu0.c.b16.end [8/8] 0, 128
    %v3211 = vpop.trf.xlu0
    %v3212 = vpop.trf.xlu0
    %v3213 = vpop.trf.xlu0
    %v3214 = vpop.trf.xlu0
    %v3215 = vpop.trf.xlu0
    %v3216 = vpop.trf.xlu0
    %v3217 = vpop.trf.xlu0
    %v3218 = vpop.trf.xlu0
    %3219 = vxpose.xlu0.c.b16.start [1/8] %v2468, 128
    %3220 = vxpose.xlu0.c.b16.cont [2/8] 0, 128
    %3221 = vxpose.xlu0.c.b16.cont [3/8] 0, 128
    %3222 = vxpose.xlu0.c.b16.cont [4/8] 0, 128
    %3223 = vxpose.xlu0.c.b16.cont [5/8] 0, 128
    %3224 = vxpose.xlu0.c.b16.cont [6/8] 0, 128
    %3225 = vxpose.xlu0.c.b16.cont [7/8] 0, 128
    %3226 = vxpose.xlu0.c.b16.end [8/8] 0, 128
    %v3227 = vpop.trf.xlu0
    %v3228 = vpop.trf.xlu0
    %v3229 = vpop.trf.xlu0
    %v3230 = vpop.trf.xlu0
    %v3231 = vpop.trf.xlu0
    %v3232 = vpop.trf.xlu0
    %v3233 = vpop.trf.xlu0
    %v3234 = vpop.trf.xlu0
    %3235 = vxpose.xlu0.c.b16.start [1/8] %v2469, 128
    %3236 = vxpose.xlu0.c.b16.cont [2/8] 0, 128
    %3237 = vxpose.xlu0.c.b16.cont [3/8] 0, 128
    %3238 = vxpose.xlu0.c.b16.cont [4/8] 0, 128
    %3239 = vxpose.xlu0.c.b16.cont [5/8] 0, 128
    %3240 = vxpose.xlu0.c.b16.cont [6/8] 0, 128
    %3241 = vxpose.xlu0.c.b16.cont [7/8] 0, 128
    %3242 = vxpose.xlu0.c.b16.end [8/8] 0, 128
    %v3243 = vpop.trf.xlu0
    %v3244 = vpop.trf.xlu0
    %v3245 = vpop.trf.xlu0
    %v3246 = vpop.trf.xlu0
    %v3247 = vpop.trf.xlu0
    %v3248 = vpop.trf.xlu0
    %v3249 = vpop.trf.xlu0
    %v3250 = vpop.trf.xlu0
    %3251 = vxpose.xlu0.c.b16.start [1/8] %v2470, 128
    %3252 = vxpose.xlu0.c.b16.cont [2/8] 0, 128
    %3253 = vxpose.xlu0.c.b16.cont [3/8] 0, 128
    %3254 = vxpose.xlu0.c.b16.cont [4/8] 0, 128
    %3255 = vxpose.xlu0.c.b16.cont [5/8] 0, 128
    %3256 = vxpose.xlu0.c.b16.cont [6/8] 0, 128
    %3257 = vxpose.xlu0.c.b16.cont [7/8] 0, 128
    %3258 = vxpose.xlu0.c.b16.end [8/8] 0, 128
    %v3259 = vpop.trf.xlu0
    %v3260 = vpop.trf.xlu0
    %v3261 = vpop.trf.xlu0
    %v3262 = vpop.trf.xlu0
    %v3263 = vpop.trf.xlu0
    %v3264 = vpop.trf.xlu0
    %v3265 = vpop.trf.xlu0
    %v3266 = vpop.trf.xlu0
    %3267 = vxpose.xlu0.c.b16.start [1/8] %v2471, 128
    %3268 = vxpose.xlu0.c.b16.cont [2/8] 0, 128
    %3269 = vxpose.xlu0.c.b16.cont [3/8] 0, 128
    %3270 = vxpose.xlu0.c.b16.cont [4/8] 0, 128
    %3271 = vxpose.xlu0.c.b16.cont [5/8] 0, 128
    %3272 = vxpose.xlu0.c.b16.cont [6/8] 0, 128
    %3273 = vxpose.xlu0.c.b16.cont [7/8] 0, 128
    %3274 = vxpose.xlu0.c.b16.end [8/8] 0, 128
    %v3275 = vpop.trf.xlu0
    %v3276 = vpop.trf.xlu0
    %v3277 = vpop.trf.xlu0
    %v3278 = vpop.trf.xlu0
    %v3279 = vpop.trf.xlu0
    %v3280 = vpop.trf.xlu0
    %v3281 = vpop.trf.xlu0
    %v3282 = vpop.trf.xlu0
    %3283 = vxpose.xlu0.c.b16.start [1/8] %v2472, 128
    %3284 = vxpose.xlu0.c.b16.cont [2/8] 0, 128
    %3285 = vxpose.xlu0.c.b16.cont [3/8] 0, 128
    %3286 = vxpose.xlu0.c.b16.cont [4/8] 0, 128
    %3287 = vxpose.xlu0.c.b16.cont [5/8] 0, 128
    %3288 = vxpose.xlu0.c.b16.cont [6/8] 0, 128
    %3289 = vxpose.xlu0.c.b16.cont [7/8] 0, 128
    %3290 = vxpose.xlu0.c.b16.end [8/8] 0, 128
    %v3291 = vpop.trf.xlu0
    %v3292 = vpop.trf.xlu0
    %v3293 = vpop.trf.xlu0
    %v3294 = vpop.trf.xlu0
    %v3295 = vpop.trf.xlu0
    %v3296 = vpop.trf.xlu0
    %v3297 = vpop.trf.xlu0
    %v3298 = vpop.trf.xlu0
    %3299 = vxpose.xlu0.c.b16.start [1/8] %v2473, 128
    %3300 = vxpose.xlu0.c.b16.cont [2/8] 0, 128
    %3301 = vxpose.xlu0.c.b16.cont [3/8] 0, 128
    %3302 = vxpose.xlu0.c.b16.cont [4/8] 0, 128
    %3303 = vxpose.xlu0.c.b16.cont [5/8] 0, 128
    %3304 = vxpose.xlu0.c.b16.cont [6/8] 0, 128
    %3305 = vxpose.xlu0.c.b16.cont [7/8] 0, 128
    %3306 = vxpose.xlu0.c.b16.end [8/8] 0, 128
    %v3307 = vpop.trf.xlu0
    %v3308 = vpop.trf.xlu0
    %v3309 = vpop.trf.xlu0
    %v3310 = vpop.trf.xlu0
    %v3311 = vpop.trf.xlu0
    %v3312 = vpop.trf.xlu0
    %v3313 = vpop.trf.xlu0
    %v3314 = vpop.trf.xlu0
    %3315 = vxpose.xlu0.c.b16.start [1/8] %v2474, 128
    %3316 = vxpose.xlu0.c.b16.cont [2/8] 0, 128
    %3317 = vxpose.xlu0.c.b16.cont [3/8] 0, 128
    %3318 = vxpose.xlu0.c.b16.cont [4/8] 0, 128
    %3319 = vxpose.xlu0.c.b16.cont [5/8] 0, 128
    %3320 = vxpose.xlu0.c.b16.cont [6/8] 0, 128
    %3321 = vxpose.xlu0.c.b16.cont [7/8] 0, 128
    %3322 = vxpose.xlu0.c.b16.end [8/8] 0, 128
    %v3323 = vpop.trf.xlu0
    %v3324 = vpop.trf.xlu0
    %v3325 = vpop.trf.xlu0
    %v3326 = vpop.trf.xlu0
    %v3327 = vpop.trf.xlu0
    %v3328 = vpop.trf.xlu0
    %v3329 = vpop.trf.xlu0
    %v3330 = vpop.trf.xlu0
    %v3331 = vcombine.low %v3211, %v3275
    %v3333 = vunpack.c.l.s4 1983009808
    %v3334 = vunpack.c.0.s8 %v3333
    %v3335 = vlaneseq
    %v3336 = vshrl.u32 %v3335, 7
    %v3337 = vsub.s32 %v3334, %v3336
    %v3338 = vrot.slane %v3331, %v3337
    %v3339 = vcombine.low %v3243, %v3307
    %v3341 = vunpack.c.l.s4 1983009808
    %v3342 = vunpack.c.0.s8 %v3341
    %v3343 = vlaneseq
    %v3344 = vshrl.u32 %v3343, 7
    %v3345 = vsub.s32 %v3342, %v3344
    %v3346 = vrot.slane %v3339, %v3345
    %v3347 = vcombine.low %v3338, %v3346
    %v3348 = vcombine.high %v3338, %v3346
    %v3350 = vunpack.c.l.s4 1934713408
    %v3351 = vunpack.c.0.s8 %v3350
    %v3352 = vlaneseq
    %v3353 = vshrl.u32 %v3352, 7
    %v3354 = vsub.s32 %v3351, %v3353
    %v3355 = vrot.slane %v3347, %v3354
    %v3357 = vunpack.c.l.s4 1934713408
    %v3358 = vunpack.c.0.s8 %v3357
    %v3359 = vlaneseq
    %v3360 = vshrl.u32 %v3359, 7
    %v3361 = vsub.s32 %v3358, %v3360
    %v3362 = vrot.slane %v3348, %v3361
    %v3363 = vcombine.high %v3355, 0
    %v3364 = vcombine.high %v3362, 0
    %v3365 = vcombine.low %v3227, %v3291
    %v3367 = vunpack.c.l.s4 1983009808
    %v3368 = vunpack.c.0.s8 %v3367
    %v3369 = vlaneseq
    %v3370 = vshrl.u32 %v3369, 7
    %v3371 = vsub.s32 %v3368, %v3370
    %v3372 = vrot.slane %v3365, %v3371
    %v3373 = vcombine.low %v3259, %v3323
    %v3375 = vunpack.c.l.s4 1983009808
    %v3376 = vunpack.c.0.s8 %v3375
    %v3377 = vlaneseq
    %v3378 = vshrl.u32 %v3377, 7
    %v3379 = vsub.s32 %v3376, %v3378
    %v3380 = vrot.slane %v3373, %v3379
    %v3381 = vcombine.low %v3372, %v3380
    %v3382 = vcombine.high %v3372, %v3380
    %v3384 = vunpack.c.l.s4 1934713408
    %v3385 = vunpack.c.0.s8 %v3384
    %v3386 = vlaneseq
    %v3387 = vshrl.u32 %v3386, 7
    %v3388 = vsub.s32 %v3385, %v3387
    %v3389 = vrot.slane %v3381, %v3388
    %v3391 = vunpack.c.l.s4 1934713408
    %v3392 = vunpack.c.0.s8 %v3391
    %v3393 = vlaneseq
    %v3394 = vshrl.u32 %v3393, 7
    %v3395 = vsub.s32 %v3392, %v3394
    %v3396 = vrot.slane %v3382, %v3395
    %v3397 = vcombine.high %v3389, 0
    %v3398 = vcombine.high %v3396, 0
    %v3401 = vpack.i.b16 %v3389, %v3355
    %v3403 = vshrl.u32 %v3355, 16
    %v3404 = vshrl.u32 %v3389, 16
    %v3405 = vpack.i.b16 %v3404, %v3403
    %v3409 = vpack.i.b16 %v3397, %v3363
    %v3411 = vshrl.u32 %v3363, 16
    %v3412 = vshrl.u32 %v3397, 16
    %v3413 = vpack.i.b16 %v3412, %v3411
    %v3417 = vpack.i.b16 %v3396, %v3362
    %v3419 = vshrl.u32 %v3362, 16
    %v3420 = vshrl.u32 %v3396, 16
    %v3421 = vpack.i.b16 %v3420, %v3419
    %v3425 = vpack.i.b16 %v3398, %v3364
    %v3427 = vshrl.u32 %v3364, 16
    %v3428 = vshrl.u32 %v3398, 16
    %v3429 = vpack.i.b16 %v3428, %v3427
    %3431 = vxpose.xlu0.c.b16.start [1/8] %v3401, 128
    %3432 = vxpose.xlu0.c.b16.cont [2/8] 0, 128
    %3433 = vxpose.xlu0.c.b16.cont [3/8] 0, 128
    %3434 = vxpose.xlu0.c.b16.cont [4/8] 0, 128
    %3435 = vxpose.xlu0.c.b16.cont [5/8] 0, 128
    %3436 = vxpose.xlu0.c.b16.cont [6/8] 0, 128
    %3437 = vxpose.xlu0.c.b16.cont [7/8] 0, 128
    %3438 = vxpose.xlu0.c.b16.end [8/8] 0, 128
    %v3439 = vpop.trf.xlu0
    %v3440 = vpop.trf.xlu0
    %v3441 = vpop.trf.xlu0
    %v3442 = vpop.trf.xlu0
    %v3443 = vpop.trf.xlu0
    %v3444 = vpop.trf.xlu0
    %v3445 = vpop.trf.xlu0
    %v3446 = vpop.trf.xlu0
    %3447 = vxpose.xlu0.c.b16.start [1/8] %v3405, 128
    %3448 = vxpose.xlu0.c.b16.cont [2/8] 0, 128
    %3449 = vxpose.xlu0.c.b16.cont [3/8] 0, 128
    %3450 = vxpose.xlu0.c.b16.cont [4/8] 0, 128
    %3451 = vxpose.xlu0.c.b16.cont [5/8] 0, 128
    %3452 = vxpose.xlu0.c.b16.cont [6/8] 0, 128
    %3453 = vxpose.xlu0.c.b16.cont [7/8] 0, 128
    %3454 = vxpose.xlu0.c.b16.end [8/8] 0, 128
    %v3455 = vpop.trf.xlu0
    %v3456 = vpop.trf.xlu0
    %v3457 = vpop.trf.xlu0
    %v3458 = vpop.trf.xlu0
    %v3459 = vpop.trf.xlu0
    %v3460 = vpop.trf.xlu0
    %v3461 = vpop.trf.xlu0
    %v3462 = vpop.trf.xlu0
    %3463 = vxpose.xlu0.c.b16.start [1/8] %v3409, 128
    %3464 = vxpose.xlu0.c.b16.cont [2/8] 0, 128
    %3465 = vxpose.xlu0.c.b16.cont [3/8] 0, 128
    %3466 = vxpose.xlu0.c.b16.cont [4/8] 0, 128
    %3467 = vxpose.xlu0.c.b16.cont [5/8] 0, 128
    %3468 = vxpose.xlu0.c.b16.cont [6/8] 0, 128
    %3469 = vxpose.xlu0.c.b16.cont [7/8] 0, 128
    %3470 = vxpose.xlu0.c.b16.end [8/8] 0, 128
    %v3471 = vpop.trf.xlu0
    %v3472 = vpop.trf.xlu0
    %v3473 = vpop.trf.xlu0
    %v3474 = vpop.trf.xlu0
    %v3475 = vpop.trf.xlu0
    %v3476 = vpop.trf.xlu0
    %v3477 = vpop.trf.xlu0
    %v3478 = vpop.trf.xlu0
    %3479 = vxpose.xlu0.c.b16.start [1/8] %v3413, 128
    %3480 = vxpose.xlu0.c.b16.cont [2/8] 0, 128
    %3481 = vxpose.xlu0.c.b16.cont [3/8] 0, 128
    %3482 = vxpose.xlu0.c.b16.cont [4/8] 0, 128
    %3483 = vxpose.xlu0.c.b16.cont [5/8] 0, 128
    %3484 = vxpose.xlu0.c.b16.cont [6/8] 0, 128
    %3485 = vxpose.xlu0.c.b16.cont [7/8] 0, 128
    %3486 = vxpose.xlu0.c.b16.end [8/8] 0, 128
    %v3487 = vpop.trf.xlu0
    %v3488 = vpop.trf.xlu0
    %v3489 = vpop.trf.xlu0
    %v3490 = vpop.trf.xlu0
    %v3491 = vpop.trf.xlu0
    %v3492 = vpop.trf.xlu0
    %v3493 = vpop.trf.xlu0
    %v3494 = vpop.trf.xlu0
    %3495 = vxpose.xlu0.c.b16.start [1/8] %v3417, 128
    %3496 = vxpose.xlu0.c.b16.cont [2/8] 0, 128
    %3497 = vxpose.xlu0.c.b16.cont [3/8] 0, 128
    %3498 = vxpose.xlu0.c.b16.cont [4/8] 0, 128
    %3499 = vxpose.xlu0.c.b16.cont [5/8] 0, 128
    %3500 = vxpose.xlu0.c.b16.cont [6/8] 0, 128
    %3501 = vxpose.xlu0.c.b16.cont [7/8] 0, 128
    %3502 = vxpose.xlu0.c.b16.end [8/8] 0, 128
    %v3503 = vpop.trf.xlu0
    %v3504 = vpop.trf.xlu0
    %v3505 = vpop.trf.xlu0
    %v3506 = vpop.trf.xlu0
    %v3507 = vpop.trf.xlu0
    %v3508 = vpop.trf.xlu0
    %v3509 = vpop.trf.xlu0
    %v3510 = vpop.trf.xlu0
    %3511 = vxpose.xlu0.c.b16.start [1/8] %v3421, 128
    %3512 = vxpose.xlu0.c.b16.cont [2/8] 0, 128
    %3513 = vxpose.xlu0.c.b16.cont [3/8] 0, 128
    %3514 = vxpose.xlu0.c.b16.cont [4/8] 0, 128
    %3515 = vxpose.xlu0.c.b16.cont [5/8] 0, 128
    %3516 = vxpose.xlu0.c.b16.cont [6/8] 0, 128
    %3517 = vxpose.xlu0.c.b16.cont [7/8] 0, 128
    %3518 = vxpose.xlu0.c.b16.end [8/8] 0, 128
    %v3519 = vpop.trf.xlu0
    %v3520 = vpop.trf.xlu0
    %v3521 = vpop.trf.xlu0
    %v3522 = vpop.trf.xlu0
    %v3523 = vpop.trf.xlu0
    %v3524 = vpop.trf.xlu0
    %v3525 = vpop.trf.xlu0
    %v3526 = vpop.trf.xlu0
    %3527 = vxpose.xlu0.c.b16.start [1/8] %v3425, 128
    %3528 = vxpose.xlu0.c.b16.cont [2/8] 0, 128
    %3529 = vxpose.xlu0.c.b16.cont [3/8] 0, 128
    %3530 = vxpose.xlu0.c.b16.cont [4/8] 0, 128
    %3531 = vxpose.xlu0.c.b16.cont [5/8] 0, 128
    %3532 = vxpose.xlu0.c.b16.cont [6/8] 0, 128
    %3533 = vxpose.xlu0.c.b16.cont [7/8] 0, 128
    %3534 = vxpose.xlu0.c.b16.end [8/8] 0, 128
    %v3535 = vpop.trf.xlu0
    %v3536 = vpop.trf.xlu0
    %v3537 = vpop.trf.xlu0
    %v3538 = vpop.trf.xlu0
    %v3539 = vpop.trf.xlu0
    %v3540 = vpop.trf.xlu0
    %v3541 = vpop.trf.xlu0
    %v3542 = vpop.trf.xlu0
    %3543 = vxpose.xlu0.c.b16.start [1/8] %v3429, 128
    %3544 = vxpose.xlu0.c.b16.cont [2/8] 0, 128
    %3545 = vxpose.xlu0.c.b16.cont [3/8] 0, 128
    %3546 = vxpose.xlu0.c.b16.cont [4/8] 0, 128
    %3547 = vxpose.xlu0.c.b16.cont [5/8] 0, 128
    %3548 = vxpose.xlu0.c.b16.cont [6/8] 0, 128
    %3549 = vxpose.xlu0.c.b16.cont [7/8] 0, 128
    %3550 = vxpose.xlu0.c.b16.end [8/8] 0, 128
    %v3551 = vpop.trf.xlu0
    %v3552 = vpop.trf.xlu0
    %v3553 = vpop.trf.xlu0
    %v3554 = vpop.trf.xlu0
    %v3555 = vpop.trf.xlu0
    %v3556 = vpop.trf.xlu0
    %v3557 = vpop.trf.xlu0
    %v3558 = vpop.trf.xlu0
    %v3559 = vcombine.low %v3439, %v3503
    %v3561 = vunpack.c.l.s4 1983009808
    %v3562 = vunpack.c.0.s8 %v3561
    %v3563 = vlaneseq
    %v3564 = vshrl.u32 %v3563, 7
    %v3565 = vsub.s32 %v3562, %v3564
    %v3566 = vrot.slane %v3559, %v3565
    %v3567 = vcombine.low %v3471, %v3535
    %v3569 = vunpack.c.l.s4 1983009808
    %v3570 = vunpack.c.0.s8 %v3569
    %v3571 = vlaneseq
    %v3572 = vshrl.u32 %v3571, 7
    %v3573 = vsub.s32 %v3570, %v3572
    %v3574 = vrot.slane %v3567, %v3573
    %v3575 = vcombine.low %v3566, %v3574
    %v3577 = vunpack.c.l.s4 1934713408
    %v3578 = vunpack.c.0.s8 %v3577
    %v3579 = vlaneseq
    %v3580 = vshrl.u32 %v3579, 7
    %v3581 = vsub.s32 %v3578, %v3580
    %v3582 = vrot.slane %v3575, %v3581
    %v3583 = vcombine.high %v3582, 0
    %v3584 = vcombine.low %v3455, %v3519
    %v3586 = vunpack.c.l.s4 1983009808
    %v3587 = vunpack.c.0.s8 %v3586
    %v3588 = vlaneseq
    %v3589 = vshrl.u32 %v3588, 7
    %v3590 = vsub.s32 %v3587, %v3589
    %v3591 = vrot.slane %v3584, %v3590
    %v3592 = vcombine.low %v3487, %v3551
    %v3594 = vunpack.c.l.s4 1983009808
    %v3595 = vunpack.c.0.s8 %v3594
    %v3596 = vlaneseq
    %v3597 = vshrl.u32 %v3596, 7
    %v3598 = vsub.s32 %v3595, %v3597
    %v3599 = vrot.slane %v3592, %v3598
    %v3600 = vcombine.low %v3591, %v3599
    %v3602 = vunpack.c.l.s4 1934713408
    %v3603 = vunpack.c.0.s8 %v3602
    %v3604 = vlaneseq
    %v3605 = vshrl.u32 %v3604, 7
    %v3606 = vsub.s32 %v3603, %v3605
    %v3607 = vrot.slane %v3600, %v3606
    %v3608 = vcombine.high %v3607, 0
    %v3611 = vpack.i.b16 %v3607, %v3582
    %v3612 = vshrl.u32 %v3582, 16
    %v3613 = vshrl.u32 %v3607, 16
    %v3614 = vpack.i.b16 %v3613, %v3612
    %v3617 = vpack.i.b16 %v3608, %v3583
    %v3618 = vshrl.u32 %v3583, 16
    %v3619 = vshrl.u32 %v3608, 16
    %v3620 = vpack.i.b16 %v3619, %v3618
    %v3622 = vsel %vm1085, %v3611, 0
    %v3625 = vsel %vm1085, %v3199, 0
    %3627 = vmatprep.subr.bf16.mxu0 0
    %3628 = vmatpush1.bf16.xpose.msra.mxu0 0
    %3629 = vmatprep.subr.bf16.mxu0 0
    %3630 = vmatpush1.bf16.xpose.msra.mxu0 0
    %3631 = vmatprep.subr.bf16.mxu0 0
    %3632 = vmatpush1.bf16.xpose.msra.mxu0 0
    %3633 = vmatprep.subr.bf16.mxu0 0
    %3634 = vmatpush1.bf16.xpose.msra.mxu0 0
    %3635 = vmatprep.subr.bf16.mxu0 0
    %3636 = vmatpush1.bf16.xpose.msra.mxu0 0
    %3637 = vmatprep.subr.bf16.mxu0 0
    %3638 = vmatpush1.bf16.xpose.msra.mxu0 0
    %3639 = vmatprep.subr.bf16.mxu0 0
    %3640 = vmatpush1.bf16.xpose.msra.mxu0 0
    %3641 = vmatprep.subr.bf16.mxu0 0
    %3642 = vmatpush1.bf16.xpose.msra.mxu0 %v3625
    %3643 = vmatprep.subr.bf16.mxu0 0
    %3644 = vmatpush2.bf16.xpose.msra.mxu0 0
    %3645 = vmatprep.subr.bf16.mxu0 0
    %3646 = vmatpush2.bf16.xpose.msra.mxu0 0
    %3647 = vmatprep.subr.bf16.mxu0 0
    %3648 = vmatpush2.bf16.xpose.msra.mxu0 0
    %3649 = vmatprep.subr.bf16.mxu0 0
    %3650 = vmatpush2.bf16.xpose.msra.mxu0 0
    %3651 = vmatprep.subr.bf16.mxu0 0
    %3652 = vmatpush2.bf16.xpose.msra.mxu0 0
    %3653 = vmatprep.subr.bf16.mxu0 0
    %3654 = vmatpush2.bf16.xpose.msra.mxu0 0
    %3655 = vmatprep.subr.bf16.mxu0 0
    %3656 = vmatpush2.bf16.xpose.msra.mxu0 0
    %3657 = vmatprep.subr.bf16.mxu0 0
    %3658 = vmatpush2.bf16.xpose.msra.mxu0 0
    %3659 = vmatprep.mubr.bf16.mxu0 0
    %3660 = vmatmul.mubr.bf16.gmra.mxu0 %v3622
    %v3661 = vpop.f32.mrf.mxu0
    %v3662 = vadd.f32 0.0, %v3661
    %v3663 = vpop.f32.mrf.mxu0
    %v3664 = vpop.f32.mrf.mxu0
    %v3665 = vpop.f32.mrf.mxu0
    %3666 = vdwg.mxu0
    %v3668 = vsel %vm1085, %v3614, 0
    %v3671 = vsel %vm1085, %v3200, 0
    %3673 = vmatprep.subr.bf16.mxu0 0
    %3674 = vmatpush1.bf16.xpose.msra.mxu0 0
    %3675 = vmatprep.subr.bf16.mxu0 0
    %3676 = vmatpush1.bf16.xpose.msra.mxu0 0
    %3677 = vmatprep.subr.bf16.mxu0 0
    %3678 = vmatpush1.bf16.xpose.msra.mxu0 0
    %3679 = vmatprep.subr.bf16.mxu0 0
    %3680 = vmatpush1.bf16.xpose.msra.mxu0 0
    %3681 = vmatprep.subr.bf16.mxu0 0
    %3682 = vmatpush1.bf16.xpose.msra.mxu0 0
    %3683 = vmatprep.subr.bf16.mxu0 0
    %3684 = vmatpush1.bf16.xpose.msra.mxu0 0
    %3685 = vmatprep.subr.bf16.mxu0 0
    %3686 = vmatpush1.bf16.xpose.msra.mxu0 0
    %3687 = vmatprep.subr.bf16.mxu0 0
    %3688 = vmatpush1.bf16.xpose.msra.mxu0 %v3671
    %3689 = vmatprep.subr.bf16.mxu0 0
    %3690 = vmatpush2.bf16.xpose.msra.mxu0 0
    %3691 = vmatprep.subr.bf16.mxu0 0
    %3692 = vmatpush2.bf16.xpose.msra.mxu0 0
    %3693 = vmatprep.subr.bf16.mxu0 0
    %3694 = vmatpush2.bf16.xpose.msra.mxu0 0
    %3695 = vmatprep.subr.bf16.mxu0 0
    %3696 = vmatpush2.bf16.xpose.msra.mxu0 0
    %3697 = vmatprep.subr.bf16.mxu0 0
    %3698 = vmatpush2.bf16.xpose.msra.mxu0 0
    %3699 = vmatprep.subr.bf16.mxu0 0
    %3700 = vmatpush2.bf16.xpose.msra.mxu0 0
    %3701 = vmatprep.subr.bf16.mxu0 0
    %3702 = vmatpush2.bf16.xpose.msra.mxu0 0
    %3703 = vmatprep.subr.bf16.mxu0 0
    %3704 = vmatpush2.bf16.xpose.msra.mxu0 0
    %3705 = vmatprep.mubr.bf16.mxu0 0
    %3706 = vmatmul.mubr.bf16.gmra.mxu0 %v3668
    %v3707 = vpop.f32.mrf.mxu0
    %v3708 = vadd.f32 0.0, %v3707
    %v3709 = vpop.f32.mrf.mxu0
    %v3710 = vpop.f32.mrf.mxu0
    %v3711 = vpop.f32.mrf.mxu0
    %3712 = vdwg.mxu0
    %v3714 = vsel %vm1085, %v3617, 0
    %v3717 = vsel %vm1085, %v3201, 0
    %3719 = vmatprep.subr.bf16.mxu0 0
    %3720 = vmatpush1.bf16.xpose.msra.mxu0 0
    %3721 = vmatprep.subr.bf16.mxu0 0
    %3722 = vmatpush1.bf16.xpose.msra.mxu0 0
    %3723 = vmatprep.subr.bf16.mxu0 0
    %3724 = vmatpush1.bf16.xpose.msra.mxu0 0
    %3725 = vmatprep.subr.bf16.mxu0 0
    %3726 = vmatpush1.bf16.xpose.msra.mxu0 0
    %3727 = vmatprep.subr.bf16.mxu0 0
    %3728 = vmatpush1.bf16.xpose.msra.mxu0 0
    %3729 = vmatprep.subr.bf16.mxu0 0
    %3730 = vmatpush1.bf16.xpose.msra.mxu0 0
    %3731 = vmatprep.subr.bf16.mxu0 0
    %3732 = vmatpush1.bf16.xpose.msra.mxu0 0
    %3733 = vmatprep.subr.bf16.mxu0 0
    %3734 = vmatpush1.bf16.xpose.msra.mxu0 %v3717
    %3735 = vmatprep.subr.bf16.mxu0 0
    %3736 = vmatpush2.bf16.xpose.msra.mxu0 0
    %3737 = vmatprep.subr.bf16.mxu0 0
    %3738 = vmatpush2.bf16.xpose.msra.mxu0 0
    %3739 = vmatprep.subr.bf16.mxu0 0
    %3740 = vmatpush2.bf16.xpose.msra.mxu0 0
    %3741 = vmatprep.subr.bf16.mxu0 0
    %3742 = vmatpush2.bf16.xpose.msra.mxu0 0
    %3743 = vmatprep.subr.bf16.mxu0 0
    %3744 = vmatpush2.bf16.xpose.msra.mxu0 0
    %3745 = vmatprep.subr.bf16.mxu0 0
    %3746 = vmatpush2.bf16.xpose.msra.mxu0 0
    %3747 = vmatprep.subr.bf16.mxu0 0
    %3748 = vmatpush2.bf16.xpose.msra.mxu0 0
    %3749 = vmatprep.subr.bf16.mxu0 0
    %3750 = vmatpush2.bf16.xpose.msra.mxu0 0
    %3751 = vmatprep.mubr.bf16.mxu0 0
    %3752 = vmatmul.mubr.bf16.gmra.mxu0 %v3714
    %v3753 = vpop.f32.mrf.mxu0
    %v3754 = vadd.f32 0.0, %v3753
    %v3755 = vpop.f32.mrf.mxu0
    %v3756 = vpop.f32.mrf.mxu0
    %v3757 = vpop.f32.mrf.mxu0
    %3758 = vdwg.mxu0
    %v3760 = vsel %vm1085, %v3620, 0
    %v3763 = vsel %vm1085, %v3202, 0
    %3765 = vmatprep.subr.bf16.mxu0 0
    %3766 = vmatpush1.bf16.xpose.msra.mxu0 0
    %3767 = vmatprep.subr.bf16.mxu0 0
    %3768 = vmatpush1.bf16.xpose.msra.mxu0 0
    %3769 = vmatprep.subr.bf16.mxu0 0
    %3770 = vmatpush1.bf16.xpose.msra.mxu0 0
    %3771 = vmatprep.subr.bf16.mxu0 0
    %3772 = vmatpush1.bf16.xpose.msra.mxu0 0
    %3773 = vmatprep.subr.bf16.mxu0 0
    %3774 = vmatpush1.bf16.xpose.msra.mxu0 0
    %3775 = vmatprep.subr.bf16.mxu0 0
    %3776 = vmatpush1.bf16.xpose.msra.mxu0 0
    %3777 = vmatprep.subr.bf16.mxu0 0
    %3778 = vmatpush1.bf16.xpose.msra.mxu0 0
    %3779 = vmatprep.subr.bf16.mxu0 0
    %3780 = vmatpush1.bf16.xpose.msra.mxu0 %v3763
    %3781 = vmatprep.subr.bf16.mxu0 0
    %3782 = vmatpush2.bf16.xpose.msra.mxu0 0
    %3783 = vmatprep.subr.bf16.mxu0 0
    %3784 = vmatpush2.bf16.xpose.msra.mxu0 0
    %3785 = vmatprep.subr.bf16.mxu0 0
    %3786 = vmatpush2.bf16.xpose.msra.mxu0 0
    %3787 = vmatprep.subr.bf16.mxu0 0
    %3788 = vmatpush2.bf16.xpose.msra.mxu0 0
    %3789 = vmatprep.subr.bf16.mxu0 0
    %3790 = vmatpush2.bf16.xpose.msra.mxu0 0
    %3791 = vmatprep.subr.bf16.mxu0 0
    %3792 = vmatpush2.bf16.xpose.msra.mxu0 0
    %3793 = vmatprep.subr.bf16.mxu0 0
    %3794 = vmatpush2.bf16.xpose.msra.mxu0 0
    %3795 = vmatprep.subr.bf16.mxu0 0
    %3796 = vmatpush2.bf16.xpose.msra.mxu0 0
    %3797 = vmatprep.mubr.bf16.mxu0 0
    %3798 = vmatmul.mubr.bf16.gmra.mxu0 %v3760
    %v3799 = vpop.f32.mrf.mxu0
    %v3800 = vadd.f32 0.0, %v3799
    %v3801 = vpop.f32.mrf.mxu0
    %v3802 = vpop.f32.mrf.mxu0
    %v3803 = vpop.f32.mrf.mxu0
    %3804 = vdwg.mxu0
    %3805 = vxpose.xlu0.b32.start [1/16] %v3662, 128
    %3806 = vxpose.xlu0.b32.cont [2/16] 0.0, 128
    %3807 = vxpose.xlu0.b32.cont [3/16] 0.0, 128
    %3808 = vxpose.xlu0.b32.cont [4/16] 0.0, 128
    %3809 = vxpose.xlu0.b32.cont [5/16] 0.0, 128
    %3810 = vxpose.xlu0.b32.cont [6/16] 0.0, 128
    %3811 = vxpose.xlu0.b32.cont [7/16] 0.0, 128
    %3812 = vxpose.xlu0.b32.cont [8/16] 0.0, 128
    %3813 = vxpose.xlu0.b32.cont [9/16] 0.0, 128
    %3814 = vxpose.xlu0.b32.cont [10/16] 0.0, 128
    %3815 = vxpose.xlu0.b32.cont [11/16] 0.0, 128
    %3816 = vxpose.xlu0.b32.cont [12/16] 0.0, 128
    %3817 = vxpose.xlu0.b32.cont [13/16] 0.0, 128
    %3818 = vxpose.xlu0.b32.cont [14/16] 0.0, 128
    %3819 = vxpose.xlu0.b32.cont [15/16] 0.0, 128
    %3820 = vxpose.xlu0.b32.end [16/16] 0.0, 128
    %v3821 = vpop.trf.xlu0
    %v3822 = vpop.trf.xlu0
    %v3823 = vpop.trf.xlu0
    %v3824 = vpop.trf.xlu0
    %v3825 = vpop.trf.xlu0
    %v3826 = vpop.trf.xlu0
    %v3827 = vpop.trf.xlu0
    %v3828 = vpop.trf.xlu0
    %v3829 = vpop.trf.xlu0
    %v3830 = vpop.trf.xlu0
    %v3831 = vpop.trf.xlu0
    %v3832 = vpop.trf.xlu0
    %v3833 = vpop.trf.xlu0
    %v3834 = vpop.trf.xlu0
    %v3835 = vpop.trf.xlu0
    %v3836 = vpop.trf.xlu0
    %3837 = vxpose.xlu0.b32.start [1/16] %v3708, 128
    %3838 = vxpose.xlu0.b32.cont [2/16] 0.0, 128
    %3839 = vxpose.xlu0.b32.cont [3/16] 0.0, 128
    %3840 = vxpose.xlu0.b32.cont [4/16] 0.0, 128
    %3841 = vxpose.xlu0.b32.cont [5/16] 0.0, 128
    %3842 = vxpose.xlu0.b32.cont [6/16] 0.0, 128
    %3843 = vxpose.xlu0.b32.cont [7/16] 0.0, 128
    %3844 = vxpose.xlu0.b32.cont [8/16] 0.0, 128
    %3845 = vxpose.xlu0.b32.cont [9/16] 0.0, 128
    %3846 = vxpose.xlu0.b32.cont [10/16] 0.0, 128
    %3847 = vxpose.xlu0.b32.cont [11/16] 0.0, 128
    %3848 = vxpose.xlu0.b32.cont [12/16] 0.0, 128
    %3849 = vxpose.xlu0.b32.cont [13/16] 0.0, 128
    %3850 = vxpose.xlu0.b32.cont [14/16] 0.0, 128
    %3851 = vxpose.xlu0.b32.cont [15/16] 0.0, 128
    %3852 = vxpose.xlu0.b32.end [16/16] 0.0, 128
    %v3853 = vpop.trf.xlu0
    %v3854 = vpop.trf.xlu0
    %v3855 = vpop.trf.xlu0
    %v3856 = vpop.trf.xlu0
    %v3857 = vpop.trf.xlu0
    %v3858 = vpop.trf.xlu0
    %v3859 = vpop.trf.xlu0
    %v3860 = vpop.trf.xlu0
    %v3861 = vpop.trf.xlu0
    %v3862 = vpop.trf.xlu0
    %v3863 = vpop.trf.xlu0
    %v3864 = vpop.trf.xlu0
    %v3865 = vpop.trf.xlu0
    %v3866 = vpop.trf.xlu0
    %v3867 = vpop.trf.xlu0
    %v3868 = vpop.trf.xlu0
    %3869 = vxpose.xlu0.b32.start [1/16] %v3754, 128
    %3870 = vxpose.xlu0.b32.cont [2/16] 0.0, 128
    %3871 = vxpose.xlu0.b32.cont [3/16] 0.0, 128
    %3872 = vxpose.xlu0.b32.cont [4/16] 0.0, 128
    %3873 = vxpose.xlu0.b32.cont [5/16] 0.0, 128
    %3874 = vxpose.xlu0.b32.cont [6/16] 0.0, 128
    %3875 = vxpose.xlu0.b32.cont [7/16] 0.0, 128
    %3876 = vxpose.xlu0.b32.cont [8/16] 0.0, 128
    %3877 = vxpose.xlu0.b32.cont [9/16] 0.0, 128
    %3878 = vxpose.xlu0.b32.cont [10/16] 0.0, 128
    %3879 = vxpose.xlu0.b32.cont [11/16] 0.0, 128
    %3880 = vxpose.xlu0.b32.cont [12/16] 0.0, 128
    %3881 = vxpose.xlu0.b32.cont [13/16] 0.0, 128
    %3882 = vxpose.xlu0.b32.cont [14/16] 0.0, 128
    %3883 = vxpose.xlu0.b32.cont [15/16] 0.0, 128
    %3884 = vxpose.xlu0.b32.end [16/16] 0.0, 128
    %v3885 = vpop.trf.xlu0
    %v3886 = vpop.trf.xlu0
    %v3887 = vpop.trf.xlu0
    %v3888 = vpop.trf.xlu0
    %v3889 = vpop.trf.xlu0
    %v3890 = vpop.trf.xlu0
    %v3891 = vpop.trf.xlu0
    %v3892 = vpop.trf.xlu0
    %v3893 = vpop.trf.xlu0
    %v3894 = vpop.trf.xlu0
    %v3895 = vpop.trf.xlu0
    %v3896 = vpop.trf.xlu0
    %v3897 = vpop.trf.xlu0
    %v3898 = vpop.trf.xlu0
    %v3899 = vpop.trf.xlu0
    %v3900 = vpop.trf.xlu0
    %3901 = vxpose.xlu0.b32.start [1/16] %v3800, 128
    %3902 = vxpose.xlu0.b32.cont [2/16] 0.0, 128
    %3903 = vxpose.xlu0.b32.cont [3/16] 0.0, 128
    %3904 = vxpose.xlu0.b32.cont [4/16] 0.0, 128
    %3905 = vxpose.xlu0.b32.cont [5/16] 0.0, 128
    %3906 = vxpose.xlu0.b32.cont [6/16] 0.0, 128
    %3907 = vxpose.xlu0.b32.cont [7/16] 0.0, 128
    %3908 = vxpose.xlu0.b32.cont [8/16] 0.0, 128
    %3909 = vxpose.xlu0.b32.cont [9/16] 0.0, 128
    %3910 = vxpose.xlu0.b32.cont [10/16] 0.0, 128
    %3911 = vxpose.xlu0.b32.cont [11/16] 0.0, 128
    %3912 = vxpose.xlu0.b32.cont [12/16] 0.0, 128
    %3913 = vxpose.xlu0.b32.cont [13/16] 0.0, 128
    %3914 = vxpose.xlu0.b32.cont [14/16] 0.0, 128
    %3915 = vxpose.xlu0.b32.cont [15/16] 0.0, 128
    %3916 = vxpose.xlu0.b32.end [16/16] 0.0, 128
    %v3917 = vpop.trf.xlu0
    %v3918 = vpop.trf.xlu0
    %v3919 = vpop.trf.xlu0
    %v3920 = vpop.trf.xlu0
    %v3921 = vpop.trf.xlu0
    %v3922 = vpop.trf.xlu0
    %v3923 = vpop.trf.xlu0
    %v3924 = vpop.trf.xlu0
    %v3925 = vpop.trf.xlu0
    %v3926 = vpop.trf.xlu0
    %v3927 = vpop.trf.xlu0
    %v3928 = vpop.trf.xlu0
    %v3929 = vpop.trf.xlu0
    %v3930 = vpop.trf.xlu0
    %v3931 = vpop.trf.xlu0
    %v3932 = vpop.trf.xlu0
    %v3933 = vcombine.low %v3821, %v3885
    %v3934 = vcombine.high %v3821, %v3885
    %v3936 = vunpack.c.l.s4 1983009808
    %v3937 = vunpack.c.0.s8 %v3936
    %v3938 = vlaneseq
    %v3939 = vshrl.u32 %v3938, 7
    %v3940 = vsub.s32 %v3937, %v3939
    %v3941 = vrot.slane %v3933, %v3940
    %v3943 = vunpack.c.l.s4 1983009808
    %v3944 = vunpack.c.0.s8 %v3943
    %v3945 = vlaneseq
    %v3946 = vshrl.u32 %v3945, 7
    %v3947 = vsub.s32 %v3944, %v3946
    %v3948 = vrot.slane %v3934, %v3947
    %v3949 = vcombine.low %v3853, %v3917
    %v3950 = vcombine.high %v3853, %v3917
    %v3952 = vunpack.c.l.s4 1983009808
    %v3953 = vunpack.c.0.s8 %v3952
    %v3954 = vlaneseq
    %v3955 = vshrl.u32 %v3954, 7
    %v3956 = vsub.s32 %v3953, %v3955
    %v3957 = vrot.slane %v3949, %v3956
    %v3959 = vunpack.c.l.s4 1983009808
    %v3960 = vunpack.c.0.s8 %v3959
    %v3961 = vlaneseq
    %v3962 = vshrl.u32 %v3961, 7
    %v3963 = vsub.s32 %v3960, %v3962
    %v3964 = vrot.slane %v3950, %v3963
    %v3965 = vcombine.low %v3941, %v3957
    %v3966 = vcombine.high %v3941, %v3957
    %v3968 = vunpack.c.l.s4 1934713408
    %v3969 = vunpack.c.0.s8 %v3968
    %v3970 = vlaneseq
    %v3971 = vshrl.u32 %v3970, 7
    %v3972 = vsub.s32 %v3969, %v3971
    %v3973 = vrot.slane %v3965, %v3972
    %v3975 = vunpack.c.l.s4 1934713408
    %v3976 = vunpack.c.0.s8 %v3975
    %v3977 = vlaneseq
    %v3978 = vshrl.u32 %v3977, 7
    %v3979 = vsub.s32 %v3976, %v3978
    %v3980 = vrot.slane %v3966, %v3979
    %v3981 = vcombine.low %v3948, %v3964
    %v3982 = vcombine.high %v3948, %v3964
    %v3984 = vunpack.c.l.s4 1934713408
    %v3985 = vunpack.c.0.s8 %v3984
    %v3986 = vlaneseq
    %v3987 = vshrl.u32 %v3986, 7
    %v3988 = vsub.s32 %v3985, %v3987
    %v3989 = vrot.slane %v3981, %v3988
    %v3991 = vunpack.c.l.s4 1934713408
    %v3992 = vunpack.c.0.s8 %v3991
    %v3993 = vlaneseq
    %v3994 = vshrl.u32 %v3993, 7
    %v3995 = vsub.s32 %v3992, %v3994
    %v3996 = vrot.slane %v3982, %v3995
    %v3997 = vcombine.high %v3973, 0.0
    %v3998 = vcombine.high %v3980, 0.0
    %v3999 = vcombine.high %v3989, 0.0
    %v4000 = vcombine.high %v3996, 0.0
    %v4001 = vcombine.low %v3973, %v3980
    %v4003 = vunpack.c.l.s4 1983009808
    %v4004 = vunpack.c.0.s8 %v4003
    %v4005 = vlaneseq
    %v4006 = vshrl.u32 %v4005, 7
    %v4007 = vsub.s32 %v4004, %v4006
    %v4008 = vrot.slane %v4001, %v4007
    %v4009 = vcombine.low %v3997, %v3998
    %v4011 = vunpack.c.l.s4 1983009808
    %v4012 = vunpack.c.0.s8 %v4011
    %v4013 = vlaneseq
    %v4014 = vshrl.u32 %v4013, 7
    %v4015 = vsub.s32 %v4012, %v4014
    %v4016 = vrot.slane %v4009, %v4015
    %v4017 = vcombine.low %v3989, %v3996
    %v4019 = vunpack.c.l.s4 1983009808
    %v4020 = vunpack.c.0.s8 %v4019
    %v4021 = vlaneseq
    %v4022 = vshrl.u32 %v4021, 7
    %v4023 = vsub.s32 %v4020, %v4022
    %v4024 = vrot.slane %v4017, %v4023
    %v4025 = vcombine.low %v3999, %v4000
    %v4027 = vunpack.c.l.s4 1983009808
    %v4028 = vunpack.c.0.s8 %v4027
    %v4029 = vlaneseq
    %v4030 = vshrl.u32 %v4029, 7
    %v4031 = vsub.s32 %v4028, %v4030
    %v4032 = vrot.slane %v4025, %v4031
    %v4033 = vcombine.low %v4008, %v4016
    %v4034 = vcombine.high %v4008, %v4016
    %v4036 = vunpack.c.l.s4 1934713408
    %v4037 = vunpack.c.0.s8 %v4036
    %v4038 = vlaneseq
    %v4039 = vshrl.u32 %v4038, 7
    %v4040 = vsub.s32 %v4037, %v4039
    %v4041 = vrot.slane %v4033, %v4040
    %v4043 = vunpack.c.l.s4 1934713408
    %v4044 = vunpack.c.0.s8 %v4043
    %v4045 = vlaneseq
    %v4046 = vshrl.u32 %v4045, 7
    %v4047 = vsub.s32 %v4044, %v4046
    %v4048 = vrot.slane %v4034, %v4047
    %v4049 = vcombine.low %v4024, %v4032
    %v4050 = vcombine.high %v4024, %v4032
    %v4052 = vunpack.c.l.s4 1934713408
    %v4053 = vunpack.c.0.s8 %v4052
    %v4054 = vlaneseq
    %v4055 = vshrl.u32 %v4054, 7
    %v4056 = vsub.s32 %v4053, %v4055
    %v4057 = vrot.slane %v4049, %v4056
    %v4059 = vunpack.c.l.s4 1934713408
    %v4060 = vunpack.c.0.s8 %v4059
    %v4061 = vlaneseq
    %v4062 = vshrl.u32 %v4061, 7
    %v4063 = vsub.s32 %v4060, %v4062
    %v4064 = vrot.slane %v4050, %v4063
    %v4065 = vcombine.low %v4041, %v4057
    %v4066 = vcombine.high %v4041, %v4057
    %v4067 = vcombine.low %v4048, %v4064
    %v4068 = vcombine.high %v4048, %v4064
    %4070 = vrot.lane.b32.xlu0 %v4066, 8
    %v4071 = vpop.permute.xlu0 %4070
    %4074 = vrot.lane.b32.xlu0 %v4067, 16
    %v4075 = vpop.permute.xlu0 %4074
    %4078 = vrot.lane.b32.xlu0 %v4068, 24
    %v4079 = vpop.permute.xlu0 %4078
    %v4081 = vsel %vm1085, %v4065, %v4071
    %v4082 = vsel %vm2213, %v4081, %v4075
    %v4083 = vsel %vm2215, %v4082, %v4079
    %v4084 = vpack.c.bf16 %v4083, %v2216
    %v4085 = vld [vmem:[#allocation11] sm:$0xf]
    %v4086 = vld [vmem:[#allocation11 + $0x4] sm:$0xf]
    %v4087 = vld [vmem:[#allocation11 + $0x8] sm:$0xf]
    %v4088 = vld [vmem:[#allocation11 + $0xc] sm:$0xf]
    %v4089 = vld [vmem:[#allocation13] sm:$0x1]
    %v4091 = vlaneseq
    %v4092 = vshrl.u32 %v4091, 7
    %v4093 = vsub.s32 0, %v4092
    %v4094 = vrot.slane %v4089, %v4093
    %v4100 = vunpack.c.l.b16 %v4085
    %v4101 = vunpack.c.l.b16 %v4086
    %v4102 = vunpack.c.l.b16 %v4087
    %v4103 = vunpack.c.l.b16 %v4088
    %v4104 = vpack.c.b16 %v4101, %v4100
    %v4105 = vpack.c.b16 %v4103, %v4102
    %v4109 = vsel %vm174, %v4084, 0
    %4111 = vmatprep.subr.bf16.mxu0 0
    %4112 = vmatpush1.bf16.msra.mxu0 0
    %4113 = vmatprep.subr.bf16.mxu0 0
    %4114 = vmatpush1.bf16.msra.mxu0 0
    %4115 = vmatprep.subr.bf16.mxu0 0
    %4116 = vmatpush1.bf16.msra.mxu0 0
    %4117 = vmatprep.subr.bf16.mxu0 0
    %4118 = vmatpush1.bf16.msra.mxu0 0
    %4119 = vmatprep.subr.bf16.mxu0 0
    %4120 = vmatpush1.bf16.msra.mxu0 0
    %4121 = vmatprep.subr.bf16.mxu0 0
    %4122 = vmatpush1.bf16.msra.mxu0 0
    %4123 = vmatprep.subr.bf16.mxu0 0
    %4124 = vmatpush1.bf16.msra.mxu0 %v4105
    %4125 = vmatprep.subr.bf16.mxu0 0
    %4126 = vmatpush1.bf16.msra.mxu0 %v4104
    %4127 = vmatprep.subr.bf16.mxu0 0
    %4128 = vmatpush2.bf16.msra.mxu0 0
    %4129 = vmatprep.subr.bf16.mxu0 0
    %4130 = vmatpush2.bf16.msra.mxu0 0
    %4131 = vmatprep.subr.bf16.mxu0 0
    %4132 = vmatpush2.bf16.msra.mxu0 0
    %4133 = vmatprep.subr.bf16.mxu0 0
    %4134 = vmatpush2.bf16.msra.mxu0 0
    %4135 = vmatprep.subr.bf16.mxu0 0
    %4136 = vmatpush2.bf16.msra.mxu0 0
    %4137 = vmatprep.subr.bf16.mxu0 0
    %4138 = vmatpush2.bf16.msra.mxu0 0
    %4139 = vmatprep.subr.bf16.mxu0 0
    %4140 = vmatpush2.bf16.msra.mxu0 0
    %4141 = vmatprep.subr.bf16.mxu0 0
    %4142 = vmatpush2.bf16.msra.mxu0 0
    %4143 = vmatprep.mubr.bf16.mxu0 0
    %4144 = vmatmul.mubr.bf16.gmra.mxu0 %v4109
    %v4145 = vpop.f32.mrf.mxu0
    %v4146 = vadd.f32 %v4094, %v4145
    %v4147 = vpop.f32.mrf.mxu0
    %v4148 = vpop.f32.mrf.mxu0
    %v4149 = vadd.f32 %v4094, %v4148
    %v4150 = vpop.f32.mrf.mxu0
    %4151 = vdwg.mxu0
    %v4152 = vadd.f32 %v148, %v4146
    %v4153 = vadd.f32 %v149, %v4149
    %v4154 = vld [vmem:[%s14] sm:$0x1]
    %v4155 = vld [vmem:[%s15] sm:$0x1]
    %v4156 = vsel %vm174, %v4152, 0.0
    %4157 = vadd.xlane.f32.xlu0 %v4156
    %v4158 = vpop.xlane.xlu0 %4157
    %v4159 = vsel %vm174, %v4153, 0.0
    %4160 = vadd.xlane.f32.xlu0 %v4159
    %v4161 = vpop.xlane.xlu0 %4160
    %v4162 = vrcp.pop 32.0
    %v4163 = vmul.f32 %v4158, %v4162
    %v4164 = vmul.f32 %v4161, %v4162
    %v4165 = vsub.f32 %v4152, %v4163
    %v4166 = vsub.f32 %v4153, %v4164
    %v4167 = vmul.f32 %v4165, %v4165
    %v4168 = vmul.f32 %v4166, %v4166
    %v4169 = vsel %vm174, %v4167, 0.0
    %4170 = vadd.xlane.f32.xlu0 %v4169
    %v4171 = vpop.xlane.xlu0 %4170
    %v4172 = vsel %vm174, %v4168, 0.0
    %4173 = vadd.xlane.f32.xlu0 %v4172
    %v4174 = vpop.xlane.xlu0 %4173
    %v4175 = vrcp.pop 31.0
    %v4176 = vmul.f32 %v4171, %v4175
    %v4177 = vmul.f32 %v4174, %v4175
    %v4178 = vrsqrt.pop %v4176
    %v4179 = vmul.f32 %v4176, %v4178
    %vm4180 = vcmp.eq.f32.partialorder %v4176, inf
    %v4181 = vsel %vm4180, %v4176, %v4179
    %vm4182 = vcmp.eq.f32.partialorder %v4176, 0.0
    %v4183 = vand.u32 %v4176, 2147483648
    %v4184 = vsel %vm4182, %v4183, %v4181
    %v4185 = vrsqrt.pop %v4177
    %v4186 = vmul.f32 %v4177, %v4185
    %vm4187 = vcmp.eq.f32.partialorder %v4177, inf
    %v4188 = vsel %vm4187, %v4177, %v4186
    %vm4189 = vcmp.eq.f32.partialorder %v4177, 0.0
    %v4190 = vand.u32 %v4177, 2147483648
    %v4191 = vsel %vm4189, %v4190, %v4188
    %v4192 = vadd.f32 %v4184, 1e-06
    %v4193 = vadd.f32 %v4191, 1e-06
    %v4194 = vrcp.pop %v4192
    %v4195 = vrcp.pop %v4193
    %v4197 = vlaneseq
    %v4198 = vshrl.u32 %v4197, 7
    %v4199 = vsub.s32 0, %v4198
    %v4200 = vrot.slane %v4154, %v4199
    %v4202 = vmul.f32 %v4200, %v4165
    %v4203 = vmul.f32 %v4200, %v4166
    %v4204 = vmul.f32 %v4202, %v4194
    %v4205 = vmul.f32 %v4203, %v4195
    %v4207 = vlaneseq
    %v4208 = vshrl.u32 %v4207, 7
    %v4209 = vsub.s32 0, %v4208
    %v4210 = vrot.slane %v4155, %v4209
    %v4212 = vadd.f32 %v4204, %v4210
    %v4213 = vadd.f32 %v4205, %v4210
    %v4214 = vpack.c.bf16 %v4213, %v4212
    %v4215 = vld [vmem:[%s10] sm:$0xf]
    %v4216 = vld [vmem:[%s10 + $0x4] sm:$0xf]
    %v4217 = vld [vmem:[%s10 + $0x8] sm:$0xf]
    %v4218 = vld [vmem:[%s10 + $0xc] sm:$0xf]
    %v4219 = vld [vmem:[%s11] sm:$0x1]
    %v4221 = vlaneseq
    %v4222 = vshrl.u32 %v4221, 7
    %v4223 = vsub.s32 0, %v4222
    %v4224 = vrot.slane %v4219, %v4223
    %v4230 = vunpack.c.l.b16 %v4215
    %v4231 = vunpack.c.l.b16 %v4216
    %v4232 = vunpack.c.l.b16 %v4217
    %v4233 = vunpack.c.l.b16 %v4218
    %v4234 = vpack.c.b16 %v4231, %v4230
    %v4235 = vpack.c.b16 %v4233, %v4232
    %v4239 = vsel %vm174, %v4214, 0
    %4241 = vmatprep.subr.bf16.mxu0 0
    %4242 = vmatpush1.bf16.msra.mxu0 0
    %4243 = vmatprep.subr.bf16.mxu0 0
    %4244 = vmatpush1.bf16.msra.mxu0 0
    %4245 = vmatprep.subr.bf16.mxu0 0
    %4246 = vmatpush1.bf16.msra.mxu0 0
    %4247 = vmatprep.subr.bf16.mxu0 0
    %4248 = vmatpush1.bf16.msra.mxu0 0
    %4249 = vmatprep.subr.bf16.mxu0 0
    %4250 = vmatpush1.bf16.msra.mxu0 0
    %4251 = vmatprep.subr.bf16.mxu0 0
    %4252 = vmatpush1.bf16.msra.mxu0 0
    %4253 = vmatprep.subr.bf16.mxu0 0
    %4254 = vmatpush1.bf16.msra.mxu0 %v4235
    %4255 = vmatprep.subr.bf16.mxu0 0
    %4256 = vmatpush1.bf16.msra.mxu0 %v4234
    %4257 = vmatprep.subr.bf16.mxu0 0
    %4258 = vmatpush2.bf16.msra.mxu0 0
    %4259 = vmatprep.subr.bf16.mxu0 0
    %4260 = vmatpush2.bf16.msra.mxu0 0
    %4261 = vmatprep.subr.bf16.mxu0 0
    %4262 = vmatpush2.bf16.msra.mxu0 0
    %4263 = vmatprep.subr.bf16.mxu0 0
    %4264 = vmatpush2.bf16.msra.mxu0 0
    %4265 = vmatprep.subr.bf16.mxu0 0
    %4266 = vmatpush2.bf16.msra.mxu0 0
    %4267 = vmatprep.subr.bf16.mxu0 0
    %4268 = vmatpush2.bf16.msra.mxu0 0
    %4269 = vmatprep.subr.bf16.mxu0 0
    %4270 = vmatpush2.bf16.msra.mxu0 0
    %4271 = vmatprep.subr.bf16.mxu0 0
    %4272 = vmatpush2.bf16.msra.mxu0 0
    %4273 = vmatprep.mubr.bf16.mxu0 0
    %4274 = vmatmul.mubr.bf16.gmra.mxu0 %v4239
    %v4275 = vpop.f32.mrf.mxu0
    %v4276 = vadd.f32 %v4224, %v4275
    %v4277 = vpop.f32.mrf.mxu0
    %v4278 = vpop.f32.mrf.mxu0
    %v4279 = vadd.f32 %v4224, %v4278
    %v4280 = vpop.f32.mrf.mxu0
    %4281 = vdwg.mxu0
    %v4282 = vmax.f32 %v4276, 0.0
    %v4283 = vmax.f32 %v4279, 0.0
    %v4284 = vpack.c.bf16 %v4283, %v4282
    %v4285 = vld [vmem:[%s12] sm:$0xf]
    %v4286 = vld [vmem:[%s12 + $0x4] sm:$0xf]
    %v4287 = vld [vmem:[%s12 + $0x8] sm:$0xf]
    %v4288 = vld [vmem:[%s12 + $0xc] sm:$0xf]
    %v4289 = vld [vmem:[%s12 + $0x10] sm:$0xf]
    %v4290 = vld [vmem:[%s12 + $0x14] sm:$0xf]
    %v4291 = vld [vmem:[%s12 + $0x18] sm:$0xf]
    %v4292 = vld [vmem:[%s12 + $0x1c] sm:$0xf]
    %v4293 = vld [vmem:[%s13] sm:$0x1]
    %v4295 = vlaneseq
    %v4296 = vshrl.u32 %v4295, 7
    %v4297 = vsub.s32 0, %v4296
    %v4298 = vrot.slane %v4293, %v4297
    %v4308 = vunpack.c.l.b16 %v4285
    %v4309 = vunpack.c.l.b16 %v4286
    %v4310 = vunpack.c.l.b16 %v4287
    %v4311 = vunpack.c.l.b16 %v4288
    %v4312 = vunpack.c.l.b16 %v4289
    %v4313 = vunpack.c.l.b16 %v4290
    %v4314 = vunpack.c.l.b16 %v4291
    %v4315 = vunpack.c.l.b16 %v4292
    %v4316 = vpack.c.b16 %v4309, %v4308
    %v4317 = vpack.c.b16 %v4311, %v4310
    %v4318 = vpack.c.b16 %v4313, %v4312
    %v4319 = vpack.c.b16 %v4315, %v4314
    %vm4324 = vcmask 523264
    %v4326 = vsel %vm4324, %v4284, 0
    %4328 = vmatprep.subr.bf16.mxu0 0
    %4329 = vmatpush1.bf16.msra.mxu0 0
    %4330 = vmatprep.subr.bf16.mxu0 0
    %4331 = vmatpush1.bf16.msra.mxu0 0
    %4332 = vmatprep.subr.bf16.mxu0 0
    %4333 = vmatpush1.bf16.msra.mxu0 0
    %4334 = vmatprep.subr.bf16.mxu0 0
    %4335 = vmatpush1.bf16.msra.mxu0 0
    %4336 = vmatprep.subr.bf16.mxu0 0
    %4337 = vmatpush1.bf16.msra.mxu0 %v4319
    %4338 = vmatprep.subr.bf16.mxu0 0
    %4339 = vmatpush1.bf16.msra.mxu0 %v4318
    %4340 = vmatprep.subr.bf16.mxu0 0
    %4341 = vmatpush1.bf16.msra.mxu0 %v4317
    %4342 = vmatprep.subr.bf16.mxu0 0
    %4343 = vmatpush1.bf16.msra.mxu0 %v4316
    %4344 = vmatprep.subr.bf16.mxu0 0
    %4345 = vmatpush2.bf16.msra.mxu0 0
    %4346 = vmatprep.subr.bf16.mxu0 0
    %4347 = vmatpush2.bf16.msra.mxu0 0
    %4348 = vmatprep.subr.bf16.mxu0 0
    %4349 = vmatpush2.bf16.msra.mxu0 0
    %4350 = vmatprep.subr.bf16.mxu0 0
    %4351 = vmatpush2.bf16.msra.mxu0 0
    %4352 = vmatprep.subr.bf16.mxu0 0
    %4353 = vmatpush2.bf16.msra.mxu0 0
    %4354 = vmatprep.subr.bf16.mxu0 0
    %4355 = vmatpush2.bf16.msra.mxu0 0
    %4356 = vmatprep.subr.bf16.mxu0 0
    %4357 = vmatpush2.bf16.msra.mxu0 0
    %4358 = vmatprep.subr.bf16.mxu0 0
    %4359 = vmatpush2.bf16.msra.mxu0 0
    %4360 = vmatprep.mubr.bf16.mxu0 0
    %4361 = vmatmul.mubr.bf16.gmra.mxu0 %v4326
    %v4362 = vpop.f32.mrf.mxu0
    %v4363 = vadd.f32 %v4298, %v4362
    %v4364 = vpop.f32.mrf.mxu0
    %v4365 = vpop.f32.mrf.mxu0
    %v4366 = vadd.f32 %v4298, %v4365
    %v4367 = vpop.f32.mrf.mxu0
    %4368 = vdwg.mxu0
    %v4369 = vadd.f32 %v4212, %v4363
    %v4370 = vadd.f32 %v4213, %v4366
    %v4371 = vld [vmem:[%s16] sm:$0x1]
    %v4372 = vld [vmem:[%s17] sm:$0x1]
    %v4373 = vsel %vm174, %v4369, 0.0
    %4374 = vadd.xlane.f32.xlu0 %v4373
    %v4375 = vpop.xlane.xlu0 %4374
    %v4376 = vsel %vm174, %v4370, 0.0
    %4377 = vadd.xlane.f32.xlu0 %v4376
    %v4378 = vpop.xlane.xlu0 %4377
    %v4379 = vmul.f32 %v4375, %v4162
    %v4380 = vmul.f32 %v4378, %v4162
    %v4381 = vsub.f32 %v4369, %v4379
    %v4382 = vsub.f32 %v4370, %v4380
    %v4383 = vmul.f32 %v4381, %v4381
    %v4384 = vmul.f32 %v4382, %v4382
    %v4385 = vsel %vm174, %v4383, 0.0
    %4386 = vadd.xlane.f32.xlu0 %v4385
    %v4387 = vpop.xlane.xlu0 %4386
    %v4388 = vsel %vm174, %v4384, 0.0
    %4389 = vadd.xlane.f32.xlu0 %v4388
    %v4390 = vpop.xlane.xlu0 %4389
    %v4391 = vmul.f32 %v4387, %v4175
    %v4392 = vmul.f32 %v4390, %v4175
    %v4393 = vrsqrt.pop %v4391
    %v4394 = vmul.f32 %v4391, %v4393
    %vm4395 = vcmp.eq.f32.partialorder %v4391, inf
    %v4396 = vsel %vm4395, %v4391, %v4394
    %vm4397 = vcmp.eq.f32.partialorder %v4391, 0.0
    %v4398 = vand.u32 %v4391, 2147483648
    %v4399 = vsel %vm4397, %v4398, %v4396
    %v4400 = vrsqrt.pop %v4392
    %v4401 = vmul.f32 %v4392, %v4400
    %vm4402 = vcmp.eq.f32.partialorder %v4392, inf
    %v4403 = vsel %vm4402, %v4392, %v4401
    %vm4404 = vcmp.eq.f32.partialorder %v4392, 0.0
    %v4405 = vand.u32 %v4392, 2147483648
    %v4406 = vsel %vm4404, %v4405, %v4403
    %v4407 = vadd.f32 %v4399, 1e-06
    %v4408 = vadd.f32 %v4406, 1e-06
    %v4409 = vrcp.pop %v4407
    %v4410 = vrcp.pop %v4408
    %v4412 = vlaneseq
    %v4413 = vshrl.u32 %v4412, 7
    %v4414 = vsub.s32 0, %v4413
    %v4415 = vrot.slane %v4371, %v4414
    %v4417 = vmul.f32 %v4415, %v4381
    %v4418 = vmul.f32 %v4415, %v4382
    %v4419 = vmul.f32 %v4417, %v4409
    %v4420 = vmul.f32 %v4418, %v4410
    %v4422 = vlaneseq
    %v4423 = vshrl.u32 %v4422, 7
    %v4424 = vsub.s32 0, %v4423
    %v4425 = vrot.slane %v4372, %v4424
    %v4427 = vadd.f32 %v4419, %v4425
    %v4428 = vadd.f32 %v4420, %v4425
    %4429 = vst.msk [vmem:[#allocation14] sm:$0xff] %vm174, %v4427
    %4430 = vst.msk [vmem:[#allocation14 + $0x8] sm:$0xff] %vm174, %v4428
    // Predicated region
    $region102: #{tpu_custom_call.1} parent=1 // pred_check
      _
    $region103: #{tpu_custom_call.1} parent=1 // pred_check_branch
      %4432 = sbr.rel (0) target = $region105
    $region104: #{tpu_custom_call.1} parent=1 // pred_region
      %s4434 = ssub.s32 256, 256
      %4435 = vsyncadd [#allocation4], %s4434
      %s4436 = sshll.u32 [#allocation14], 4
      %s4437 = int_to_ptr.vmem [resolvable:$true] %s4436
      %4442 = dma.vmem_to_hbm [thread:$0]  %s4437, 256, %s18, [#allocation4], 128, 128, 8
    $region105: #{tpu_custom_call.1} parent=1 // pred_fallthru
      _
    // Predicated region
    $region106: #{tpu_custom_call.1} parent=1 // pred_check
      _
    $region107: #{tpu_custom_call.1} parent=1 // pred_check_branch
      %4444 = sbr.rel (0) target = $region109
    $region108: #{tpu_custom_call.1} parent=1 // pred_region
      %4445 = dma.done [#allocation4], 256
    $region109: #{tpu_custom_call.1} parent=1 // pred_fallthru
      _
    %4446 = vsyncpa [#allocation3], 1
    %4447 = vsyncpa [#allocation6], 1
    %4448 = vsyncpa [#allocation9], 1
    %4449 = vsyncpa [#allocation12], 1
    %4450 = vsyncpa [#allocation4], 1

</llo_original>
